<compile_context>
chip_gen: v6e
topology: v6e:2x2x1
jax: 0.10.0
libtpu: 0.0.40
codegen_flags: <defaults>
</compile_context>

<pallas_src>
import jax
import jax.numpy as jnp
from jax.experimental import pallas as pl
from jax.experimental.pallas import tpu as pltpu

_LANE = 128        # lane width: last-dim alignment for dense stores / MXU
_SUBLANE = 8       # f32 sublane alignment for the batch tile


def _round_up(n, m):
    return ((n + m - 1) // m) * m


def _mlp_kernel(x_ref, *refs):
    """Whole Linear stack (no activations, matching NN2.forward) on one batch tile.

    refs = (w0, b0, w1, b1, ..., wL, bL, out_ref)
    wi: (in_i, out_i) [f32 or bf16], bi: (1, out_i). Accumulation is f32.
    """
    out_ref = refs[-1]
    param_refs = refs[:-1]
    n_layers = len(param_refs) // 2

    h = x_ref[...]
    for i in range(n_layers):
        w = param_refs[2 * i][...]
        b = param_refs[2 * i + 1][...]
        # MXU matmul in the weight dtype, f32 accumulation; VPU bias add in f32.
        acc = jnp.dot(h.astype(w.dtype), w, preferred_element_type=jnp.float32)
        acc = acc + b.astype(jnp.float32)
        # Keep inter-layer activations in the weight dtype (bf16 path saves
        # VMEM/HBM traffic); final layer stays f32 until the output cast.
        h = acc if i == n_layers - 1 else acc.astype(w.dtype)
    out_ref[...] = h.astype(out_ref.dtype)


def _nn2_forward_impl(x, params, *, batch_tile, single_buffer_weights):
    B, in_N = x.shape
    out_N = params[-1][0].shape[1]

    # ---- pad feature dims to lane multiples (exact for a Linear stack). ----
    dims = [in_N] + [w.shape[1] for (w, _) in params]
    pdims = [_round_up(d, _LANE) for d in dims]

    padded_params = []
    for li, (w, b) in enumerate(params):
        pw = jnp.zeros((pdims[li], pdims[li + 1]), w.dtype)
        pw = pw.at[: w.shape[0], : w.shape[1]].set(w)
        pb = jnp.zeros((1, pdims[li + 1]), b.dtype)
        pb = pb.at[:, : b.shape[1]].set(b)
        padded_params.append((pw, pb))

    # ---- batch tile: sublane-aligned, many grid steps for pipelining. ----
    tb = min(batch_tile, _round_up(B, _SUBLANE))
    tb = _round_up(tb, _SUBLANE)
    B_pad = _round_up(B, tb)
    grid = (B_pad // tb,)

    x_pad = jnp.zeros((B_pad, pdims[0]), x.dtype).at[:B, :in_N].set(x)

    # ---- BlockSpecs: x/out tiled over batch; weights resident (constant map). -
    wmode = pl.Buffered(1) if single_buffer_weights else None
    in_specs = [pl.BlockSpec((tb, pdims[0]), lambda i: (i, 0))]
    flat_params = []
    for (w, b) in padded_params:
        in_specs.append(pl.BlockSpec(w.shape, lambda i: (0, 0), pipeline_mode=wmode))
        in_specs.append(pl.BlockSpec(b.shape, lambda i: (0, 0), pipeline_mode=wmode))
        flat_params.extend([w, b])
    out_specs = pl.BlockSpec((tb, pdims[-1]), lambda i: (i, 0))

    # ---- VMEM budget: resident weights (+buffering) + double-buffered x/out
    #      tiles + f32 intermediate, with generous margin, capped at 64 MiB
    #      (v7x per-TC physical). ----
    param_bytes = sum(w.size * w.dtype.itemsize + b.size * b.dtype.itemsize
                      for (w, b) in padded_params)
    n_param_bufs = 1 if single_buffer_weights else 2
    io_bytes = 2 * tb * pdims[0] * x.dtype.itemsize + 2 * tb * pdims[-1] * x.dtype.itemsize
    h_bytes = 2 * tb * max(pdims) * 4
    vmem_needed = n_param_bufs * param_bytes + io_bytes + h_bytes
    vmem_limit = int(min(64 * 1024 * 1024, 2 * vmem_needed + 4 * 1024 * 1024))

    # ---- advisory cost estimate for the XLA scheduler. ----
    flops = 2 * B_pad * sum(pdims[i] * pdims[i + 1] for i in range(len(pdims) - 1))
    bytes_accessed = (x_pad.size * x_pad.dtype.itemsize
                      + param_bytes
                      + B_pad * pdims[-1] * x.dtype.itemsize)
    cost = pl.CostEstimate(flops=flops, transcendentals=0,
                           bytes_accessed=bytes_accessed)

    out_pad = pl.pallas_call(
        _mlp_kernel,
        out_shape=jax.ShapeDtypeStruct((B_pad, pdims[-1]), x.dtype),
        grid=grid,
        in_specs=in_specs,
        out_specs=out_specs,
        compiler_params=pltpu.CompilerParams(
            dimension_semantics=("parallel",),
            vmem_limit_bytes=vmem_limit,
        ),
        cost_estimate=cost,
    )(x_pad, *flat_params)

    return out_pad[:B, :out_N]


def nn2_forward(x, params, *, batch_tile=256, single_buffer_weights=True):
    """Run the NN2 MLP with a single pallas_call, tiled over the batch axis.

    x:       (B, in_N) float32
    params:  list of (W, b) with W: (in_i, out_i), b: (1, out_i); f32 or bf16.
    """
    if single_buffer_weights:
        try:
            out = _nn2_forward_impl(x, params, batch_tile=batch_tile,
                                    single_buffer_weights=True)
            return jax.block_until_ready(out)
        except Exception:
            # Some Pallas versions reject pl.Buffered(1) on top-level BlockSpecs;
            # fall back to default (double) buffering — correctness unaffected.
            pass
    out = _nn2_forward_impl(x, params, batch_tile=batch_tile,
                            single_buffer_weights=False)
    return jax.block_until_ready(out)


def init_nn2_params(key, in_N, width, depth, out_N):
    """Deterministic init mimicking torch.nn.Linear defaults:
    weight, bias ~ U(-1/sqrt(fan_in), 1/sqrt(fan_in)).
    Weights are returned already transposed to (in, out)."""
    dims = [in_N, width] + [width] * depth + [out_N]
    params = []
    for li in range(len(dims) - 1):
        fan_in, fan_out = dims[li], dims[li + 1]
        key, kw, kb = jax.random.split(key, 3)
        bound = 1.0 / jnp.sqrt(jnp.float32(fan_in))
        w = jax.random.uniform(kw, (fan_in, fan_out), jnp.float32, -bound, bound)
        b = jax.random.uniform(kb, (1, fan_out), jnp.float32, -bound, bound)
        params.append((w, b))
    return params


def nn2_reference(x, params):
    """Pure-JAX reference for correctness checking."""
    h = x
    for (w, b) in params:
        h = h @ w + b
    return h


if __name__ == "__main__":
    # NN2(in_N=4, width=32, depth=2, out_N=4); batch large enough that the
    # kernel actually gets a multi-step, pipelined (and megacore-shardable) grid.
    in_N, width, depth, out_N = 4, 32, 2, 4
    batch = 1024

    key = jax.random.PRNGKey(0)
    key, kx = jax.random.split(key)
    x = jax.random.normal(kx, (batch, in_N), jnp.float32)

    params = init_nn2_params(key, in_N, width, depth, out_N)
    ref = nn2_reference(x, params)

    # f32 path (matches PyTorch default dtype) — strict check.
    out = nn2_forward(x, params, batch_tile=256)
    assert out.shape == (batch, out_N)
    assert jnp.allclose(out, ref, atol=1e-5, rtol=1e-5), "f32 mismatch vs reference"

    # bf16-weight path (v6e/v7x fast path: bf16 MXU operands, f32 accumulation).
    params_bf16 = [(w.astype(jnp.bfloat16), b.astype(jnp.bfloat16)) for (w, b) in params]
    out_bf16 = nn2_forward(x, params_bf16, batch_tile=256)
    assert out_bf16.shape == (batch, out_N)
    assert bool(jnp.all(jnp.isfinite(out_bf16)))
    assert jnp.allclose(out_bf16, ref, atol=1e-1, rtol=1e-1), "bf16 mismatch vs reference"

    print("KERNEL_OK")
</pallas_src>

<mosaic_0001>
module attributes {stable_mosaic.version = 11 : i64} {
  func.func @_mlp_kernel(%arg0: i32, %arg1: memref<256x128xf32, #tpu.memory_space<vmem>>, %arg2: memref<128x128xf32, #tpu.memory_space<vmem>>, %arg3: memref<1x128xf32, #tpu.memory_space<vmem>>, %arg4: memref<128x128xf32, #tpu.memory_space<vmem>>, %arg5: memref<1x128xf32, #tpu.memory_space<vmem>>, %arg6: memref<128x128xf32, #tpu.memory_space<vmem>>, %arg7: memref<1x128xf32, #tpu.memory_space<vmem>>, %arg8: memref<128x128xf32, #tpu.memory_space<vmem>>, %arg9: memref<1x128xf32, #tpu.memory_space<vmem>>, %arg10: memref<256x128xf32, #tpu.memory_space<vmem>>) attributes {dimension_semantics = [#tpu.dimension_semantics<parallel>], iteration_bounds = array<i64: 4>, scalar_prefetch = 0 : i64, scratch_operands = 0 : i64, tpu.core_type = #tpu.core_type<tc>, window_params = [{transform_indices = @transform_0, window_bounds = array<i64: 256, 128>}, {pipeline_mode = #tpu.pipeline_mode<synchronous>, transform_indices = @transform_1, window_bounds = array<i64: 128, 128>}, {pipeline_mode = #tpu.pipeline_mode<synchronous>, transform_indices = @transform_2, window_bounds = array<i64: 1, 128>}, {pipeline_mode = #tpu.pipeline_mode<synchronous>, transform_indices = @transform_3, window_bounds = array<i64: 128, 128>}, {pipeline_mode = #tpu.pipeline_mode<synchronous>, transform_indices = @transform_4, window_bounds = array<i64: 1, 128>}, {pipeline_mode = #tpu.pipeline_mode<synchronous>, transform_indices = @transform_5, window_bounds = array<i64: 128, 128>}, {pipeline_mode = #tpu.pipeline_mode<synchronous>, transform_indices = @transform_6, window_bounds = array<i64: 1, 128>}, {pipeline_mode = #tpu.pipeline_mode<synchronous>, transform_indices = @transform_7, window_bounds = array<i64: 128, 128>}, {pipeline_mode = #tpu.pipeline_mode<synchronous>, transform_indices = @transform_8, window_bounds = array<i64: 1, 128>}, {transform_indices = @transform_9, window_bounds = array<i64: 256, 128>}]} {
    %c0 = arith.constant 0 : index
    %c0_0 = arith.constant 0 : index
    %0 = vector.load %arg1[%c0, %c0_0] : memref<256x128xf32, #tpu.memory_space<vmem>>, vector<256x128xf32>
    %c0_1 = arith.constant 0 : index
    %c0_2 = arith.constant 0 : index
    %1 = vector.load %arg2[%c0_1, %c0_2] : memref<128x128xf32, #tpu.memory_space<vmem>>, vector<128x128xf32>
    %c0_3 = arith.constant 0 : index
    %c0_4 = arith.constant 0 : index
    %2 = vector.load %arg3[%c0_3, %c0_4] : memref<1x128xf32, #tpu.memory_space<vmem>>, vector<1x128xf32>
    %cst = arith.constant dense<0.000000e+00> : vector<256x128xf32>
    %3 = tpu.matmul %0, %1, %cst {dimension_numbers = #tpu.dot_dimension_numbers<[1], [0], [0], [1], [0, 0, 1, 1], [], []>} : vector<256x128xf32>, vector<128x128xf32>, vector<256x128xf32> -> vector<256x128xf32>
    %4 = vector.broadcast %2 : vector<1x128xf32> to vector<256x128xf32>
    %5 = arith.addf %3, %4 : vector<256x128xf32>
    %c0_5 = arith.constant 0 : index
    %c0_6 = arith.constant 0 : index
    %6 = vector.load %arg4[%c0_5, %c0_6] : memref<128x128xf32, #tpu.memory_space<vmem>>, vector<128x128xf32>
    %c0_7 = arith.constant 0 : index
    %c0_8 = arith.constant 0 : index
    %7 = vector.load %arg5[%c0_7, %c0_8] : memref<1x128xf32, #tpu.memory_space<vmem>>, vector<1x128xf32>
    %cst_9 = arith.constant dense<0.000000e+00> : vector<256x128xf32>
    %8 = tpu.matmul %5, %6, %cst_9 {dimension_numbers = #tpu.dot_dimension_numbers<[1], [0], [0], [1], [0, 0, 1, 1], [], []>} : vector<256x128xf32>, vector<128x128xf32>, vector<256x128xf32> -> vector<256x128xf32>
    %9 = vector.broadcast %7 : vector<1x128xf32> to vector<256x128xf32>
    %10 = arith.addf %8, %9 : vector<256x128xf32>
    %c0_10 = arith.constant 0 : index
    %c0_11 = arith.constant 0 : index
    %11 = vector.load %arg6[%c0_10, %c0_11] : memref<128x128xf32, #tpu.memory_space<vmem>>, vector<128x128xf32>
    %c0_12 = arith.constant 0 : index
    %c0_13 = arith.constant 0 : index
    %12 = vector.load %arg7[%c0_12, %c0_13] : memref<1x128xf32, #tpu.memory_space<vmem>>, vector<1x128xf32>
    %cst_14 = arith.constant dense<0.000000e+00> : vector<256x128xf32>
    %13 = tpu.matmul %10, %11, %cst_14 {dimension_numbers = #tpu.dot_dimension_numbers<[1], [0], [0], [1], [0, 0, 1, 1], [], []>} : vector<256x128xf32>, vector<128x128xf32>, vector<256x128xf32> -> vector<256x128xf32>
    %14 = vector.broadcast %12 : vector<1x128xf32> to vector<256x128xf32>
    %15 = arith.addf %13, %14 : vector<256x128xf32>
    %c0_15 = arith.constant 0 : index
    %c0_16 = arith.constant 0 : index
    %16 = vector.load %arg8[%c0_15, %c0_16] : memref<128x128xf32, #tpu.memory_space<vmem>>, vector<128x128xf32>
    %c0_17 = arith.constant 0 : index
    %c0_18 = arith.constant 0 : index
    %17 = vector.load %arg9[%c0_17, %c0_18] : memref<1x128xf32, #tpu.memory_space<vmem>>, vector<1x128xf32>
    %cst_19 = arith.constant dense<0.000000e+00> : vector<256x128xf32>
    %18 = tpu.matmul %15, %16, %cst_19 {dimension_numbers = #tpu.dot_dimension_numbers<[1], [0], [0], [1], [0, 0, 1, 1], [], []>} : vector<256x128xf32>, vector<128x128xf32>, vector<256x128xf32> -> vector<256x128xf32>
    %19 = vector.broadcast %17 : vector<1x128xf32> to vector<256x128xf32>
    %20 = arith.addf %18, %19 : vector<256x128xf32>
    %c0_20 = arith.constant 0 : index
    %c0_21 = arith.constant 0 : index
    %21 = vector.load %arg10[%c0_20, %c0_21] : memref<256x128xf32, #tpu.memory_space<vmem>>, vector<256x128xf32>
    tpu.vector_store %arg10[%c0_20, %c0_21], %20 {strides = array<i32>} : memref<256x128xf32, #tpu.memory_space<vmem>>, vector<256x128xf32>,
    return
  }
  func.func @transform_0(%arg0: i32) -> (i32, i32) {
    %c0_i32 = arith.constant 0 : i32
    %c0_i32_0 = arith.constant 0 : i32
    return %arg0, %c0_i32 : i32, i32
  }
  func.func @transform_1(%arg0: i32) -> (i32, i32) {
    %c0_i32 = arith.constant 0 : i32
    %c0_i32_0 = arith.constant 0 : i32
    %c0_i32_1 = arith.constant 0 : i32
    return %c0_i32, %c0_i32_0 : i32, i32
  }
  func.func @transform_2(%arg0: i32) -> (i32, i32) {
    %c0_i32 = arith.constant 0 : i32
    %c0_i32_0 = arith.constant 0 : i32
    %c0_i32_1 = arith.constant 0 : i32
    return %c0_i32, %c0_i32_0 : i32, i32
  }
  func.func @transform_3(%arg0: i32) -> (i32, i32) {
    %c0_i32 = arith.constant 0 : i32
    %c0_i32_0 = arith.constant 0 : i32
    %c0_i32_1 = arith.constant 0 : i32
    return %c0_i32, %c0_i32_0 : i32, i32
  }
  func.func @transform_4(%arg0: i32) -> (i32, i32) {
    %c0_i32 = arith.constant 0 : i32
    %c0_i32_0 = arith.constant 0 : i32
    %c0_i32_1 = arith.constant 0 : i32
    return %c0_i32, %c0_i32_0 : i32, i32
  }
  func.func @transform_5(%arg0: i32) -> (i32, i32) {
    %c0_i32 = arith.constant 0 : i32
    %c0_i32_0 = arith.constant 0 : i32
    %c0_i32_1 = arith.constant 0 : i32
    return %c0_i32, %c0_i32_0 : i32, i32
  }
  func.func @transform_6(%arg0: i32) -> (i32, i32) {
    %c0_i32 = arith.constant 0 : i32
    %c0_i32_0 = arith.constant 0 : i32
    %c0_i32_1 = arith.constant 0 : i32
    return %c0_i32, %c0_i32_0 : i32, i32
  }
  func.func @transform_7(%arg0: i32) -> (i32, i32) {
    %c0_i32 = arith.constant 0 : i32
    %c0_i32_0 = arith.constant 0 : i32
    %c0_i32_1 = arith.constant 0 : i32
    return %c0_i32, %c0_i32_0 : i32, i32
  }
  func.func @transform_8(%arg0: i32) -> (i32, i32) {
    %c0_i32 = arith.constant 0 : i32
    %c0_i32_0 = arith.constant 0 : i32
    %c0_i32_1 = arith.constant 0 : i32
    return %c0_i32, %c0_i32_0 : i32, i32
  }
  func.func @transform_9(%arg0: i32) -> (i32, i32) {
    %c0_i32 = arith.constant 0 : i32
    %c0_i32_0 = arith.constant 0 : i32
    return %arg0, %c0_i32 : i32, i32
  }
}

module attributes {stable_mosaic.version = 11 : i64} {
  func.func @_mlp_kernel(%arg0: i32, %arg1: memref<256x128xf32, #tpu.memory_space<vmem>>, %arg2: memref<128x128xf32, #tpu.memory_space<vmem>>, %arg3: memref<1x128xf32, #tpu.memory_space<vmem>>, %arg4: memref<128x128xf32, #tpu.memory_space<vmem>>, %arg5: memref<1x128xf32, #tpu.memory_space<vmem>>, %arg6: memref<128x128xf32, #tpu.memory_space<vmem>>, %arg7: memref<1x128xf32, #tpu.memory_space<vmem>>, %arg8: memref<128x128xf32, #tpu.memory_space<vmem>>, %arg9: memref<1x128xf32, #tpu.memory_space<vmem>>, %arg10: memref<256x128xf32, #tpu.memory_space<vmem>>) attributes {dimension_semantics = [#tpu.dimension_semantics<parallel>], iteration_bounds = array<i64: 4>, scalar_prefetch = 0 : i64, scratch_operands = 0 : i64, tpu.core_type = #tpu.core_type<tc>, window_params = [{transform_indices = @transform_0, window_bounds = array<i64: 256, 128>}, {pipeline_mode = #tpu.pipeline_mode<synchronous>, transform_indices = @transform_1, window_bounds = array<i64: 128, 128>}, {pipeline_mode = #tpu.pipeline_mode<synchronous>, transform_indices = @transform_2, window_bounds = array<i64: 1, 128>}, {pipeline_mode = #tpu.pipeline_mode<synchronous>, transform_indices = @transform_3, window_bounds = array<i64: 128, 128>}, {pipeline_mode = #tpu.pipeline_mode<synchronous>, transform_indices = @transform_4, window_bounds = array<i64: 1, 128>}, {pipeline_mode = #tpu.pipeline_mode<synchronous>, transform_indices = @transform_5, window_bounds = array<i64: 128, 128>}, {pipeline_mode = #tpu.pipeline_mode<synchronous>, transform_indices = @transform_6, window_bounds = array<i64: 1, 128>}, {pipeline_mode = #tpu.pipeline_mode<synchronous>, transform_indices = @transform_7, window_bounds = array<i64: 128, 128>}, {pipeline_mode = #tpu.pipeline_mode<synchronous>, transform_indices = @transform_8, window_bounds = array<i64: 1, 128>}, {transform_indices = @transform_9, window_bounds = array<i64: 256, 128>}]} {
    %c0 = arith.constant 0 : index
    %c0_0 = arith.constant 0 : index
    %0 = vector.load %arg1[%c0, %c0_0] : memref<256x128xf32, #tpu.memory_space<vmem>>, vector<256x128xf32>
    %c0_1 = arith.constant 0 : index
    %c0_2 = arith.constant 0 : index
    %1 = vector.load %arg2[%c0_1, %c0_2] : memref<128x128xf32, #tpu.memory_space<vmem>>, vector<128x128xf32>
    %c0_3 = arith.constant 0 : index
    %c0_4 = arith.constant 0 : index
    %2 = vector.load %arg3[%c0_3, %c0_4] : memref<1x128xf32, #tpu.memory_space<vmem>>, vector<1x128xf32>
    %cst = arith.constant dense<0.000000e+00> : vector<256x128xf32>
    %3 = tpu.matmul %0, %1, %cst {dimension_numbers = #tpu.dot_dimension_numbers<[1], [0], [0], [1], [0, 0, 1, 1], [], []>} : vector<256x128xf32>, vector<128x128xf32>, vector<256x128xf32> -> vector<256x128xf32>
    %4 = vector.broadcast %2 : vector<1x128xf32> to vector<256x128xf32>
    %5 = arith.addf %3, %4 : vector<256x128xf32>
    %c0_5 = arith.constant 0 : index
    %c0_6 = arith.constant 0 : index
    %6 = vector.load %arg4[%c0_5, %c0_6] : memref<128x128xf32, #tpu.memory_space<vmem>>, vector<128x128xf32>
    %c0_7 = arith.constant 0 : index
    %c0_8 = arith.constant 0 : index
    %7 = vector.load %arg5[%c0_7, %c0_8] : memref<1x128xf32, #tpu.memory_space<vmem>>, vector<1x128xf32>
    %cst_9 = arith.constant dense<0.000000e+00> : vector<256x128xf32>
    %8 = tpu.matmul %5, %6, %cst_9 {dimension_numbers = #tpu.dot_dimension_numbers<[1], [0], [0], [1], [0, 0, 1, 1], [], []>} : vector<256x128xf32>, vector<128x128xf32>, vector<256x128xf32> -> vector<256x128xf32>
    %9 = vector.broadcast %7 : vector<1x128xf32> to vector<256x128xf32>
    %10 = arith.addf %8, %9 : vector<256x128xf32>
    %c0_10 = arith.constant 0 : index
    %c0_11 = arith.constant 0 : index
    %11 = vector.load %arg6[%c0_10, %c0_11] : memref<128x128xf32, #tpu.memory_space<vmem>>, vector<128x128xf32>
    %c0_12 = arith.constant 0 : index
    %c0_13 = arith.constant 0 : index
    %12 = vector.load %arg7[%c0_12, %c0_13] : memref<1x128xf32, #tpu.memory_space<vmem>>, vector<1x128xf32>
    %cst_14 = arith.constant dense<0.000000e+00> : vector<256x128xf32>
    %13 = tpu.matmul %10, %11, %cst_14 {dimension_numbers = #tpu.dot_dimension_numbers<[1], [0], [0], [1], [0, 0, 1, 1], [], []>} : vector<256x128xf32>, vector<128x128xf32>, vector<256x128xf32> -> vector<256x128xf32>
    %14 = vector.broadcast %12 : vector<1x128xf32> to vector<256x128xf32>
    %15 = arith.addf %13, %14 : vector<256x128xf32>
    %c0_15 = arith.constant 0 : index
    %c0_16 = arith.constant 0 : index
    %16 = vector.load %arg8[%c0_15, %c0_16] : memref<128x128xf32, #tpu.memory_space<vmem>>, vector<128x128xf32>
    %c0_17 = arith.constant 0 : index
    %c0_18 = arith.constant 0 : index
    %17 = vector.load %arg9[%c0_17, %c0_18] : memref<1x128xf32, #tpu.memory_space<vmem>>, vector<1x128xf32>
    %cst_19 = arith.constant dense<0.000000e+00> : vector<256x128xf32>
    %18 = tpu.matmul %15, %16, %cst_19 {dimension_numbers = #tpu.dot_dimension_numbers<[1], [0], [0], [1], [0, 0, 1, 1], [], []>} : vector<256x128xf32>, vector<128x128xf32>, vector<256x128xf32> -> vector<256x128xf32>
    %19 = vector.broadcast %17 : vector<1x128xf32> to vector<256x128xf32>
    %20 = arith.addf %18, %19 : vector<256x128xf32>
    %c0_20 = arith.constant 0 : index
    %c0_21 = arith.constant 0 : index
    %21 = vector.load %arg10[%c0_20, %c0_21] : memref<256x128xf32, #tpu.memory_space<vmem>>, vector<256x128xf32>
    tpu.vector_store %arg10[%c0_20, %c0_21], %20 {strides = array<i32>} : memref<256x128xf32, #tpu.memory_space<vmem>>, vector<256x128xf32>,
    return
  }
  func.func @transform_0(%arg0: i32) -> (i32, i32) {
    %c0_i32 = arith.constant 0 : i32
    %c0_i32_0 = arith.constant 0 : i32
    return %arg0, %c0_i32 : i32, i32
  }
  func.func @transform_1(%arg0: i32) -> (i32, i32) {
    %c0_i32 = arith.constant 0 : i32
    %c0_i32_0 = arith.constant 0 : i32
    %c0_i32_1 = arith.constant 0 : i32
    return %c0_i32, %c0_i32_0 : i32, i32
  }
  func.func @transform_2(%arg0: i32) -> (i32, i32) {
    %c0_i32 = arith.constant 0 : i32
    %c0_i32_0 = arith.constant 0 : i32
    %c0_i32_1 = arith.constant 0 : i32
    return %c0_i32, %c0_i32_0 : i32, i32
  }
  func.func @transform_3(%arg0: i32) -> (i32, i32) {
    %c0_i32 = arith.constant 0 : i32
    %c0_i32_0 = arith.constant 0 : i32
    %c0_i32_1 = arith.constant 0 : i32
    return %c0_i32, %c0_i32_0 : i32, i32
  }
  func.func @transform_4(%arg0: i32) -> (i32, i32) {
    %c0_i32 = arith.constant 0 : i32
    %c0_i32_0 = arith.constant 0 : i32
    %c0_i32_1 = arith.constant 0 : i32
    return %c0_i32, %c0_i32_0 : i32, i32
  }
  func.func @transform_5(%arg0: i32) -> (i32, i32) {
    %c0_i32 = arith.constant 0 : i32
    %c0_i32_0 = arith.constant 0 : i32
    %c0_i32_1 = arith.constant 0 : i32
    return %c0_i32, %c0_i32_0 : i32, i32
  }
  func.func @transform_6(%arg0: i32) -> (i32, i32) {
    %c0_i32 = arith.constant 0 : i32
    %c0_i32_0 = arith.constant 0 : i32
    %c0_i32_1 = arith.constant 0 : i32
    return %c0_i32, %c0_i32_0 : i32, i32
  }
  func.func @transform_7(%arg0: i32) -> (i32, i32) {
    %c0_i32 = arith.constant 0 : i32
    %c0_i32_0 = arith.constant 0 : i32
    %c0_i32_1 = arith.constant 0 : i32
    return %c0_i32, %c0_i32_0 : i32, i32
  }
  func.func @transform_8(%arg0: i32) -> (i32, i32) {
    %c0_i32 = arith.constant 0 : i32
    %c0_i32_0 = arith.constant 0 : i32
    %c0_i32_1 = arith.constant 0 : i32
    return %c0_i32, %c0_i32_0 : i32, i32
  }
  func.func @transform_9(%arg0: i32) -> (i32, i32) {
    %c0_i32 = arith.constant 0 : i32
    %c0_i32_0 = arith.constant 0 : i32
    return %arg0, %c0_i32 : i32, i32
  }
}

</mosaic_0001>

<llo_original>
// kernel: tpu_custom_call.1
$region0: #{tpu_custom_call.1}
  #allocation0 [shape = 'u32[]', space=smem, size = 0x4, offset = 0x4, fixed_abs, tag = 'smem constant byte address 0x4 - core index']
  #allocation1 [shape = 'u32[144,128]{1,0:T(1,128)}', space=vmem, size = 0x12000, scoped, tag = 'internal scratch']
  %s0 = inlined_call_operand.hbm [shape: f32[1024,128], index: 0, kind: input, shape index: {}]
  %s1 = inlined_call_operand.hbm [shape: f32[128,128], index: 1, kind: input, shape index: {}]
  %s2 = inlined_call_operand.vmem [shape: f32[1,128], index: 2, kind: input, shape index: {}]
  %s3 = inlined_call_operand.hbm [shape: f32[128,128], index: 3, kind: input, shape index: {}]
  %s4 = inlined_call_operand.vmem [shape: f32[1,128], index: 4, kind: input, shape index: {}]
  %s5 = inlined_call_operand.hbm [shape: f32[128,128], index: 5, kind: input, shape index: {}]
  %s6 = inlined_call_operand.vmem [shape: f32[1,128], index: 6, kind: input, shape index: {}]
  %s7 = inlined_call_operand.hbm [shape: f32[128,128], index: 7, kind: input, shape index: {}]
  %s8 = inlined_call_operand.vmem [shape: f32[1,128], index: 8, kind: input, shape index: {}]
  %s9 = inlined_call_operand.hbm [shape: f32[1024,128], index: 9, kind: output, shape index: {}]
  %s10 = sld [smem:[#allocation0]]
  $region89: #{tpu_custom_call.1} parent=0
    _
  %s12 = ssub.s32 1, %s10
  %s13 = scalar_select 0, %s12, %s10
  $region1: #{tpu_custom_call.1} parent=0
    #allocation2 [shape = 'u8[262144]{0}', space=vmem, size = 0x40000, scoped, tag = 'input window, operand 0']
    #allocation3 [shape = 's32[2]{0}', space=sflag, size = 0x8, scoped, tag = 'scoped memory for tpu_custom_call.1']
    #allocation4 [shape = 's32[2]{0}', space=sflag, size = 0x8, scoped, tag = 'scoped memory for tpu_custom_call.1']
    #allocation5 [shape = 'u8[65536]{0}', space=vmem, size = 0x10000, scoped, tag = 'input window, operand 1, single buffered']
    #allocation6 [shape = 's32[1]{0}', space=sflag, size = 0x4, scoped, tag = 'scoped memory for tpu_custom_call.1']
    #allocation7 [shape = 'u8[65536]{0}', space=vmem, size = 0x10000, scoped, tag = 'input window, operand 3, single buffered']
    #allocation8 [shape = 'u8[65536]{0}', space=vmem, size = 0x10000, scoped, tag = 'input window, operand 5, single buffered']
    #allocation9 [shape = 's32[1]{0}', space=sflag, size = 0x4, scoped, tag = 'scoped memory for tpu_custom_call.1']
    #allocation10 [shape = 'u8[65536]{0}', space=vmem, size = 0x10000, scoped, tag = 'input window, operand 7, single buffered']
    #allocation11 [shape = 'u8[262144]{0}', space=vmem, size = 0x40000, scoped, tag = 'output window, operand 0']
    %14 = vsyncpa [#allocation3], 0
    %s15 = scalar_lea.sflag [#allocation3], 1
    %16 = vsyncpa %s15, 0
    %17 = vsyncpa [#allocation6], 0
    %18 = vsyncpa [#allocation9], 0
    %19 = vsyncpa [#allocation4], 0
    %s20 = scalar_lea.sflag [#allocation4], 1
    %21 = vsyncpa %s20, 0
    loop: start=0, step=1, limit=6
    $region2: #{tpu_custom_call.1} parent=1 // loop_pre_header
      _
    $region3: #{tpu_custom_call.1} parent=1 // loop_header
      %s23 = sphi 0, %s27
      %p24 = scmp.ge.s32.totalorder %s23, 6
      %s33 = sphi 0, %s35
      %s36 = sphi 0, %s33
      %s37 = sphi 0, %s36
      %s53 = sphi 0, %s37
      %s57 = sphi 0, %s57
      %s59 = sphi 0, %s57
      %s60 = sphi 0, %s59
      %s74 = sphi 0, %s60
      %s78 = sphi 0, %s78
      %s80 = sphi 0, %s78
      %s81 = sphi 0, %s80
      %s95 = sphi 0, %s81
      %s99 = sphi 0, %s99
      %s101 = sphi 0, %s99
      %s102 = sphi 0, %s101
      %s116 = sphi 0, %s102
      %s120 = sphi 0, %s120
      %s122 = sphi 0, %s120
      %s123 = sphi 0, %s122
      %s137 = sphi 0, %s123
      %s141 = sphi 0, %s141
      %s143 = sphi 0, %s141
      %s144 = sphi 0, %s143
      %s158 = sphi 0, %s144
      %s162 = sphi 0, %s162
      %s164 = sphi 0, %s162
      %s165 = sphi 0, %s164
      %s179 = sphi 0, %s165
      %s183 = sphi 0, %s183
      %s185 = sphi 0, %s183
      %s186 = sphi 0, %s185
      %s200 = sphi 0, %s186
      %s204 = sphi 0, %s204
      %s206 = sphi 0, %s204
      %s207 = sphi 0, %s206
      %s221 = sphi 0, %s207
      %s227 = sphi 0, %s229
      %s230 = sphi 0, %s227
      %s231 = sphi 0, %s230
      %s247 = sphi 0, %s231
    $region4: #{tpu_custom_call.1} parent=1 // loop_header_branch
      %26 = sbr.rel (%p24) target = $region8
    $region5: #{tpu_custom_call.1} parent=1 // loop_body
      %s28 = ssub.s32 %s23, 1
      %s29 = ssub.s32 %s23, 2
      %s30 = sadd.s32 %s23, 1
      %s31 = ssub.s32 %s23, %s30
      %p32 = scmp.eq.s32.totalorder %s31, 0
      %s34 = sadd.s32 %s33, 1
      %s35 = scalar_select %p32, %s33, %s34
      %p38 = pneg %p32
      %p39 = scmp.eq.s32.totalorder %s23, 3
      %p40 = por %p38, %p39
      %p41 = scmp.ne.s32.totalorder %s33, %s36
      %p42 = scmp.eq.s32.totalorder %s23, 0
      %p43 = por %p41, %p42
      %p44 = scmp.ne.s32.totalorder %s33, %s36
      %p45 = scmp.eq.s32.totalorder %s28, 3
      %p46 = por %p44, %p45
      %p47 = scmp.ne.s32.totalorder %s36, %s37
      %p48 = scmp.eq.s32.totalorder %s28, 0
      %p49 = por %p47, %p48
      %p50 = scmp.ne.s32.totalorder %s36, %s37
      %p51 = scmp.eq.s32.totalorder %s29, 3
      %p52 = por %p50, %p51
      %p54 = scmp.ne.s32.totalorder %s37, %s53
      %p55 = scmp.eq.s32.totalorder %s29, 0
      %p56 = por %p54, %p55
      %s58 = sadd.s32 %s57, 1
      %p61 = scmp.eq.s32.totalorder %s23, 3
      %p62 = scmp.ne.s32.totalorder %s57, %s59
      %p63 = scmp.eq.s32.totalorder %s23, 0
      %p64 = por %p62, %p63
      %p65 = scmp.ne.s32.totalorder %s57, %s59
      %p66 = scmp.eq.s32.totalorder %s28, 3
      %p67 = por %p65, %p66
      %p68 = scmp.ne.s32.totalorder %s59, %s60
      %p69 = scmp.eq.s32.totalorder %s28, 0
      %p70 = por %p68, %p69
      %p71 = scmp.ne.s32.totalorder %s59, %s60
      %p72 = scmp.eq.s32.totalorder %s29, 3
      %p73 = por %p71, %p72
      %p75 = scmp.ne.s32.totalorder %s60, %s74
      %p76 = scmp.eq.s32.totalorder %s29, 0
      %p77 = por %p75, %p76
      %s79 = sadd.s32 %s78, 1
      %p82 = scmp.eq.s32.totalorder %s23, 3
      %p83 = scmp.ne.s32.totalorder %s78, %s80
      %p84 = scmp.eq.s32.totalorder %s23, 0
      %p85 = por %p83, %p84
      %p86 = scmp.ne.s32.totalorder %s78, %s80
      %p87 = scmp.eq.s32.totalorder %s28, 3
      %p88 = por %p86, %p87
      %p89 = scmp.ne.s32.totalorder %s80, %s81
      %p90 = scmp.eq.s32.totalorder %s28, 0
      %p91 = por %p89, %p90
      %p92 = scmp.ne.s32.totalorder %s80, %s81
      %p93 = scmp.eq.s32.totalorder %s29, 3
      %p94 = por %p92, %p93
      %p96 = scmp.ne.s32.totalorder %s81, %s95
      %p97 = scmp.eq.s32.totalorder %s29, 0
      %p98 = por %p96, %p97
      %s100 = sadd.s32 %s99, 1
      %p103 = scmp.eq.s32.totalorder %s23, 3
      %p104 = scmp.ne.s32.totalorder %s99, %s101
      %p105 = scmp.eq.s32.totalorder %s23, 0
      %p106 = por %p104, %p105
      %p107 = scmp.ne.s32.totalorder %s99, %s101
      %p108 = scmp.eq.s32.totalorder %s28, 3
      %p109 = por %p107, %p108
      %p110 = scmp.ne.s32.totalorder %s101, %s102
      %p111 = scmp.eq.s32.totalorder %s28, 0
      %p112 = por %p110, %p111
      %p113 = scmp.ne.s32.totalorder %s101, %s102
      %p114 = scmp.eq.s32.totalorder %s29, 3
      %p115 = por %p113, %p114
      %p117 = scmp.ne.s32.totalorder %s102, %s116
      %p118 = scmp.eq.s32.totalorder %s29, 0
      %p119 = por %p117, %p118
      %s121 = sadd.s32 %s120, 1
      %p124 = scmp.eq.s32.totalorder %s23, 3
      %p125 = scmp.ne.s32.totalorder %s120, %s122
      %p126 = scmp.eq.s32.totalorder %s23, 0
      %p127 = por %p125, %p126
      %p128 = scmp.ne.s32.totalorder %s120, %s122
      %p129 = scmp.eq.s32.totalorder %s28, 3
      %p130 = por %p128, %p129
      %p131 = scmp.ne.s32.totalorder %s122, %s123
      %p132 = scmp.eq.s32.totalorder %s28, 0
      %p133 = por %p131, %p132
      %p134 = scmp.ne.s32.totalorder %s122, %s123
      %p135 = scmp.eq.s32.totalorder %s29, 3
      %p136 = por %p134, %p135
      %p138 = scmp.ne.s32.totalorder %s123, %s137
      %p139 = scmp.eq.s32.totalorder %s29, 0
      %p140 = por %p138, %p139
      %s142 = sadd.s32 %s141, 1
      %p145 = scmp.eq.s32.totalorder %s23, 3
      %p146 = scmp.ne.s32.totalorder %s141, %s143
      %p147 = scmp.eq.s32.totalorder %s23, 0
      %p148 = por %p146, %p147
      %p149 = scmp.ne.s32.totalorder %s141, %s143
      %p150 = scmp.eq.s32.totalorder %s28, 3
      %p151 = por %p149, %p150
      %p152 = scmp.ne.s32.totalorder %s143, %s144
      %p153 = scmp.eq.s32.totalorder %s28, 0
      %p154 = por %p152, %p153
      %p155 = scmp.ne.s32.totalorder %s143, %s144
      %p156 = scmp.eq.s32.totalorder %s29, 3
      %p157 = por %p155, %p156
      %p159 = scmp.ne.s32.totalorder %s144, %s158
      %p160 = scmp.eq.s32.totalorder %s29, 0
      %p161 = por %p159, %p160
      %s163 = sadd.s32 %s162, 1
      %p166 = scmp.eq.s32.totalorder %s23, 3
      %p167 = scmp.ne.s32.totalorder %s162, %s164
      %p168 = scmp.eq.s32.totalorder %s23, 0
      %p169 = por %p167, %p168
      %p170 = scmp.ne.s32.totalorder %s162, %s164
      %p171 = scmp.eq.s32.totalorder %s28, 3
      %p172 = por %p170, %p171
      %p173 = scmp.ne.s32.totalorder %s164, %s165
      %p174 = scmp.eq.s32.totalorder %s28, 0
      %p175 = por %p173, %p174
      %p176 = scmp.ne.s32.totalorder %s164, %s165
      %p177 = scmp.eq.s32.totalorder %s29, 3
      %p178 = por %p176, %p177
      %p180 = scmp.ne.s32.totalorder %s165, %s179
      %p181 = scmp.eq.s32.totalorder %s29, 0
      %p182 = por %p180, %p181
      %s184 = sadd.s32 %s183, 1
      %p187 = scmp.eq.s32.totalorder %s23, 3
      %p188 = scmp.ne.s32.totalorder %s183, %s185
      %p189 = scmp.eq.s32.totalorder %s23, 0
      %p190 = por %p188, %p189
      %p191 = scmp.ne.s32.totalorder %s183, %s185
      %p192 = scmp.eq.s32.totalorder %s28, 3
      %p193 = por %p191, %p192
      %p194 = scmp.ne.s32.totalorder %s185, %s186
      %p195 = scmp.eq.s32.totalorder %s28, 0
      %p196 = por %p194, %p195
      %p197 = scmp.ne.s32.totalorder %s185, %s186
      %p198 = scmp.eq.s32.totalorder %s29, 3
      %p199 = por %p197, %p198
      %p201 = scmp.ne.s32.totalorder %s186, %s200
      %p202 = scmp.eq.s32.totalorder %s29, 0
      %p203 = por %p201, %p202
      %s205 = sadd.s32 %s204, 1
      %p208 = scmp.eq.s32.totalorder %s23, 3
      %p209 = scmp.ne.s32.totalorder %s204, %s206
      %p210 = scmp.eq.s32.totalorder %s23, 0
      %p211 = por %p209, %p210
      %p212 = scmp.ne.s32.totalorder %s204, %s206
      %p213 = scmp.eq.s32.totalorder %s28, 3
      %p214 = por %p212, %p213
      %p215 = scmp.ne.s32.totalorder %s206, %s207
      %p216 = scmp.eq.s32.totalorder %s28, 0
      %p217 = por %p215, %p216
      %p218 = scmp.ne.s32.totalorder %s206, %s207
      %p219 = scmp.eq.s32.totalorder %s29, 3
      %p220 = por %p218, %p219
      %p222 = scmp.ne.s32.totalorder %s207, %s221
      %p223 = scmp.eq.s32.totalorder %s29, 0
      %p224 = por %p222, %p223
      %s225 = ssub.s32 %s23, %s30
      %p226 = scmp.eq.s32.totalorder %s225, 0
      %s228 = sadd.s32 %s227, 1
      %s229 = scalar_select %p226, %s227, %s228
      %p232 = pneg %p226
      %p233 = scmp.eq.s32.totalorder %s23, 3
      %p234 = por %p232, %p233
      %p235 = scmp.ne.s32.totalorder %s227, %s230
      %p236 = scmp.eq.s32.totalorder %s23, 0
      %p237 = por %p235, %p236
      %p238 = scmp.ne.s32.totalorder %s227, %s230
      %p239 = scmp.eq.s32.totalorder %s28, 3
      %p240 = por %p238, %p239
      %p241 = scmp.ne.s32.totalorder %s230, %s231
      %p242 = scmp.eq.s32.totalorder %s28, 0
      %p243 = por %p241, %p242
      %p244 = scmp.ne.s32.totalorder %s230, %s231
      %p245 = scmp.eq.s32.totalorder %s29, 3
      %p246 = por %p244, %p245
      %p248 = scmp.ne.s32.totalorder %s231, %s247
      %p249 = scmp.eq.s32.totalorder %s29, 0
      %p250 = por %p248, %p249
      %p251 = scmp.le.s32.totalorder 1, %s23
      %p252 = scmp.lt.s32.totalorder %s23, 5
      %p253 = pnand %p251, %p252
      %p254 = pneg %p253
      // Predicated region
      $region9: #{tpu_custom_call.1} parent=5 // pred_check
        _
      $region10: #{tpu_custom_call.1} parent=5 // pred_check_branch
        %256 = sbr.rel (%p253) target = $region12
      $region11: #{tpu_custom_call.1} parent=5 // pred_region
        %s257 = ssub.s32 %s23, 1
        // Predicated region
        $region13: #{tpu_custom_call.1} parent=11 // pred_check
          %p258 = pneg %p70
        $region14: #{tpu_custom_call.1} parent=11 // pred_check_branch
          %260 = sbr.rel (%p258) target = $region16
        $region15: #{tpu_custom_call.1} parent=11 // pred_region
          %s262 = ssub.s32 2048, 2048
          %263 = vsyncadd [#allocation6], %s262
          %s264 = sshll.u32 [#allocation5], 4
          %s265 = int_to_ptr.vmem [resolvable:$true] %s264
          %270 = dma.hbm_to_vmem [thread:$0]  %s1, 2048, %s265, [#allocation6], 128, 128, 8
        $region16: #{tpu_custom_call.1} parent=11 // pred_fallthru
          _
        // Predicated region
        $region17: #{tpu_custom_call.1} parent=11 // pred_check
          %p271 = pneg %p91
        $region18: #{tpu_custom_call.1} parent=11 // pred_check_branch
          %273 = sbr.rel (%p271) target = $region20
        $region19: #{tpu_custom_call.1} parent=11 // pred_region
          _
        $region20: #{tpu_custom_call.1} parent=11 // pred_fallthru
          _
        // Predicated region
        $region21: #{tpu_custom_call.1} parent=11 // pred_check
          %p274 = pneg %p112
        $region22: #{tpu_custom_call.1} parent=11 // pred_check_branch
          %276 = sbr.rel (%p274) target = $region24
        $region23: #{tpu_custom_call.1} parent=11 // pred_region
          %s278 = ssub.s32 2048, 2048
          %279 = vsyncadd [#allocation6], %s278
          %s280 = sshll.u32 [#allocation7], 4
          %s281 = int_to_ptr.vmem [resolvable:$true] %s280
          %286 = dma.hbm_to_vmem [thread:$0]  %s3, 2048, %s281, [#allocation6], 128, 128, 8
        $region24: #{tpu_custom_call.1} parent=11 // pred_fallthru
          _
        // Predicated region
        $region25: #{tpu_custom_call.1} parent=11 // pred_check
          %p287 = pneg %p133
        $region26: #{tpu_custom_call.1} parent=11 // pred_check_branch
          %289 = sbr.rel (%p287) target = $region28
        $region27: #{tpu_custom_call.1} parent=11 // pred_region
          _
        $region28: #{tpu_custom_call.1} parent=11 // pred_fallthru
          _
        // Predicated region
        $region29: #{tpu_custom_call.1} parent=11 // pred_check
          %p290 = pneg %p154
        $region30: #{tpu_custom_call.1} parent=11 // pred_check_branch
          %292 = sbr.rel (%p290) target = $region32
        $region31: #{tpu_custom_call.1} parent=11 // pred_region
          %s294 = ssub.s32 2048, 2048
          %295 = vsyncadd [#allocation9], %s294
          %s296 = sshll.u32 [#allocation8], 4
          %s297 = int_to_ptr.vmem [resolvable:$true] %s296
          %302 = dma.hbm_to_vmem [thread:$0]  %s5, 2048, %s297, [#allocation9], 128, 128, 8
        $region32: #{tpu_custom_call.1} parent=11 // pred_fallthru
          _
        // Predicated region
        $region33: #{tpu_custom_call.1} parent=11 // pred_check
          %p303 = pneg %p175
        $region34: #{tpu_custom_call.1} parent=11 // pred_check_branch
          %305 = sbr.rel (%p303) target = $region36
        $region35: #{tpu_custom_call.1} parent=11 // pred_region
          _
        $region36: #{tpu_custom_call.1} parent=11 // pred_fallthru
          _
        // Predicated region
        $region37: #{tpu_custom_call.1} parent=11 // pred_check
          %p306 = pneg %p196
        $region38: #{tpu_custom_call.1} parent=11 // pred_check_branch
          %308 = sbr.rel (%p306) target = $region40
        $region39: #{tpu_custom_call.1} parent=11 // pred_region
          %s310 = ssub.s32 2048, 2048
          %311 = vsyncadd [#allocation9], %s310
          %s312 = sshll.u32 [#allocation10], 4
          %s313 = int_to_ptr.vmem [resolvable:$true] %s312
          %318 = dma.hbm_to_vmem [thread:$0]  %s7, 2048, %s313, [#allocation9], 128, 128, 8
        $region40: #{tpu_custom_call.1} parent=11 // pred_fallthru
          _
        // Predicated region
        $region41: #{tpu_custom_call.1} parent=11 // pred_check
          %p319 = pneg %p217
        $region42: #{tpu_custom_call.1} parent=11 // pred_check_branch
          %321 = sbr.rel (%p319) target = $region44
        $region43: #{tpu_custom_call.1} parent=11 // pred_region
          _
        $region44: #{tpu_custom_call.1} parent=11 // pred_fallthru
          _
      $region12: #{tpu_custom_call.1} parent=5 // pred_fallthru
        _
      %p322 = scmp.lt.s32.totalorder %s23, 4
      // Predicated region
      $region45: #{tpu_custom_call.1} parent=5 // pred_check
        %p323 = pneg %p322
      $region46: #{tpu_custom_call.1} parent=5 // pred_check_branch
        %325 = sbr.rel (%p323) target = $region48
      $region47: #{tpu_custom_call.1} parent=5 // pred_region
        // Predicated region
        $region49: #{tpu_custom_call.1} parent=47 // pred_check
          %p326 = pneg %p43
        $region50: #{tpu_custom_call.1} parent=47 // pred_check_branch
          %328 = sbr.rel (%p326) target = $region52
        $region51: #{tpu_custom_call.1} parent=47 // pred_region
          %s329 = sand.u32 %s33, 1
          %s330 = scalar_lea.sflag [#allocation3], %s329
          %s331 = sand.u32 %s33, 1
          %s332 = smul.addr %s331, 256
          %s333 = scalar_lea.vmem [#allocation2], %s332
          %s334 = smul.u32 32, %s23
          %s336 = ssub.s32 4096, 4096
          %337 = vsyncadd %s330, %s336
          %s338 = smul.addr %s334, 128
          %s339 = scalar_lea.hbm %s0, %s338
          %s340 = sshll.u32 %s333, 4
          %s341 = int_to_ptr.vmem [resolvable:$true] %s340
          %346 = dma.hbm_to_vmem [thread:$0]  %s339, 4096, %s341, %s330, 128, 128, 8
        $region52: #{tpu_custom_call.1} parent=47 // pred_fallthru
          _
      $region48: #{tpu_custom_call.1} parent=5 // pred_fallthru
        _
      %p347 = scmp.le.s32.totalorder 1, %s23
      %p348 = scmp.lt.s32.totalorder %s23, 5
      %p349 = pnand %p347, %p348
      %p350 = pneg %p349
      // Predicated region
      $region53: #{tpu_custom_call.1} parent=5 // pred_check
        _
      $region54: #{tpu_custom_call.1} parent=5 // pred_check_branch
        %352 = sbr.rel (%p349) target = $region56
      $region55: #{tpu_custom_call.1} parent=5 // pred_region
        %s353 = ssub.s32 %s23, 1
        %s354 = sand.u32 %s36, 1
        %s355 = scalar_lea.sflag [#allocation3], %s354
        %s356 = sand.u32 %s36, 1
        %s357 = smul.addr %s356, 256
        %s358 = scalar_lea.vmem [#allocation2], %s357
        // Predicated region
        $region57: #{tpu_custom_call.1} parent=55 // pred_check
          %p359 = pneg %p49
        $region58: #{tpu_custom_call.1} parent=55 // pred_check_branch
          %361 = sbr.rel (%p359) target = $region60
        $region59: #{tpu_custom_call.1} parent=55 // pred_region
          %362 = dma.done %s355, 4096
        $region60: #{tpu_custom_call.1} parent=55 // pred_fallthru
          _
        // Predicated region
        $region61: #{tpu_custom_call.1} parent=55 // pred_check
          %p363 = pneg %p70
        $region62: #{tpu_custom_call.1} parent=55 // pred_check_branch
          %365 = sbr.rel (%p363) target = $region64
        $region63: #{tpu_custom_call.1} parent=55 // pred_region
          %366 = dma.done [#allocation6], 2048
        $region64: #{tpu_custom_call.1} parent=55 // pred_fallthru
          _
        // Predicated region
        $region65: #{tpu_custom_call.1} parent=55 // pred_check
          %p367 = pneg %p112
        $region66: #{tpu_custom_call.1} parent=55 // pred_check_branch
          %369 = sbr.rel (%p367) target = $region68
        $region67: #{tpu_custom_call.1} parent=55 // pred_region
          %370 = dma.done [#allocation6], 2048
        $region68: #{tpu_custom_call.1} parent=55 // pred_fallthru
          _
        // Predicated region
        $region69: #{tpu_custom_call.1} parent=55 // pred_check
          %p371 = pneg %p154
        $region70: #{tpu_custom_call.1} parent=55 // pred_check_branch
          %373 = sbr.rel (%p371) target = $region72
        $region71: #{tpu_custom_call.1} parent=55 // pred_region
          %374 = dma.done [#allocation9], 2048
        $region72: #{tpu_custom_call.1} parent=55 // pred_fallthru
          _
        // Predicated region
        $region73: #{tpu_custom_call.1} parent=55 // pred_check
          %p375 = pneg %p196
        $region74: #{tpu_custom_call.1} parent=55 // pred_check_branch
          %377 = sbr.rel (%p375) target = $region76
        $region75: #{tpu_custom_call.1} parent=55 // pred_region
          %378 = dma.done [#allocation9], 2048
        $region76: #{tpu_custom_call.1} parent=55 // pred_fallthru
          _
        %s379 = sand.u32 %s36, 1
        %s380 = scalar_lea.sflag [#allocation3], %s379
        %s381 = sand.u32 %s36, 1
        %s382 = smul.addr %s381, 256
        %s383 = scalar_lea.vmem [#allocation2], %s382
        %p384 = pneg %p49
        %p385 = pneg %p46
        %p386 = pneg %p70
        %p387 = pneg %p67
        %p388 = pneg %p91
        %p389 = pneg %p88
        %p390 = pneg %p112
        %p391 = pneg %p109
        %p392 = pneg %p133
        %p393 = pneg %p130
        %p394 = pneg %p154
        %p395 = pneg %p151
        %p396 = pneg %p175
        %p397 = pneg %p172
        %p398 = pneg %p196
        %p399 = pneg %p193
        %p400 = pneg %p217
        %p401 = pneg %p214
        %p402 = pneg %p243
        %p403 = pneg %p240
        %s404 = sand.u32 %s230, 1
        %s405 = scalar_lea.sflag [#allocation4], %s404
        %s406 = sand.u32 %s230, 1
        %s407 = smul.addr %s406, 256
        %s408 = scalar_lea.vmem [#allocation11], %s407
        %s409 = smul.u32 32, %s28
        %s410 = smul.u32 32, %s28
        %v411 = vld [vmem:[%s358] sm:$0xff]
        %v412 = vld [vmem:[%s358 + $0x8] sm:$0xff]
        %v413 = vld [vmem:[%s358 + $0x10] sm:$0xff]
        %v414 = vld [vmem:[%s358 + $0x18] sm:$0xff]
        %v415 = vld [vmem:[%s358 + $0x20] sm:$0xff]
        %v416 = vld [vmem:[%s358 + $0x28] sm:$0xff]
        %v417 = vld [vmem:[%s358 + $0x30] sm:$0xff]
        %v418 = vld [vmem:[%s358 + $0x38] sm:$0xff]
        %v419 = vld [vmem:[%s358 + $0x40] sm:$0xff]
        %v420 = vld [vmem:[%s358 + $0x48] sm:$0xff]
        %v421 = vld [vmem:[%s358 + $0x50] sm:$0xff]
        %v422 = vld [vmem:[%s358 + $0x58] sm:$0xff]
        %v423 = vld [vmem:[%s358 + $0x60] sm:$0xff]
        %v424 = vld [vmem:[%s358 + $0x68] sm:$0xff]
        %v425 = vld [vmem:[%s358 + $0x70] sm:$0xff]
        %v426 = vld [vmem:[%s358 + $0x78] sm:$0xff]
        %v427 = vld [vmem:[%s358 + $0x80] sm:$0xff]
        %v428 = vld [vmem:[%s358 + $0x88] sm:$0xff]
        %v429 = vld [vmem:[%s358 + $0x90] sm:$0xff]
        %v430 = vld [vmem:[%s358 + $0x98] sm:$0xff]
        %v431 = vld [vmem:[%s358 + $0xa0] sm:$0xff]
        %v432 = vld [vmem:[%s358 + $0xa8] sm:$0xff]
        %v433 = vld [vmem:[%s358 + $0xb0] sm:$0xff]
        %v434 = vld [vmem:[%s358 + $0xb8] sm:$0xff]
        %v435 = vld [vmem:[%s358 + $0xc0] sm:$0xff]
        %v436 = vld [vmem:[%s358 + $0xc8] sm:$0xff]
        %v437 = vld [vmem:[%s358 + $0xd0] sm:$0xff]
        %v438 = vld [vmem:[%s358 + $0xd8] sm:$0xff]
        %v439 = vld [vmem:[%s358 + $0xe0] sm:$0xff]
        %v440 = vld [vmem:[%s358 + $0xe8] sm:$0xff]
        %v441 = vld [vmem:[%s358 + $0xf0] sm:$0xff]
        %v442 = vld [vmem:[%s358 + $0xf8] sm:$0xff]
        %v443 = vld [vmem:[#allocation5] sm:$0xff]
        %v444 = vld [vmem:[#allocation5 + $0x8] sm:$0xff]
        %v445 = vld [vmem:[#allocation5 + $0x10] sm:$0xff]
        %v446 = vld [vmem:[#allocation5 + $0x18] sm:$0xff]
        %v447 = vld [vmem:[#allocation5 + $0x20] sm:$0xff]
        %v448 = vld [vmem:[#allocation5 + $0x28] sm:$0xff]
        %v449 = vld [vmem:[#allocation5 + $0x30] sm:$0xff]
        %v450 = vld [vmem:[#allocation5 + $0x38] sm:$0xff]
        %v451 = vld [vmem:[#allocation5 + $0x40] sm:$0xff]
        %v452 = vld [vmem:[#allocation5 + $0x48] sm:$0xff]
        %v453 = vld [vmem:[#allocation5 + $0x50] sm:$0xff]
        %v454 = vld [vmem:[#allocation5 + $0x58] sm:$0xff]
        %v455 = vld [vmem:[#allocation5 + $0x60] sm:$0xff]
        %v456 = vld [vmem:[#allocation5 + $0x68] sm:$0xff]
        %v457 = vld [vmem:[#allocation5 + $0x70] sm:$0xff]
        %v458 = vld [vmem:[#allocation5 + $0x78] sm:$0xff]
        %v459 = vld [vmem:[%s2] sm:$0x1]
        %v461 = vlaneseq
        %v462 = vshrl.u32 %v461, 7
        %v463 = vsub.s32 0, %v462
        %v464 = vrot.slane %v459, %v463
        %466 = vmatprep.subr.mxu0 0.0
        %467 = vmatpush1.msra.mxu0 %v458
        %468 = vmatprep.subr.mxu0 0.0
        %469 = vmatpush1.msra.mxu0 %v457
        %470 = vmatprep.subr.mxu0 0.0
        %471 = vmatpush1.msra.mxu0 %v456
        %472 = vmatprep.subr.mxu0 0.0
        %473 = vmatpush1.msra.mxu0 %v455
        %474 = vmatprep.subr.mxu0 0.0
        %475 = vmatpush1.msra.mxu0 %v454
        %476 = vmatprep.subr.mxu0 0.0
        %477 = vmatpush1.msra.mxu0 %v453
        %478 = vmatprep.subr.mxu0 0.0
        %479 = vmatpush1.msra.mxu0 %v452
        %480 = vmatprep.subr.mxu0 0.0
        %481 = vmatpush1.msra.mxu0 %v451
        %482 = vmatprep.subr.mxu0 0.0
        %483 = vmatpush1.msra.mxu0 %v450
        %484 = vmatprep.subr.mxu0 0.0
        %485 = vmatpush1.msra.mxu0 %v449
        %486 = vmatprep.subr.mxu0 0.0
        %487 = vmatpush1.msra.mxu0 %v448
        %488 = vmatprep.subr.mxu0 0.0
        %489 = vmatpush1.msra.mxu0 %v447
        %490 = vmatprep.subr.mxu0 0.0
        %491 = vmatpush1.msra.mxu0 %v446
        %492 = vmatprep.subr.mxu0 0.0
        %493 = vmatpush1.msra.mxu0 %v445
        %494 = vmatprep.subr.mxu0 0.0
        %495 = vmatpush1.msra.mxu0 %v444
        %496 = vmatprep.subr.mxu0 0.0
        %497 = vmatpush1.msra.mxu0 %v443
        %498 = vmatprep.subr.mxu0 0.0
        %499 = vmatpush2.msra.mxu0 0.0
        %500 = vmatprep.subr.mxu0 0.0
        %501 = vmatpush2.msra.mxu0 0.0
        %502 = vmatprep.subr.mxu0 0.0
        %503 = vmatpush2.msra.mxu0 0.0
        %504 = vmatprep.subr.mxu0 0.0
        %505 = vmatpush2.msra.mxu0 0.0
        %506 = vmatprep.subr.mxu0 0.0
        %507 = vmatpush2.msra.mxu0 0.0
        %508 = vmatprep.subr.mxu0 0.0
        %509 = vmatpush2.msra.mxu0 0.0
        %510 = vmatprep.subr.mxu0 0.0
        %511 = vmatpush2.msra.mxu0 0.0
        %512 = vmatprep.subr.mxu0 0.0
        %513 = vmatpush2.msra.mxu0 0.0
        %514 = vmatprep.subr.mxu0 0.0
        %515 = vmatpush2.msra.mxu0 0.0
        %516 = vmatprep.subr.mxu0 0.0
        %517 = vmatpush2.msra.mxu0 0.0
        %518 = vmatprep.subr.mxu0 0.0
        %519 = vmatpush2.msra.mxu0 0.0
        %520 = vmatprep.subr.mxu0 0.0
        %521 = vmatpush2.msra.mxu0 0.0
        %522 = vmatprep.subr.mxu0 0.0
        %523 = vmatpush2.msra.mxu0 0.0
        %524 = vmatprep.subr.mxu0 0.0
        %525 = vmatpush2.msra.mxu0 0.0
        %526 = vmatprep.subr.mxu0 0.0
        %527 = vmatpush2.msra.mxu0 0.0
        %528 = vmatprep.subr.mxu0 0.0
        %529 = vmatpush2.msra.mxu0 0.0
        %530 = vmatprep.mubr.f32.mxu0 0.0
        %531 = vmatmul.mubr.f32.gmra.mxu0 %v411
        %v532 = vpop.f32.mrf.mxu0
        %v533 = vadd.f32 %v464, %v532
        %v534 = vpop.f32.mrf.mxu0
        %535 = vmatprep.mubr.f32.mxu0 0.0
        %536 = vmatmul.mubr.f32.gmra.mxu0 %v412
        %v537 = vpop.f32.mrf.mxu0
        %v538 = vadd.f32 %v464, %v537
        %v539 = vpop.f32.mrf.mxu0
        %540 = vmatprep.mubr.f32.mxu0 0.0
        %541 = vmatmul.mubr.f32.gmra.mxu0 %v413
        %v542 = vpop.f32.mrf.mxu0
        %v543 = vadd.f32 %v464, %v542
        %v544 = vpop.f32.mrf.mxu0
        %545 = vmatprep.mubr.f32.mxu0 0.0
        %546 = vmatmul.mubr.f32.gmra.mxu0 %v414
        %v547 = vpop.f32.mrf.mxu0
        %v548 = vadd.f32 %v464, %v547
        %v549 = vpop.f32.mrf.mxu0
        %550 = vmatprep.mubr.f32.mxu0 0.0
        %551 = vmatmul.mubr.f32.gmra.mxu0 %v415
        %v552 = vpop.f32.mrf.mxu0
        %v553 = vadd.f32 %v464, %v552
        %v554 = vpop.f32.mrf.mxu0
        %555 = vmatprep.mubr.f32.mxu0 0.0
        %556 = vmatmul.mubr.f32.gmra.mxu0 %v416
        %v557 = vpop.f32.mrf.mxu0
        %v558 = vadd.f32 %v464, %v557
        %v559 = vpop.f32.mrf.mxu0
        %560 = vmatprep.mubr.f32.mxu0 0.0
        %561 = vmatmul.mubr.f32.gmra.mxu0 %v417
        %v562 = vpop.f32.mrf.mxu0
        %v563 = vadd.f32 %v464, %v562
        %v564 = vpop.f32.mrf.mxu0
        %565 = vmatprep.mubr.f32.mxu0 0.0
        %566 = vmatmul.mubr.f32.gmra.mxu0 %v418
        %v567 = vpop.f32.mrf.mxu0
        %v568 = vadd.f32 %v464, %v567
        %v569 = vpop.f32.mrf.mxu0
        %570 = vmatprep.mubr.f32.mxu0 0.0
        %571 = vmatmul.mubr.f32.gmra.mxu0 %v419
        %v572 = vpop.f32.mrf.mxu0
        %v573 = vadd.f32 %v464, %v572
        %v574 = vpop.f32.mrf.mxu0
        %575 = vmatprep.mubr.f32.mxu0 0.0
        %576 = vmatmul.mubr.f32.gmra.mxu0 %v420
        %v577 = vpop.f32.mrf.mxu0
        %v578 = vadd.f32 %v464, %v577
        %v579 = vpop.f32.mrf.mxu0
        %580 = vmatprep.mubr.f32.mxu0 0.0
        %581 = vmatmul.mubr.f32.gmra.mxu0 %v421
        %v582 = vpop.f32.mrf.mxu0
        %v583 = vadd.f32 %v464, %v582
        %v584 = vpop.f32.mrf.mxu0
        %585 = vmatprep.mubr.f32.mxu0 0.0
        %586 = vmatmul.mubr.f32.gmra.mxu0 %v422
        %v587 = vpop.f32.mrf.mxu0
        %v588 = vadd.f32 %v464, %v587
        %v589 = vpop.f32.mrf.mxu0
        %590 = vmatprep.mubr.f32.mxu0 0.0
        %591 = vmatmul.mubr.f32.gmra.mxu0 %v423
        %v592 = vpop.f32.mrf.mxu0
        %v593 = vadd.f32 %v464, %v592
        %v594 = vpop.f32.mrf.mxu0
        %595 = vmatprep.mubr.f32.mxu0 0.0
        %596 = vmatmul.mubr.f32.gmra.mxu0 %v424
        %v597 = vpop.f32.mrf.mxu0
        %v598 = vadd.f32 %v464, %v597
        %v599 = vpop.f32.mrf.mxu0
        %600 = vmatprep.mubr.f32.mxu0 0.0
        %601 = vmatmul.mubr.f32.gmra.mxu0 %v425
        %v602 = vpop.f32.mrf.mxu0
        %v603 = vadd.f32 %v464, %v602
        %v604 = vpop.f32.mrf.mxu0
        %605 = vmatprep.mubr.f32.mxu0 0.0
        %606 = vmatmul.mubr.f32.gmra.mxu0 %v426
        %v607 = vpop.f32.mrf.mxu0
        %v608 = vadd.f32 %v464, %v607
        %v609 = vpop.f32.mrf.mxu0
        %610 = vmatprep.mubr.f32.mxu0 0.0
        %611 = vmatmul.mubr.f32.gmra.mxu0 %v427
        %v612 = vpop.f32.mrf.mxu0
        %v613 = vadd.f32 %v464, %v612
        %v614 = vpop.f32.mrf.mxu0
        %615 = vmatprep.mubr.f32.mxu0 0.0
        %616 = vmatmul.mubr.f32.gmra.mxu0 %v428
        %v617 = vpop.f32.mrf.mxu0
        %v618 = vadd.f32 %v464, %v617
        %v619 = vpop.f32.mrf.mxu0
        %620 = vmatprep.mubr.f32.mxu0 0.0
        %621 = vmatmul.mubr.f32.gmra.mxu0 %v429
        %v622 = vpop.f32.mrf.mxu0
        %v623 = vadd.f32 %v464, %v622
        %v624 = vpop.f32.mrf.mxu0
        %625 = vmatprep.mubr.f32.mxu0 0.0
        %626 = vmatmul.mubr.f32.gmra.mxu0 %v430
        %v627 = vpop.f32.mrf.mxu0
        %v628 = vadd.f32 %v464, %v627
        %v629 = vpop.f32.mrf.mxu0
        %630 = vmatprep.mubr.f32.mxu0 0.0
        %631 = vmatmul.mubr.f32.gmra.mxu0 %v431
        %v632 = vpop.f32.mrf.mxu0
        %v633 = vadd.f32 %v464, %v632
        %v634 = vpop.f32.mrf.mxu0
        %635 = vmatprep.mubr.f32.mxu0 0.0
        %636 = vmatmul.mubr.f32.gmra.mxu0 %v432
        %v637 = vpop.f32.mrf.mxu0
        %v638 = vadd.f32 %v464, %v637
        %v639 = vpop.f32.mrf.mxu0
        %640 = vmatprep.mubr.f32.mxu0 0.0
        %641 = vmatmul.mubr.f32.gmra.mxu0 %v433
        %v642 = vpop.f32.mrf.mxu0
        %v643 = vadd.f32 %v464, %v642
        %v644 = vpop.f32.mrf.mxu0
        %645 = vmatprep.mubr.f32.mxu0 0.0
        %646 = vmatmul.mubr.f32.gmra.mxu0 %v434
        %v647 = vpop.f32.mrf.mxu0
        %v648 = vadd.f32 %v464, %v647
        %v649 = vpop.f32.mrf.mxu0
        %650 = vmatprep.mubr.f32.mxu0 0.0
        %651 = vmatmul.mubr.f32.gmra.mxu0 %v435
        %v652 = vpop.f32.mrf.mxu0
        %v653 = vadd.f32 %v464, %v652
        %v654 = vpop.f32.mrf.mxu0
        %655 = vmatprep.mubr.f32.mxu0 0.0
        %656 = vmatmul.mubr.f32.gmra.mxu0 %v436
        %v657 = vpop.f32.mrf.mxu0
        %v658 = vadd.f32 %v464, %v657
        %v659 = vpop.f32.mrf.mxu0
        %660 = vmatprep.mubr.f32.mxu0 0.0
        %661 = vmatmul.mubr.f32.gmra.mxu0 %v437
        %v662 = vpop.f32.mrf.mxu0
        %v663 = vadd.f32 %v464, %v662
        %v664 = vpop.f32.mrf.mxu0
        %665 = vmatprep.mubr.f32.mxu0 0.0
        %666 = vmatmul.mubr.f32.gmra.mxu0 %v438
        %v667 = vpop.f32.mrf.mxu0
        %v668 = vadd.f32 %v464, %v667
        %v669 = vpop.f32.mrf.mxu0
        %670 = vmatprep.mubr.f32.mxu0 0.0
        %671 = vmatmul.mubr.f32.gmra.mxu0 %v439
        %v672 = vpop.f32.mrf.mxu0
        %v673 = vadd.f32 %v464, %v672
        %v674 = vpop.f32.mrf.mxu0
        %675 = vmatprep.mubr.f32.mxu0 0.0
        %676 = vmatmul.mubr.f32.gmra.mxu0 %v440
        %v677 = vpop.f32.mrf.mxu0
        %v678 = vadd.f32 %v464, %v677
        %v679 = vpop.f32.mrf.mxu0
        %680 = vmatprep.mubr.f32.mxu0 0.0
        %681 = vmatmul.mubr.f32.gmra.mxu0 %v441
        %v682 = vpop.f32.mrf.mxu0
        %v683 = vadd.f32 %v464, %v682
        %v684 = vpop.f32.mrf.mxu0
        %685 = vmatprep.mubr.f32.mxu0 0.0
        %686 = vmatmul.mubr.f32.gmra.mxu0 %v442
        %v687 = vpop.f32.mrf.mxu0
        %v688 = vadd.f32 %v464, %v687
        %v689 = vpop.f32.mrf.mxu0
        %690 = vdwg.mxu0
        %v691 = vld [vmem:[#allocation7] sm:$0xff]
        %v692 = vld [vmem:[#allocation7 + $0x8] sm:$0xff]
        %v693 = vld [vmem:[#allocation7 + $0x10] sm:$0xff]
        %v694 = vld [vmem:[#allocation7 + $0x18] sm:$0xff]
        %v695 = vld [vmem:[#allocation7 + $0x20] sm:$0xff]
        %v696 = vld [vmem:[#allocation7 + $0x28] sm:$0xff]
        %v697 = vld [vmem:[#allocation7 + $0x30] sm:$0xff]
        %v698 = vld [vmem:[#allocation7 + $0x38] sm:$0xff]
        %v699 = vld [vmem:[#allocation7 + $0x40] sm:$0xff]
        %v700 = vld [vmem:[#allocation7 + $0x48] sm:$0xff]
        %v701 = vld [vmem:[#allocation7 + $0x50] sm:$0xff]
        %v702 = vld [vmem:[#allocation7 + $0x58] sm:$0xff]
        %v703 = vld [vmem:[#allocation7 + $0x60] sm:$0xff]
        %v704 = vld [vmem:[#allocation7 + $0x68] sm:$0xff]
        %v705 = vld [vmem:[#allocation7 + $0x70] sm:$0xff]
        %v706 = vld [vmem:[#allocation7 + $0x78] sm:$0xff]
        %v707 = vld [vmem:[%s4] sm:$0x1]
        %v709 = vlaneseq
        %v710 = vshrl.u32 %v709, 7
        %v711 = vsub.s32 0, %v710
        %v712 = vrot.slane %v707, %v711
        %714 = vmatprep.subr.mxu0 0.0
        %715 = vmatpush1.msra.mxu0 %v706
        %716 = vmatprep.subr.mxu0 0.0
        %717 = vmatpush1.msra.mxu0 %v705
        %718 = vmatprep.subr.mxu0 0.0
        %719 = vmatpush1.msra.mxu0 %v704
        %720 = vmatprep.subr.mxu0 0.0
        %721 = vmatpush1.msra.mxu0 %v703
        %722 = vmatprep.subr.mxu0 0.0
        %723 = vmatpush1.msra.mxu0 %v702
        %724 = vmatprep.subr.mxu0 0.0
        %725 = vmatpush1.msra.mxu0 %v701
        %726 = vmatprep.subr.mxu0 0.0
        %727 = vmatpush1.msra.mxu0 %v700
        %728 = vmatprep.subr.mxu0 0.0
        %729 = vmatpush1.msra.mxu0 %v699
        %730 = vmatprep.subr.mxu0 0.0
        %731 = vmatpush1.msra.mxu0 %v698
        %732 = vmatprep.subr.mxu0 0.0
        %733 = vmatpush1.msra.mxu0 %v697
        %734 = vmatprep.subr.mxu0 0.0
        %735 = vmatpush1.msra.mxu0 %v696
        %736 = vmatprep.subr.mxu0 0.0
        %737 = vmatpush1.msra.mxu0 %v695
        %738 = vmatprep.subr.mxu0 0.0
        %739 = vmatpush1.msra.mxu0 %v694
        %740 = vmatprep.subr.mxu0 0.0
        %741 = vmatpush1.msra.mxu0 %v693
        %742 = vmatprep.subr.mxu0 0.0
        %743 = vmatpush1.msra.mxu0 %v692
        %744 = vmatprep.subr.mxu0 0.0
        %745 = vmatpush1.msra.mxu0 %v691
        %746 = vmatprep.subr.mxu0 0.0
        %747 = vmatpush2.msra.mxu0 0.0
        %748 = vmatprep.subr.mxu0 0.0
        %749 = vmatpush2.msra.mxu0 0.0
        %750 = vmatprep.subr.mxu0 0.0
        %751 = vmatpush2.msra.mxu0 0.0
        %752 = vmatprep.subr.mxu0 0.0
        %753 = vmatpush2.msra.mxu0 0.0
        %754 = vmatprep.subr.mxu0 0.0
        %755 = vmatpush2.msra.mxu0 0.0
        %756 = vmatprep.subr.mxu0 0.0
        %757 = vmatpush2.msra.mxu0 0.0
        %758 = vmatprep.subr.mxu0 0.0
        %759 = vmatpush2.msra.mxu0 0.0
        %760 = vmatprep.subr.mxu0 0.0
        %761 = vmatpush2.msra.mxu0 0.0
        %762 = vmatprep.subr.mxu0 0.0
        %763 = vmatpush2.msra.mxu0 0.0
        %764 = vmatprep.subr.mxu0 0.0
        %765 = vmatpush2.msra.mxu0 0.0
        %766 = vmatprep.subr.mxu0 0.0
        %767 = vmatpush2.msra.mxu0 0.0
        %768 = vmatprep.subr.mxu0 0.0
        %769 = vmatpush2.msra.mxu0 0.0
        %770 = vmatprep.subr.mxu0 0.0
        %771 = vmatpush2.msra.mxu0 0.0
        %772 = vmatprep.subr.mxu0 0.0
        %773 = vmatpush2.msra.mxu0 0.0
        %774 = vmatprep.subr.mxu0 0.0
        %775 = vmatpush2.msra.mxu0 0.0
        %776 = vmatprep.subr.mxu0 0.0
        %777 = vmatpush2.msra.mxu0 0.0
        %778 = vmatprep.mubr.f32.mxu0 0.0
        %779 = vmatmul.mubr.f32.gmra.mxu0 %v533
        %v780 = vpop.f32.mrf.mxu0
        %v781 = vadd.f32 %v712, %v780
        %v782 = vpop.f32.mrf.mxu0
        %783 = vmatprep.mubr.f32.mxu0 0.0
        %784 = vmatmul.mubr.f32.gmra.mxu0 %v538
        %v785 = vpop.f32.mrf.mxu0
        %v786 = vadd.f32 %v712, %v785
        %v787 = vpop.f32.mrf.mxu0
        %788 = vmatprep.mubr.f32.mxu0 0.0
        %789 = vmatmul.mubr.f32.gmra.mxu0 %v543
        %v790 = vpop.f32.mrf.mxu0
        %v791 = vadd.f32 %v712, %v790
        %v792 = vpop.f32.mrf.mxu0
        %793 = vmatprep.mubr.f32.mxu0 0.0
        %794 = vmatmul.mubr.f32.gmra.mxu0 %v548
        %v795 = vpop.f32.mrf.mxu0
        %v796 = vadd.f32 %v712, %v795
        %v797 = vpop.f32.mrf.mxu0
        %798 = vmatprep.mubr.f32.mxu0 0.0
        %799 = vmatmul.mubr.f32.gmra.mxu0 %v553
        %v800 = vpop.f32.mrf.mxu0
        %v801 = vadd.f32 %v712, %v800
        %v802 = vpop.f32.mrf.mxu0
        %803 = vmatprep.mubr.f32.mxu0 0.0
        %804 = vmatmul.mubr.f32.gmra.mxu0 %v558
        %v805 = vpop.f32.mrf.mxu0
        %v806 = vadd.f32 %v712, %v805
        %v807 = vpop.f32.mrf.mxu0
        %808 = vmatprep.mubr.f32.mxu0 0.0
        %809 = vmatmul.mubr.f32.gmra.mxu0 %v563
        %v810 = vpop.f32.mrf.mxu0
        %v811 = vadd.f32 %v712, %v810
        %v812 = vpop.f32.mrf.mxu0
        %813 = vmatprep.mubr.f32.mxu0 0.0
        %814 = vmatmul.mubr.f32.gmra.mxu0 %v568
        %v815 = vpop.f32.mrf.mxu0
        %v816 = vadd.f32 %v712, %v815
        %v817 = vpop.f32.mrf.mxu0
        %818 = vmatprep.mubr.f32.mxu0 0.0
        %819 = vmatmul.mubr.f32.gmra.mxu0 %v573
        %v820 = vpop.f32.mrf.mxu0
        %v821 = vadd.f32 %v712, %v820
        %v822 = vpop.f32.mrf.mxu0
        %823 = vmatprep.mubr.f32.mxu0 0.0
        %824 = vmatmul.mubr.f32.gmra.mxu0 %v578
        %v825 = vpop.f32.mrf.mxu0
        %v826 = vadd.f32 %v712, %v825
        %v827 = vpop.f32.mrf.mxu0
        %828 = vmatprep.mubr.f32.mxu0 0.0
        %829 = vmatmul.mubr.f32.gmra.mxu0 %v583
        %v830 = vpop.f32.mrf.mxu0
        %v831 = vadd.f32 %v712, %v830
        %v832 = vpop.f32.mrf.mxu0
        %833 = vmatprep.mubr.f32.mxu0 0.0
        %834 = vmatmul.mubr.f32.gmra.mxu0 %v588
        %v835 = vpop.f32.mrf.mxu0
        %v836 = vadd.f32 %v712, %v835
        %v837 = vpop.f32.mrf.mxu0
        %838 = vmatprep.mubr.f32.mxu0 0.0
        %839 = vmatmul.mubr.f32.gmra.mxu0 %v593
        %v840 = vpop.f32.mrf.mxu0
        %v841 = vadd.f32 %v712, %v840
        %v842 = vpop.f32.mrf.mxu0
        %843 = vmatprep.mubr.f32.mxu0 0.0
        %844 = vmatmul.mubr.f32.gmra.mxu0 %v598
        %v845 = vpop.f32.mrf.mxu0
        %v846 = vadd.f32 %v712, %v845
        %v847 = vpop.f32.mrf.mxu0
        %848 = vmatprep.mubr.f32.mxu0 0.0
        %849 = vmatmul.mubr.f32.gmra.mxu0 %v603
        %v850 = vpop.f32.mrf.mxu0
        %v851 = vadd.f32 %v712, %v850
        %v852 = vpop.f32.mrf.mxu0
        %853 = vmatprep.mubr.f32.mxu0 0.0
        %854 = vmatmul.mubr.f32.gmra.mxu0 %v608
        %v855 = vpop.f32.mrf.mxu0
        %v856 = vadd.f32 %v712, %v855
        %v857 = vpop.f32.mrf.mxu0
        %858 = vmatprep.mubr.f32.mxu0 0.0
        %859 = vmatmul.mubr.f32.gmra.mxu0 %v613
        %v860 = vpop.f32.mrf.mxu0
        %v861 = vadd.f32 %v712, %v860
        %v862 = vpop.f32.mrf.mxu0
        %863 = vmatprep.mubr.f32.mxu0 0.0
        %864 = vmatmul.mubr.f32.gmra.mxu0 %v618
        %v865 = vpop.f32.mrf.mxu0
        %v866 = vadd.f32 %v712, %v865
        %v867 = vpop.f32.mrf.mxu0
        %868 = vmatprep.mubr.f32.mxu0 0.0
        %869 = vmatmul.mubr.f32.gmra.mxu0 %v623
        %v870 = vpop.f32.mrf.mxu0
        %v871 = vadd.f32 %v712, %v870
        %v872 = vpop.f32.mrf.mxu0
        %873 = vmatprep.mubr.f32.mxu0 0.0
        %874 = vmatmul.mubr.f32.gmra.mxu0 %v628
        %v875 = vpop.f32.mrf.mxu0
        %v876 = vadd.f32 %v712, %v875
        %v877 = vpop.f32.mrf.mxu0
        %878 = vmatprep.mubr.f32.mxu0 0.0
        %879 = vmatmul.mubr.f32.gmra.mxu0 %v633
        %v880 = vpop.f32.mrf.mxu0
        %v881 = vadd.f32 %v712, %v880
        %v882 = vpop.f32.mrf.mxu0
        %883 = vmatprep.mubr.f32.mxu0 0.0
        %884 = vmatmul.mubr.f32.gmra.mxu0 %v638
        %v885 = vpop.f32.mrf.mxu0
        %v886 = vadd.f32 %v712, %v885
        %v887 = vpop.f32.mrf.mxu0
        %888 = vmatprep.mubr.f32.mxu0 0.0
        %889 = vmatmul.mubr.f32.gmra.mxu0 %v643
        %v890 = vpop.f32.mrf.mxu0
        %v891 = vadd.f32 %v712, %v890
        %v892 = vpop.f32.mrf.mxu0
        %893 = vmatprep.mubr.f32.mxu0 0.0
        %894 = vmatmul.mubr.f32.gmra.mxu0 %v648
        %v895 = vpop.f32.mrf.mxu0
        %v896 = vadd.f32 %v712, %v895
        %v897 = vpop.f32.mrf.mxu0
        %898 = vmatprep.mubr.f32.mxu0 0.0
        %899 = vmatmul.mubr.f32.gmra.mxu0 %v653
        %v900 = vpop.f32.mrf.mxu0
        %v901 = vadd.f32 %v712, %v900
        %v902 = vpop.f32.mrf.mxu0
        %903 = vmatprep.mubr.f32.mxu0 0.0
        %904 = vmatmul.mubr.f32.gmra.mxu0 %v658
        %v905 = vpop.f32.mrf.mxu0
        %v906 = vadd.f32 %v712, %v905
        %v907 = vpop.f32.mrf.mxu0
        %908 = vmatprep.mubr.f32.mxu0 0.0
        %909 = vmatmul.mubr.f32.gmra.mxu0 %v663
        %v910 = vpop.f32.mrf.mxu0
        %v911 = vadd.f32 %v712, %v910
        %v912 = vpop.f32.mrf.mxu0
        %913 = vmatprep.mubr.f32.mxu0 0.0
        %914 = vmatmul.mubr.f32.gmra.mxu0 %v668
        %v915 = vpop.f32.mrf.mxu0
        %v916 = vadd.f32 %v712, %v915
        %v917 = vpop.f32.mrf.mxu0
        %918 = vmatprep.mubr.f32.mxu0 0.0
        %919 = vmatmul.mubr.f32.gmra.mxu0 %v673
        %v920 = vpop.f32.mrf.mxu0
        %v921 = vadd.f32 %v712, %v920
        %v922 = vpop.f32.mrf.mxu0
        %923 = vmatprep.mubr.f32.mxu0 0.0
        %924 = vmatmul.mubr.f32.gmra.mxu0 %v678
        %v925 = vpop.f32.mrf.mxu0
        %v926 = vadd.f32 %v712, %v925
        %v927 = vpop.f32.mrf.mxu0
        %928 = vmatprep.mubr.f32.mxu0 0.0
        %929 = vmatmul.mubr.f32.gmra.mxu0 %v683
        %v930 = vpop.f32.mrf.mxu0
        %v931 = vadd.f32 %v712, %v930
        %v932 = vpop.f32.mrf.mxu0
        %933 = vmatprep.mubr.f32.mxu0 0.0
        %934 = vmatmul.mubr.f32.gmra.mxu0 %v688
        %v935 = vpop.f32.mrf.mxu0
        %v936 = vadd.f32 %v712, %v935
        %v937 = vpop.f32.mrf.mxu0
        %938 = vdwg.mxu0
        %v939 = vld [vmem:[#allocation8] sm:$0xff]
        %v940 = vld [vmem:[#allocation8 + $0x8] sm:$0xff]
        %v941 = vld [vmem:[#allocation8 + $0x10] sm:$0xff]
        %v942 = vld [vmem:[#allocation8 + $0x18] sm:$0xff]
        %v943 = vld [vmem:[#allocation8 + $0x20] sm:$0xff]
        %v944 = vld [vmem:[#allocation8 + $0x28] sm:$0xff]
        %v945 = vld [vmem:[#allocation8 + $0x30] sm:$0xff]
        %v946 = vld [vmem:[#allocation8 + $0x38] sm:$0xff]
        %v947 = vld [vmem:[#allocation8 + $0x40] sm:$0xff]
        %v948 = vld [vmem:[#allocation8 + $0x48] sm:$0xff]
        %v949 = vld [vmem:[#allocation8 + $0x50] sm:$0xff]
        %v950 = vld [vmem:[#allocation8 + $0x58] sm:$0xff]
        %v951 = vld [vmem:[#allocation8 + $0x60] sm:$0xff]
        %v952 = vld [vmem:[#allocation8 + $0x68] sm:$0xff]
        %v953 = vld [vmem:[#allocation8 + $0x70] sm:$0xff]
        %v954 = vld [vmem:[#allocation8 + $0x78] sm:$0xff]
        %v955 = vld [vmem:[%s6] sm:$0x1]
        %v957 = vlaneseq
        %v958 = vshrl.u32 %v957, 7
        %v959 = vsub.s32 0, %v958
        %v960 = vrot.slane %v955, %v959
        %962 = vmatprep.subr.mxu0 0.0
        %963 = vmatpush1.msra.mxu0 %v954
        %964 = vmatprep.subr.mxu0 0.0
        %965 = vmatpush1.msra.mxu0 %v953
        %966 = vmatprep.subr.mxu0 0.0
        %967 = vmatpush1.msra.mxu0 %v952
        %968 = vmatprep.subr.mxu0 0.0
        %969 = vmatpush1.msra.mxu0 %v951
        %970 = vmatprep.subr.mxu0 0.0
        %971 = vmatpush1.msra.mxu0 %v950
        %972 = vmatprep.subr.mxu0 0.0
        %973 = vmatpush1.msra.mxu0 %v949
        %974 = vmatprep.subr.mxu0 0.0
        %975 = vmatpush1.msra.mxu0 %v948
        %976 = vmatprep.subr.mxu0 0.0
        %977 = vmatpush1.msra.mxu0 %v947
        %978 = vmatprep.subr.mxu0 0.0
        %979 = vmatpush1.msra.mxu0 %v946
        %980 = vmatprep.subr.mxu0 0.0
        %981 = vmatpush1.msra.mxu0 %v945
        %982 = vmatprep.subr.mxu0 0.0
        %983 = vmatpush1.msra.mxu0 %v944
        %984 = vmatprep.subr.mxu0 0.0
        %985 = vmatpush1.msra.mxu0 %v943
        %986 = vmatprep.subr.mxu0 0.0
        %987 = vmatpush1.msra.mxu0 %v942
        %988 = vmatprep.subr.mxu0 0.0
        %989 = vmatpush1.msra.mxu0 %v941
        %990 = vmatprep.subr.mxu0 0.0
        %991 = vmatpush1.msra.mxu0 %v940
        %992 = vmatprep.subr.mxu0 0.0
        %993 = vmatpush1.msra.mxu0 %v939
        %994 = vmatprep.subr.mxu0 0.0
        %995 = vmatpush2.msra.mxu0 0.0
        %996 = vmatprep.subr.mxu0 0.0
        %997 = vmatpush2.msra.mxu0 0.0
        %998 = vmatprep.subr.mxu0 0.0
        %999 = vmatpush2.msra.mxu0 0.0
        %1000 = vmatprep.subr.mxu0 0.0
        %1001 = vmatpush2.msra.mxu0 0.0
        %1002 = vmatprep.subr.mxu0 0.0
        %1003 = vmatpush2.msra.mxu0 0.0
        %1004 = vmatprep.subr.mxu0 0.0
        %1005 = vmatpush2.msra.mxu0 0.0
        %1006 = vmatprep.subr.mxu0 0.0
        %1007 = vmatpush2.msra.mxu0 0.0
        %1008 = vmatprep.subr.mxu0 0.0
        %1009 = vmatpush2.msra.mxu0 0.0
        %1010 = vmatprep.subr.mxu0 0.0
        %1011 = vmatpush2.msra.mxu0 0.0
        %1012 = vmatprep.subr.mxu0 0.0
        %1013 = vmatpush2.msra.mxu0 0.0
        %1014 = vmatprep.subr.mxu0 0.0
        %1015 = vmatpush2.msra.mxu0 0.0
        %1016 = vmatprep.subr.mxu0 0.0
        %1017 = vmatpush2.msra.mxu0 0.0
        %1018 = vmatprep.subr.mxu0 0.0
        %1019 = vmatpush2.msra.mxu0 0.0
        %1020 = vmatprep.subr.mxu0 0.0
        %1021 = vmatpush2.msra.mxu0 0.0
        %1022 = vmatprep.subr.mxu0 0.0
        %1023 = vmatpush2.msra.mxu0 0.0
        %1024 = vmatprep.subr.mxu0 0.0
        %1025 = vmatpush2.msra.mxu0 0.0
        %1026 = vmatprep.mubr.f32.mxu0 0.0
        %1027 = vmatmul.mubr.f32.gmra.mxu0 %v781
        %v1028 = vpop.f32.mrf.mxu0
        %v1029 = vadd.f32 %v960, %v1028
        %v1030 = vpop.f32.mrf.mxu0
        %1031 = vmatprep.mubr.f32.mxu0 0.0
        %1032 = vmatmul.mubr.f32.gmra.mxu0 %v786
        %v1033 = vpop.f32.mrf.mxu0
        %v1034 = vadd.f32 %v960, %v1033
        %v1035 = vpop.f32.mrf.mxu0
        %1036 = vmatprep.mubr.f32.mxu0 0.0
        %1037 = vmatmul.mubr.f32.gmra.mxu0 %v791
        %v1038 = vpop.f32.mrf.mxu0
        %v1039 = vadd.f32 %v960, %v1038
        %v1040 = vpop.f32.mrf.mxu0
        %1041 = vmatprep.mubr.f32.mxu0 0.0
        %1042 = vmatmul.mubr.f32.gmra.mxu0 %v796
        %v1043 = vpop.f32.mrf.mxu0
        %v1044 = vadd.f32 %v960, %v1043
        %v1045 = vpop.f32.mrf.mxu0
        %1046 = vmatprep.mubr.f32.mxu0 0.0
        %1047 = vmatmul.mubr.f32.gmra.mxu0 %v801
        %v1048 = vpop.f32.mrf.mxu0
        %v1049 = vadd.f32 %v960, %v1048
        %v1050 = vpop.f32.mrf.mxu0
        %1051 = vmatprep.mubr.f32.mxu0 0.0
        %1052 = vmatmul.mubr.f32.gmra.mxu0 %v806
        %v1053 = vpop.f32.mrf.mxu0
        %v1054 = vadd.f32 %v960, %v1053
        %v1055 = vpop.f32.mrf.mxu0
        %1056 = vmatprep.mubr.f32.mxu0 0.0
        %1057 = vmatmul.mubr.f32.gmra.mxu0 %v811
        %v1058 = vpop.f32.mrf.mxu0
        %v1059 = vadd.f32 %v960, %v1058
        %v1060 = vpop.f32.mrf.mxu0
        %1061 = vmatprep.mubr.f32.mxu0 0.0
        %1062 = vmatmul.mubr.f32.gmra.mxu0 %v816
        %v1063 = vpop.f32.mrf.mxu0
        %v1064 = vadd.f32 %v960, %v1063
        %v1065 = vpop.f32.mrf.mxu0
        %1066 = vmatprep.mubr.f32.mxu0 0.0
        %1067 = vmatmul.mubr.f32.gmra.mxu0 %v821
        %v1068 = vpop.f32.mrf.mxu0
        %v1069 = vadd.f32 %v960, %v1068
        %v1070 = vpop.f32.mrf.mxu0
        %1071 = vmatprep.mubr.f32.mxu0 0.0
        %1072 = vmatmul.mubr.f32.gmra.mxu0 %v826
        %v1073 = vpop.f32.mrf.mxu0
        %v1074 = vadd.f32 %v960, %v1073
        %v1075 = vpop.f32.mrf.mxu0
        %1076 = vmatprep.mubr.f32.mxu0 0.0
        %1077 = vmatmul.mubr.f32.gmra.mxu0 %v831
        %v1078 = vpop.f32.mrf.mxu0
        %v1079 = vadd.f32 %v960, %v1078
        %v1080 = vpop.f32.mrf.mxu0
        %1081 = vmatprep.mubr.f32.mxu0 0.0
        %1082 = vmatmul.mubr.f32.gmra.mxu0 %v836
        %v1083 = vpop.f32.mrf.mxu0
        %v1084 = vadd.f32 %v960, %v1083
        %v1085 = vpop.f32.mrf.mxu0
        %1086 = vmatprep.mubr.f32.mxu0 0.0
        %1087 = vmatmul.mubr.f32.gmra.mxu0 %v841
        %v1088 = vpop.f32.mrf.mxu0
        %v1089 = vadd.f32 %v960, %v1088
        %v1090 = vpop.f32.mrf.mxu0
        %1091 = vmatprep.mubr.f32.mxu0 0.0
        %1092 = vmatmul.mubr.f32.gmra.mxu0 %v846
        %v1093 = vpop.f32.mrf.mxu0
        %v1094 = vadd.f32 %v960, %v1093
        %v1095 = vpop.f32.mrf.mxu0
        %1096 = vmatprep.mubr.f32.mxu0 0.0
        %1097 = vmatmul.mubr.f32.gmra.mxu0 %v851
        %v1098 = vpop.f32.mrf.mxu0
        %v1099 = vadd.f32 %v960, %v1098
        %v1100 = vpop.f32.mrf.mxu0
        %1101 = vmatprep.mubr.f32.mxu0 0.0
        %1102 = vmatmul.mubr.f32.gmra.mxu0 %v856
        %v1103 = vpop.f32.mrf.mxu0
        %v1104 = vadd.f32 %v960, %v1103
        %v1105 = vpop.f32.mrf.mxu0
        %1106 = vmatprep.mubr.f32.mxu0 0.0
        %1107 = vmatmul.mubr.f32.gmra.mxu0 %v861
        %v1108 = vpop.f32.mrf.mxu0
        %v1109 = vadd.f32 %v960, %v1108
        %v1110 = vpop.f32.mrf.mxu0
        %1111 = vmatprep.mubr.f32.mxu0 0.0
        %1112 = vmatmul.mubr.f32.gmra.mxu0 %v866
        %v1113 = vpop.f32.mrf.mxu0
        %v1114 = vadd.f32 %v960, %v1113
        %v1115 = vpop.f32.mrf.mxu0
        %1116 = vmatprep.mubr.f32.mxu0 0.0
        %1117 = vmatmul.mubr.f32.gmra.mxu0 %v871
        %v1118 = vpop.f32.mrf.mxu0
        %v1119 = vadd.f32 %v960, %v1118
        %v1120 = vpop.f32.mrf.mxu0
        %1121 = vmatprep.mubr.f32.mxu0 0.0
        %1122 = vmatmul.mubr.f32.gmra.mxu0 %v876
        %v1123 = vpop.f32.mrf.mxu0
        %v1124 = vadd.f32 %v960, %v1123
        %v1125 = vpop.f32.mrf.mxu0
        %1126 = vmatprep.mubr.f32.mxu0 0.0
        %1127 = vmatmul.mubr.f32.gmra.mxu0 %v881
        %v1128 = vpop.f32.mrf.mxu0
        %v1129 = vadd.f32 %v960, %v1128
        %v1130 = vpop.f32.mrf.mxu0
        %1131 = vmatprep.mubr.f32.mxu0 0.0
        %1132 = vmatmul.mubr.f32.gmra.mxu0 %v886
        %v1133 = vpop.f32.mrf.mxu0
        %v1134 = vadd.f32 %v960, %v1133
        %v1135 = vpop.f32.mrf.mxu0
        %1136 = vmatprep.mubr.f32.mxu0 0.0
        %1137 = vmatmul.mubr.f32.gmra.mxu0 %v891
        %v1138 = vpop.f32.mrf.mxu0
        %v1139 = vadd.f32 %v960, %v1138
        %v1140 = vpop.f32.mrf.mxu0
        %1141 = vmatprep.mubr.f32.mxu0 0.0
        %1142 = vmatmul.mubr.f32.gmra.mxu0 %v896
        %v1143 = vpop.f32.mrf.mxu0
        %v1144 = vadd.f32 %v960, %v1143
        %v1145 = vpop.f32.mrf.mxu0
        %1146 = vmatprep.mubr.f32.mxu0 0.0
        %1147 = vmatmul.mubr.f32.gmra.mxu0 %v901
        %v1148 = vpop.f32.mrf.mxu0
        %v1149 = vadd.f32 %v960, %v1148
        %v1150 = vpop.f32.mrf.mxu0
        %1151 = vmatprep.mubr.f32.mxu0 0.0
        %1152 = vmatmul.mubr.f32.gmra.mxu0 %v906
        %v1153 = vpop.f32.mrf.mxu0
        %v1154 = vadd.f32 %v960, %v1153
        %v1155 = vpop.f32.mrf.mxu0
        %1156 = vmatprep.mubr.f32.mxu0 0.0
        %1157 = vmatmul.mubr.f32.gmra.mxu0 %v911
        %v1158 = vpop.f32.mrf.mxu0
        %v1159 = vadd.f32 %v960, %v1158
        %v1160 = vpop.f32.mrf.mxu0
        %1161 = vmatprep.mubr.f32.mxu0 0.0
        %1162 = vmatmul.mubr.f32.gmra.mxu0 %v916
        %v1163 = vpop.f32.mrf.mxu0
        %v1164 = vadd.f32 %v960, %v1163
        %v1165 = vpop.f32.mrf.mxu0
        %1166 = vmatprep.mubr.f32.mxu0 0.0
        %1167 = vmatmul.mubr.f32.gmra.mxu0 %v921
        %v1168 = vpop.f32.mrf.mxu0
        %v1169 = vadd.f32 %v960, %v1168
        %v1170 = vpop.f32.mrf.mxu0
        %1171 = vmatprep.mubr.f32.mxu0 0.0
        %1172 = vmatmul.mubr.f32.gmra.mxu0 %v926
        %v1173 = vpop.f32.mrf.mxu0
        %v1174 = vadd.f32 %v960, %v1173
        %v1175 = vpop.f32.mrf.mxu0
        %1176 = vmatprep.mubr.f32.mxu0 0.0
        %1177 = vmatmul.mubr.f32.gmra.mxu0 %v931
        %v1178 = vpop.f32.mrf.mxu0
        %v1179 = vadd.f32 %v960, %v1178
        %v1180 = vpop.f32.mrf.mxu0
        %1181 = vmatprep.mubr.f32.mxu0 0.0
        %1182 = vmatmul.mubr.f32.gmra.mxu0 %v936
        %v1183 = vpop.f32.mrf.mxu0
        %v1184 = vadd.f32 %v960, %v1183
        %v1185 = vpop.f32.mrf.mxu0
        %1186 = vdwg.mxu0
        %v1187 = vld [vmem:[#allocation10] sm:$0xff]
        %v1188 = vld [vmem:[#allocation10 + $0x8] sm:$0xff]
        %v1189 = vld [vmem:[#allocation10 + $0x10] sm:$0xff]
        %v1190 = vld [vmem:[#allocation10 + $0x18] sm:$0xff]
        %v1191 = vld [vmem:[#allocation10 + $0x20] sm:$0xff]
        %v1192 = vld [vmem:[#allocation10 + $0x28] sm:$0xff]
        %v1193 = vld [vmem:[#allocation10 + $0x30] sm:$0xff]
        %v1194 = vld [vmem:[#allocation10 + $0x38] sm:$0xff]
        %v1195 = vld [vmem:[#allocation10 + $0x40] sm:$0xff]
        %v1196 = vld [vmem:[#allocation10 + $0x48] sm:$0xff]
        %v1197 = vld [vmem:[#allocation10 + $0x50] sm:$0xff]
        %v1198 = vld [vmem:[#allocation10 + $0x58] sm:$0xff]
        %v1199 = vld [vmem:[#allocation10 + $0x60] sm:$0xff]
        %v1200 = vld [vmem:[#allocation10 + $0x68] sm:$0xff]
        %v1201 = vld [vmem:[#allocation10 + $0x70] sm:$0xff]
        %v1202 = vld [vmem:[#allocation10 + $0x78] sm:$0xff]
        %v1203 = vld [vmem:[%s8] sm:$0x1]
        %v1205 = vlaneseq
        %v1206 = vshrl.u32 %v1205, 7
        %v1207 = vsub.s32 0, %v1206
        %v1208 = vrot.slane %v1203, %v1207
        %1210 = vmatprep.subr.mxu0 0.0
        %1211 = vmatpush1.msra.mxu0 %v1202
        %1212 = vmatprep.subr.mxu0 0.0
        %1213 = vmatpush1.msra.mxu0 %v1201
        %1214 = vmatprep.subr.mxu0 0.0
        %1215 = vmatpush1.msra.mxu0 %v1200
        %1216 = vmatprep.subr.mxu0 0.0
        %1217 = vmatpush1.msra.mxu0 %v1199
        %1218 = vmatprep.subr.mxu0 0.0
        %1219 = vmatpush1.msra.mxu0 %v1198
        %1220 = vmatprep.subr.mxu0 0.0
        %1221 = vmatpush1.msra.mxu0 %v1197
        %1222 = vmatprep.subr.mxu0 0.0
        %1223 = vmatpush1.msra.mxu0 %v1196
        %1224 = vmatprep.subr.mxu0 0.0
        %1225 = vmatpush1.msra.mxu0 %v1195
        %1226 = vmatprep.subr.mxu0 0.0
        %1227 = vmatpush1.msra.mxu0 %v1194
        %1228 = vmatprep.subr.mxu0 0.0
        %1229 = vmatpush1.msra.mxu0 %v1193
        %1230 = vmatprep.subr.mxu0 0.0
        %1231 = vmatpush1.msra.mxu0 %v1192
        %1232 = vmatprep.subr.mxu0 0.0
        %1233 = vmatpush1.msra.mxu0 %v1191
        %1234 = vmatprep.subr.mxu0 0.0
        %1235 = vmatpush1.msra.mxu0 %v1190
        %1236 = vmatprep.subr.mxu0 0.0
        %1237 = vmatpush1.msra.mxu0 %v1189
        %1238 = vmatprep.subr.mxu0 0.0
        %1239 = vmatpush1.msra.mxu0 %v1188
        %1240 = vmatprep.subr.mxu0 0.0
        %1241 = vmatpush1.msra.mxu0 %v1187
        %1242 = vmatprep.subr.mxu0 0.0
        %1243 = vmatpush2.msra.mxu0 0.0
        %1244 = vmatprep.subr.mxu0 0.0
        %1245 = vmatpush2.msra.mxu0 0.0
        %1246 = vmatprep.subr.mxu0 0.0
        %1247 = vmatpush2.msra.mxu0 0.0
        %1248 = vmatprep.subr.mxu0 0.0
        %1249 = vmatpush2.msra.mxu0 0.0
        %1250 = vmatprep.subr.mxu0 0.0
        %1251 = vmatpush2.msra.mxu0 0.0
        %1252 = vmatprep.subr.mxu0 0.0
        %1253 = vmatpush2.msra.mxu0 0.0
        %1254 = vmatprep.subr.mxu0 0.0
        %1255 = vmatpush2.msra.mxu0 0.0
        %1256 = vmatprep.subr.mxu0 0.0
        %1257 = vmatpush2.msra.mxu0 0.0
        %1258 = vmatprep.subr.mxu0 0.0
        %1259 = vmatpush2.msra.mxu0 0.0
        %1260 = vmatprep.subr.mxu0 0.0
        %1261 = vmatpush2.msra.mxu0 0.0
        %1262 = vmatprep.subr.mxu0 0.0
        %1263 = vmatpush2.msra.mxu0 0.0
        %1264 = vmatprep.subr.mxu0 0.0
        %1265 = vmatpush2.msra.mxu0 0.0
        %1266 = vmatprep.subr.mxu0 0.0
        %1267 = vmatpush2.msra.mxu0 0.0
        %1268 = vmatprep.subr.mxu0 0.0
        %1269 = vmatpush2.msra.mxu0 0.0
        %1270 = vmatprep.subr.mxu0 0.0
        %1271 = vmatpush2.msra.mxu0 0.0
        %1272 = vmatprep.subr.mxu0 0.0
        %1273 = vmatpush2.msra.mxu0 0.0
        %1274 = vmatprep.mubr.f32.mxu0 0.0
        %1275 = vmatmul.mubr.f32.gmra.mxu0 %v1029
        %v1276 = vpop.f32.mrf.mxu0
        %v1277 = vadd.f32 %v1208, %v1276
        %v1278 = vpop.f32.mrf.mxu0
        %1279 = vmatprep.mubr.f32.mxu0 0.0
        %1280 = vmatmul.mubr.f32.gmra.mxu0 %v1034
        %v1281 = vpop.f32.mrf.mxu0
        %v1282 = vadd.f32 %v1208, %v1281
        %v1283 = vpop.f32.mrf.mxu0
        %1284 = vmatprep.mubr.f32.mxu0 0.0
        %1285 = vmatmul.mubr.f32.gmra.mxu0 %v1039
        %v1286 = vpop.f32.mrf.mxu0
        %v1287 = vadd.f32 %v1208, %v1286
        %v1288 = vpop.f32.mrf.mxu0
        %1289 = vmatprep.mubr.f32.mxu0 0.0
        %1290 = vmatmul.mubr.f32.gmra.mxu0 %v1044
        %v1291 = vpop.f32.mrf.mxu0
        %v1292 = vadd.f32 %v1208, %v1291
        %v1293 = vpop.f32.mrf.mxu0
        %1294 = vmatprep.mubr.f32.mxu0 0.0
        %1295 = vmatmul.mubr.f32.gmra.mxu0 %v1049
        %v1296 = vpop.f32.mrf.mxu0
        %v1297 = vadd.f32 %v1208, %v1296
        %v1298 = vpop.f32.mrf.mxu0
        %1299 = vmatprep.mubr.f32.mxu0 0.0
        %1300 = vmatmul.mubr.f32.gmra.mxu0 %v1054
        %v1301 = vpop.f32.mrf.mxu0
        %v1302 = vadd.f32 %v1208, %v1301
        %v1303 = vpop.f32.mrf.mxu0
        %1304 = vmatprep.mubr.f32.mxu0 0.0
        %1305 = vmatmul.mubr.f32.gmra.mxu0 %v1059
        %v1306 = vpop.f32.mrf.mxu0
        %v1307 = vadd.f32 %v1208, %v1306
        %v1308 = vpop.f32.mrf.mxu0
        %1309 = vmatprep.mubr.f32.mxu0 0.0
        %1310 = vmatmul.mubr.f32.gmra.mxu0 %v1064
        %v1311 = vpop.f32.mrf.mxu0
        %v1312 = vadd.f32 %v1208, %v1311
        %v1313 = vpop.f32.mrf.mxu0
        %1314 = vmatprep.mubr.f32.mxu0 0.0
        %1315 = vmatmul.mubr.f32.gmra.mxu0 %v1069
        %v1316 = vpop.f32.mrf.mxu0
        %v1317 = vadd.f32 %v1208, %v1316
        %v1318 = vpop.f32.mrf.mxu0
        %1319 = vmatprep.mubr.f32.mxu0 0.0
        %1320 = vmatmul.mubr.f32.gmra.mxu0 %v1074
        %v1321 = vpop.f32.mrf.mxu0
        %v1322 = vadd.f32 %v1208, %v1321
        %v1323 = vpop.f32.mrf.mxu0
        %1324 = vmatprep.mubr.f32.mxu0 0.0
        %1325 = vmatmul.mubr.f32.gmra.mxu0 %v1079
        %v1326 = vpop.f32.mrf.mxu0
        %v1327 = vadd.f32 %v1208, %v1326
        %v1328 = vpop.f32.mrf.mxu0
        %1329 = vmatprep.mubr.f32.mxu0 0.0
        %1330 = vmatmul.mubr.f32.gmra.mxu0 %v1084
        %v1331 = vpop.f32.mrf.mxu0
        %v1332 = vadd.f32 %v1208, %v1331
        %v1333 = vpop.f32.mrf.mxu0
        %1334 = vmatprep.mubr.f32.mxu0 0.0
        %1335 = vmatmul.mubr.f32.gmra.mxu0 %v1089
        %v1336 = vpop.f32.mrf.mxu0
        %v1337 = vadd.f32 %v1208, %v1336
        %v1338 = vpop.f32.mrf.mxu0
        %1339 = vmatprep.mubr.f32.mxu0 0.0
        %1340 = vmatmul.mubr.f32.gmra.mxu0 %v1094
        %v1341 = vpop.f32.mrf.mxu0
        %v1342 = vadd.f32 %v1208, %v1341
        %v1343 = vpop.f32.mrf.mxu0
        %1344 = vmatprep.mubr.f32.mxu0 0.0
        %1345 = vmatmul.mubr.f32.gmra.mxu0 %v1099
        %v1346 = vpop.f32.mrf.mxu0
        %v1347 = vadd.f32 %v1208, %v1346
        %v1348 = vpop.f32.mrf.mxu0
        %1349 = vmatprep.mubr.f32.mxu0 0.0
        %1350 = vmatmul.mubr.f32.gmra.mxu0 %v1104
        %v1351 = vpop.f32.mrf.mxu0
        %v1352 = vadd.f32 %v1208, %v1351
        %v1353 = vpop.f32.mrf.mxu0
        %1354 = vmatprep.mubr.f32.mxu0 0.0
        %1355 = vmatmul.mubr.f32.gmra.mxu0 %v1109
        %v1356 = vpop.f32.mrf.mxu0
        %v1357 = vadd.f32 %v1208, %v1356
        %v1358 = vpop.f32.mrf.mxu0
        %1359 = vmatprep.mubr.f32.mxu0 0.0
        %1360 = vmatmul.mubr.f32.gmra.mxu0 %v1114
        %v1361 = vpop.f32.mrf.mxu0
        %v1362 = vadd.f32 %v1208, %v1361
        %v1363 = vpop.f32.mrf.mxu0
        %1364 = vmatprep.mubr.f32.mxu0 0.0
        %1365 = vmatmul.mubr.f32.gmra.mxu0 %v1119
        %v1366 = vpop.f32.mrf.mxu0
        %v1367 = vadd.f32 %v1208, %v1366
        %v1368 = vpop.f32.mrf.mxu0
        %1369 = vmatprep.mubr.f32.mxu0 0.0
        %1370 = vmatmul.mubr.f32.gmra.mxu0 %v1124
        %v1371 = vpop.f32.mrf.mxu0
        %v1372 = vadd.f32 %v1208, %v1371
        %v1373 = vpop.f32.mrf.mxu0
        %1374 = vmatprep.mubr.f32.mxu0 0.0
        %1375 = vmatmul.mubr.f32.gmra.mxu0 %v1129
        %v1376 = vpop.f32.mrf.mxu0
        %v1377 = vadd.f32 %v1208, %v1376
        %v1378 = vpop.f32.mrf.mxu0
        %1379 = vmatprep.mubr.f32.mxu0 0.0
        %1380 = vmatmul.mubr.f32.gmra.mxu0 %v1134
        %v1381 = vpop.f32.mrf.mxu0
        %v1382 = vadd.f32 %v1208, %v1381
        %v1383 = vpop.f32.mrf.mxu0
        %1384 = vmatprep.mubr.f32.mxu0 0.0
        %1385 = vmatmul.mubr.f32.gmra.mxu0 %v1139
        %v1386 = vpop.f32.mrf.mxu0
        %v1387 = vadd.f32 %v1208, %v1386
        %v1388 = vpop.f32.mrf.mxu0
        %1389 = vmatprep.mubr.f32.mxu0 0.0
        %1390 = vmatmul.mubr.f32.gmra.mxu0 %v1144
        %v1391 = vpop.f32.mrf.mxu0
        %v1392 = vadd.f32 %v1208, %v1391
        %v1393 = vpop.f32.mrf.mxu0
        %1394 = vmatprep.mubr.f32.mxu0 0.0
        %1395 = vmatmul.mubr.f32.gmra.mxu0 %v1149
        %v1396 = vpop.f32.mrf.mxu0
        %v1397 = vadd.f32 %v1208, %v1396
        %v1398 = vpop.f32.mrf.mxu0
        %1399 = vmatprep.mubr.f32.mxu0 0.0
        %1400 = vmatmul.mubr.f32.gmra.mxu0 %v1154
        %v1401 = vpop.f32.mrf.mxu0
        %v1402 = vadd.f32 %v1208, %v1401
        %v1403 = vpop.f32.mrf.mxu0
        %1404 = vmatprep.mubr.f32.mxu0 0.0
        %1405 = vmatmul.mubr.f32.gmra.mxu0 %v1159
        %v1406 = vpop.f32.mrf.mxu0
        %v1407 = vadd.f32 %v1208, %v1406
        %v1408 = vpop.f32.mrf.mxu0
        %1409 = vmatprep.mubr.f32.mxu0 0.0
        %1410 = vmatmul.mubr.f32.gmra.mxu0 %v1164
        %v1411 = vpop.f32.mrf.mxu0
        %v1412 = vadd.f32 %v1208, %v1411
        %v1413 = vpop.f32.mrf.mxu0
        %1414 = vmatprep.mubr.f32.mxu0 0.0
        %1415 = vmatmul.mubr.f32.gmra.mxu0 %v1169
        %v1416 = vpop.f32.mrf.mxu0
        %v1417 = vadd.f32 %v1208, %v1416
        %v1418 = vpop.f32.mrf.mxu0
        %1419 = vmatprep.mubr.f32.mxu0 0.0
        %1420 = vmatmul.mubr.f32.gmra.mxu0 %v1174
        %v1421 = vpop.f32.mrf.mxu0
        %v1422 = vadd.f32 %v1208, %v1421
        %v1423 = vpop.f32.mrf.mxu0
        %1424 = vmatprep.mubr.f32.mxu0 0.0
        %1425 = vmatmul.mubr.f32.gmra.mxu0 %v1179
        %v1426 = vpop.f32.mrf.mxu0
        %v1427 = vadd.f32 %v1208, %v1426
        %v1428 = vpop.f32.mrf.mxu0
        %1429 = vmatprep.mubr.f32.mxu0 0.0
        %1430 = vmatmul.mubr.f32.gmra.mxu0 %v1184
        %v1431 = vpop.f32.mrf.mxu0
        %v1432 = vadd.f32 %v1208, %v1431
        %v1433 = vpop.f32.mrf.mxu0
        %1434 = vdwg.mxu0
        %1435 = vst [vmem:[%s408] sm:$0xff] %v1277
        %1436 = vst [vmem:[%s408 + $0x8] sm:$0xff] %v1282
        %1437 = vst [vmem:[%s408 + $0x10] sm:$0xff] %v1287
        %1438 = vst [vmem:[%s408 + $0x18] sm:$0xff] %v1292
        %1439 = vst [vmem:[%s408 + $0x20] sm:$0xff] %v1297
        %1440 = vst [vmem:[%s408 + $0x28] sm:$0xff] %v1302
        %1441 = vst [vmem:[%s408 + $0x30] sm:$0xff] %v1307
        %1442 = vst [vmem:[%s408 + $0x38] sm:$0xff] %v1312
        %1443 = vst [vmem:[%s408 + $0x40] sm:$0xff] %v1317
        %1444 = vst [vmem:[%s408 + $0x48] sm:$0xff] %v1322
        %1445 = vst [vmem:[%s408 + $0x50] sm:$0xff] %v1327
        %1446 = vst [vmem:[%s408 + $0x58] sm:$0xff] %v1332
        %1447 = vst [vmem:[%s408 + $0x60] sm:$0xff] %v1337
        %1448 = vst [vmem:[%s408 + $0x68] sm:$0xff] %v1342
        %1449 = vst [vmem:[%s408 + $0x70] sm:$0xff] %v1347
        %1450 = vst [vmem:[%s408 + $0x78] sm:$0xff] %v1352
        %1451 = vst [vmem:[%s408 + $0x80] sm:$0xff] %v1357
        %1452 = vst [vmem:[%s408 + $0x88] sm:$0xff] %v1362
        %1453 = vst [vmem:[%s408 + $0x90] sm:$0xff] %v1367
        %1454 = vst [vmem:[%s408 + $0x98] sm:$0xff] %v1372
        %1455 = vst [vmem:[%s408 + $0xa0] sm:$0xff] %v1377
        %1456 = vst [vmem:[%s408 + $0xa8] sm:$0xff] %v1382
        %1457 = vst [vmem:[%s408 + $0xb0] sm:$0xff] %v1387
        %1458 = vst [vmem:[%s408 + $0xb8] sm:$0xff] %v1392
        %1459 = vst [vmem:[%s408 + $0xc0] sm:$0xff] %v1397
        %1460 = vst [vmem:[%s408 + $0xc8] sm:$0xff] %v1402
        %1461 = vst [vmem:[%s408 + $0xd0] sm:$0xff] %v1407
        %1462 = vst [vmem:[%s408 + $0xd8] sm:$0xff] %v1412
        %1463 = vst [vmem:[%s408 + $0xe0] sm:$0xff] %v1417
        %1464 = vst [vmem:[%s408 + $0xe8] sm:$0xff] %v1422
        %1465 = vst [vmem:[%s408 + $0xf0] sm:$0xff] %v1427
        %1466 = vst [vmem:[%s408 + $0xf8] sm:$0xff] %v1432
        %s1467 = sand.u32 %s230, 1
        %s1468 = scalar_lea.sflag [#allocation4], %s1467
        %s1469 = sand.u32 %s230, 1
        %s1470 = smul.addr %s1469, 256
        %s1471 = scalar_lea.vmem [#allocation11], %s1470
        // Predicated region
        $region77: #{tpu_custom_call.1} parent=55 // pred_check
          %p1472 = pneg %p240
        $region78: #{tpu_custom_call.1} parent=55 // pred_check_branch
          %1474 = sbr.rel (%p1472) target = $region80
        $region79: #{tpu_custom_call.1} parent=55 // pred_region
          %s1475 = smul.u32 32, %s28
          %s1477 = ssub.s32 4096, 4096
          %1478 = vsyncadd %s1468, %s1477
          %s1479 = smul.addr %s1475, 128
          %s1480 = scalar_lea.hbm %s9, %s1479
          %s1481 = sshll.u32 %s1471, 4
          %s1482 = int_to_ptr.vmem [resolvable:$true] %s1481
          %1487 = dma.vmem_to_hbm [thread:$0]  %s1482, 4096, %s1480, %s1468, 128, 128, 8
        $region80: #{tpu_custom_call.1} parent=55 // pred_fallthru
          _
      $region56: #{tpu_custom_call.1} parent=5 // pred_fallthru
        _
      %p1488 = scmp.le.s32.totalorder 2, %s23
      // Predicated region
      $region81: #{tpu_custom_call.1} parent=5 // pred_check
        %p1489 = pneg %p1488
      $region82: #{tpu_custom_call.1} parent=5 // pred_check_branch
        %1491 = sbr.rel (%p1489) target = $region84
      $region83: #{tpu_custom_call.1} parent=5 // pred_region
        %s1492 = ssub.s32 %s23, 2
        // Predicated region
        $region85: #{tpu_custom_call.1} parent=83 // pred_check
          %p1493 = pneg %p246
        $region86: #{tpu_custom_call.1} parent=83 // pred_check_branch
          %1495 = sbr.rel (%p1493) target = $region88
        $region87: #{tpu_custom_call.1} parent=83 // pred_region
          %s1496 = sand.u32 %s231, 1
          %s1497 = scalar_lea.sflag [#allocation4], %s1496
          %s1498 = sand.u32 %s231, 1
          %s1499 = smul.addr %s1498, 256
          %s1500 = scalar_lea.vmem [#allocation11], %s1499
          %1501 = dma.done %s1497, 4096
        $region88: #{tpu_custom_call.1} parent=83 // pred_fallthru
          _
      $region84: #{tpu_custom_call.1} parent=5 // pred_fallthru
        _
    $region6: #{tpu_custom_call.1} parent=1 // loop_footer
      %s27 = sadd.s32 1, %s23
    $region7: #{tpu_custom_call.1} parent=1 // loop_footer_branch
      %22 = sbr.rel target = $region3
    $region8: #{tpu_custom_call.1} parent=1 // loop_exit
      _
    %1502 = vsyncpa [#allocation3], 1
    %s1503 = scalar_lea.sflag [#allocation3], 1
    %1504 = vsyncpa %s1503, 1
    %1505 = vsyncpa [#allocation6], 1
    %1506 = vsyncpa [#allocation9], 1
    %1507 = vsyncpa [#allocation4], 1
    %s1508 = scalar_lea.sflag [#allocation4], 1
    %1509 = vsyncpa %s1508, 1

// kernel: tpu_custom_call.1
$region0: #{tpu_custom_call.1}
  #allocation0 [shape = 'u32[]', space=smem, size = 0x4, offset = 0x4, fixed_abs, tag = 'smem constant byte address 0x4 - core index']
  #allocation1 [shape = 'u32[144,128]{1,0:T(1,128)}', space=vmem, size = 0x12000, scoped, tag = 'internal scratch']
  %s0 = inlined_call_operand.hbm [shape: f32[1024,128], index: 0, kind: input, shape index: {}]
  %s1 = inlined_call_operand.hbm [shape: f32[128,128], index: 1, kind: input, shape index: {}]
  %s2 = inlined_call_operand.vmem [shape: f32[1,128], index: 2, kind: input, shape index: {}]
  %s3 = inlined_call_operand.hbm [shape: f32[128,128], index: 3, kind: input, shape index: {}]
  %s4 = inlined_call_operand.vmem [shape: f32[1,128], index: 4, kind: input, shape index: {}]
  %s5 = inlined_call_operand.hbm [shape: f32[128,128], index: 5, kind: input, shape index: {}]
  %s6 = inlined_call_operand.vmem [shape: f32[1,128], index: 6, kind: input, shape index: {}]
  %s7 = inlined_call_operand.hbm [shape: f32[128,128], index: 7, kind: input, shape index: {}]
  %s8 = inlined_call_operand.vmem [shape: f32[1,128], index: 8, kind: input, shape index: {}]
  %s9 = inlined_call_operand.hbm [shape: f32[1024,128], index: 9, kind: output, shape index: {}]
  %s10 = sld [smem:[#allocation0]]
  $region89: #{tpu_custom_call.1} parent=0
    _
  %s12 = ssub.s32 1, %s10
  %s13 = scalar_select 0, %s12, %s10
  $region1: #{tpu_custom_call.1} parent=0
    #allocation2 [shape = 'u8[262144]{0}', space=vmem, size = 0x40000, scoped, tag = 'input window, operand 0']
    #allocation3 [shape = 's32[2]{0}', space=sflag, size = 0x8, scoped, tag = 'scoped memory for tpu_custom_call.1']
    #allocation4 [shape = 's32[2]{0}', space=sflag, size = 0x8, scoped, tag = 'scoped memory for tpu_custom_call.1']
    #allocation5 [shape = 'u8[65536]{0}', space=vmem, size = 0x10000, scoped, tag = 'input window, operand 1, single buffered']
    #allocation6 [shape = 's32[1]{0}', space=sflag, size = 0x4, scoped, tag = 'scoped memory for tpu_custom_call.1']
    #allocation7 [shape = 'u8[65536]{0}', space=vmem, size = 0x10000, scoped, tag = 'input window, operand 3, single buffered']
    #allocation8 [shape = 'u8[65536]{0}', space=vmem, size = 0x10000, scoped, tag = 'input window, operand 5, single buffered']
    #allocation9 [shape = 's32[1]{0}', space=sflag, size = 0x4, scoped, tag = 'scoped memory for tpu_custom_call.1']
    #allocation10 [shape = 'u8[65536]{0}', space=vmem, size = 0x10000, scoped, tag = 'input window, operand 7, single buffered']
    #allocation11 [shape = 'u8[262144]{0}', space=vmem, size = 0x40000, scoped, tag = 'output window, operand 0']
    %14 = vsyncpa [#allocation3], 0
    %s15 = scalar_lea.sflag [#allocation3], 1
    %16 = vsyncpa %s15, 0
    %17 = vsyncpa [#allocation6], 0
    %18 = vsyncpa [#allocation9], 0
    %19 = vsyncpa [#allocation4], 0
    %s20 = scalar_lea.sflag [#allocation4], 1
    %21 = vsyncpa %s20, 0
    loop: start=0, step=1, limit=6
    $region2: #{tpu_custom_call.1} parent=1 // loop_pre_header
      _
    $region3: #{tpu_custom_call.1} parent=1 // loop_header
      %s23 = sphi 0, %s27
      %p24 = scmp.ge.s32.totalorder %s23, 6
      %s33 = sphi 0, %s35
      %s36 = sphi 0, %s33
      %s37 = sphi 0, %s36
      %s53 = sphi 0, %s37
      %s57 = sphi 0, %s57
      %s59 = sphi 0, %s57
      %s60 = sphi 0, %s59
      %s74 = sphi 0, %s60
      %s78 = sphi 0, %s78
      %s80 = sphi 0, %s78
      %s81 = sphi 0, %s80
      %s95 = sphi 0, %s81
      %s99 = sphi 0, %s99
      %s101 = sphi 0, %s99
      %s102 = sphi 0, %s101
      %s116 = sphi 0, %s102
      %s120 = sphi 0, %s120
      %s122 = sphi 0, %s120
      %s123 = sphi 0, %s122
      %s137 = sphi 0, %s123
      %s141 = sphi 0, %s141
      %s143 = sphi 0, %s141
      %s144 = sphi 0, %s143
      %s158 = sphi 0, %s144
      %s162 = sphi 0, %s162
      %s164 = sphi 0, %s162
      %s165 = sphi 0, %s164
      %s179 = sphi 0, %s165
      %s183 = sphi 0, %s183
      %s185 = sphi 0, %s183
      %s186 = sphi 0, %s185
      %s200 = sphi 0, %s186
      %s204 = sphi 0, %s204
      %s206 = sphi 0, %s204
      %s207 = sphi 0, %s206
      %s221 = sphi 0, %s207
      %s227 = sphi 0, %s229
      %s230 = sphi 0, %s227
      %s231 = sphi 0, %s230
      %s247 = sphi 0, %s231
    $region4: #{tpu_custom_call.1} parent=1 // loop_header_branch
      %26 = sbr.rel (%p24) target = $region8
    $region5: #{tpu_custom_call.1} parent=1 // loop_body
      %s28 = ssub.s32 %s23, 1
      %s29 = ssub.s32 %s23, 2
      %s30 = sadd.s32 %s23, 1
      %s31 = ssub.s32 %s23, %s30
      %p32 = scmp.eq.s32.totalorder %s31, 0
      %s34 = sadd.s32 %s33, 1
      %s35 = scalar_select %p32, %s33, %s34
      %p38 = pneg %p32
      %p39 = scmp.eq.s32.totalorder %s23, 3
      %p40 = por %p38, %p39
      %p41 = scmp.ne.s32.totalorder %s33, %s36
      %p42 = scmp.eq.s32.totalorder %s23, 0
      %p43 = por %p41, %p42
      %p44 = scmp.ne.s32.totalorder %s33, %s36
      %p45 = scmp.eq.s32.totalorder %s28, 3
      %p46 = por %p44, %p45
      %p47 = scmp.ne.s32.totalorder %s36, %s37
      %p48 = scmp.eq.s32.totalorder %s28, 0
      %p49 = por %p47, %p48
      %p50 = scmp.ne.s32.totalorder %s36, %s37
      %p51 = scmp.eq.s32.totalorder %s29, 3
      %p52 = por %p50, %p51
      %p54 = scmp.ne.s32.totalorder %s37, %s53
      %p55 = scmp.eq.s32.totalorder %s29, 0
      %p56 = por %p54, %p55
      %s58 = sadd.s32 %s57, 1
      %p61 = scmp.eq.s32.totalorder %s23, 3
      %p62 = scmp.ne.s32.totalorder %s57, %s59
      %p63 = scmp.eq.s32.totalorder %s23, 0
      %p64 = por %p62, %p63
      %p65 = scmp.ne.s32.totalorder %s57, %s59
      %p66 = scmp.eq.s32.totalorder %s28, 3
      %p67 = por %p65, %p66
      %p68 = scmp.ne.s32.totalorder %s59, %s60
      %p69 = scmp.eq.s32.totalorder %s28, 0
      %p70 = por %p68, %p69
      %p71 = scmp.ne.s32.totalorder %s59, %s60
      %p72 = scmp.eq.s32.totalorder %s29, 3
      %p73 = por %p71, %p72
      %p75 = scmp.ne.s32.totalorder %s60, %s74
      %p76 = scmp.eq.s32.totalorder %s29, 0
      %p77 = por %p75, %p76
      %s79 = sadd.s32 %s78, 1
      %p82 = scmp.eq.s32.totalorder %s23, 3
      %p83 = scmp.ne.s32.totalorder %s78, %s80
      %p84 = scmp.eq.s32.totalorder %s23, 0
      %p85 = por %p83, %p84
      %p86 = scmp.ne.s32.totalorder %s78, %s80
      %p87 = scmp.eq.s32.totalorder %s28, 3
      %p88 = por %p86, %p87
      %p89 = scmp.ne.s32.totalorder %s80, %s81
      %p90 = scmp.eq.s32.totalorder %s28, 0
      %p91 = por %p89, %p90
      %p92 = scmp.ne.s32.totalorder %s80, %s81
      %p93 = scmp.eq.s32.totalorder %s29, 3
      %p94 = por %p92, %p93
      %p96 = scmp.ne.s32.totalorder %s81, %s95
      %p97 = scmp.eq.s32.totalorder %s29, 0
      %p98 = por %p96, %p97
      %s100 = sadd.s32 %s99, 1
      %p103 = scmp.eq.s32.totalorder %s23, 3
      %p104 = scmp.ne.s32.totalorder %s99, %s101
      %p105 = scmp.eq.s32.totalorder %s23, 0
      %p106 = por %p104, %p105
      %p107 = scmp.ne.s32.totalorder %s99, %s101
      %p108 = scmp.eq.s32.totalorder %s28, 3
      %p109 = por %p107, %p108
      %p110 = scmp.ne.s32.totalorder %s101, %s102
      %p111 = scmp.eq.s32.totalorder %s28, 0
      %p112 = por %p110, %p111
      %p113 = scmp.ne.s32.totalorder %s101, %s102
      %p114 = scmp.eq.s32.totalorder %s29, 3
      %p115 = por %p113, %p114
      %p117 = scmp.ne.s32.totalorder %s102, %s116
      %p118 = scmp.eq.s32.totalorder %s29, 0
      %p119 = por %p117, %p118
      %s121 = sadd.s32 %s120, 1
      %p124 = scmp.eq.s32.totalorder %s23, 3
      %p125 = scmp.ne.s32.totalorder %s120, %s122
      %p126 = scmp.eq.s32.totalorder %s23, 0
      %p127 = por %p125, %p126
      %p128 = scmp.ne.s32.totalorder %s120, %s122
      %p129 = scmp.eq.s32.totalorder %s28, 3
      %p130 = por %p128, %p129
      %p131 = scmp.ne.s32.totalorder %s122, %s123
      %p132 = scmp.eq.s32.totalorder %s28, 0
      %p133 = por %p131, %p132
      %p134 = scmp.ne.s32.totalorder %s122, %s123
      %p135 = scmp.eq.s32.totalorder %s29, 3
      %p136 = por %p134, %p135
      %p138 = scmp.ne.s32.totalorder %s123, %s137
      %p139 = scmp.eq.s32.totalorder %s29, 0
      %p140 = por %p138, %p139
      %s142 = sadd.s32 %s141, 1
      %p145 = scmp.eq.s32.totalorder %s23, 3
      %p146 = scmp.ne.s32.totalorder %s141, %s143
      %p147 = scmp.eq.s32.totalorder %s23, 0
      %p148 = por %p146, %p147
      %p149 = scmp.ne.s32.totalorder %s141, %s143
      %p150 = scmp.eq.s32.totalorder %s28, 3
      %p151 = por %p149, %p150
      %p152 = scmp.ne.s32.totalorder %s143, %s144
      %p153 = scmp.eq.s32.totalorder %s28, 0
      %p154 = por %p152, %p153
      %p155 = scmp.ne.s32.totalorder %s143, %s144
      %p156 = scmp.eq.s32.totalorder %s29, 3
      %p157 = por %p155, %p156
      %p159 = scmp.ne.s32.totalorder %s144, %s158
      %p160 = scmp.eq.s32.totalorder %s29, 0
      %p161 = por %p159, %p160
      %s163 = sadd.s32 %s162, 1
      %p166 = scmp.eq.s32.totalorder %s23, 3
      %p167 = scmp.ne.s32.totalorder %s162, %s164
      %p168 = scmp.eq.s32.totalorder %s23, 0
      %p169 = por %p167, %p168
      %p170 = scmp.ne.s32.totalorder %s162, %s164
      %p171 = scmp.eq.s32.totalorder %s28, 3
      %p172 = por %p170, %p171
      %p173 = scmp.ne.s32.totalorder %s164, %s165
      %p174 = scmp.eq.s32.totalorder %s28, 0
      %p175 = por %p173, %p174
      %p176 = scmp.ne.s32.totalorder %s164, %s165
      %p177 = scmp.eq.s32.totalorder %s29, 3
      %p178 = por %p176, %p177
      %p180 = scmp.ne.s32.totalorder %s165, %s179
      %p181 = scmp.eq.s32.totalorder %s29, 0
      %p182 = por %p180, %p181
      %s184 = sadd.s32 %s183, 1
      %p187 = scmp.eq.s32.totalorder %s23, 3
      %p188 = scmp.ne.s32.totalorder %s183, %s185
      %p189 = scmp.eq.s32.totalorder %s23, 0
      %p190 = por %p188, %p189
      %p191 = scmp.ne.s32.totalorder %s183, %s185
      %p192 = scmp.eq.s32.totalorder %s28, 3
      %p193 = por %p191, %p192
      %p194 = scmp.ne.s32.totalorder %s185, %s186
      %p195 = scmp.eq.s32.totalorder %s28, 0
      %p196 = por %p194, %p195
      %p197 = scmp.ne.s32.totalorder %s185, %s186
      %p198 = scmp.eq.s32.totalorder %s29, 3
      %p199 = por %p197, %p198
      %p201 = scmp.ne.s32.totalorder %s186, %s200
      %p202 = scmp.eq.s32.totalorder %s29, 0
      %p203 = por %p201, %p202
      %s205 = sadd.s32 %s204, 1
      %p208 = scmp.eq.s32.totalorder %s23, 3
      %p209 = scmp.ne.s32.totalorder %s204, %s206
      %p210 = scmp.eq.s32.totalorder %s23, 0
      %p211 = por %p209, %p210
      %p212 = scmp.ne.s32.totalorder %s204, %s206
      %p213 = scmp.eq.s32.totalorder %s28, 3
      %p214 = por %p212, %p213
      %p215 = scmp.ne.s32.totalorder %s206, %s207
      %p216 = scmp.eq.s32.totalorder %s28, 0
      %p217 = por %p215, %p216
      %p218 = scmp.ne.s32.totalorder %s206, %s207
      %p219 = scmp.eq.s32.totalorder %s29, 3
      %p220 = por %p218, %p219
      %p222 = scmp.ne.s32.totalorder %s207, %s221
      %p223 = scmp.eq.s32.totalorder %s29, 0
      %p224 = por %p222, %p223
      %s225 = ssub.s32 %s23, %s30
      %p226 = scmp.eq.s32.totalorder %s225, 0
      %s228 = sadd.s32 %s227, 1
      %s229 = scalar_select %p226, %s227, %s228
      %p232 = pneg %p226
      %p233 = scmp.eq.s32.totalorder %s23, 3
      %p234 = por %p232, %p233
      %p235 = scmp.ne.s32.totalorder %s227, %s230
      %p236 = scmp.eq.s32.totalorder %s23, 0
      %p237 = por %p235, %p236
      %p238 = scmp.ne.s32.totalorder %s227, %s230
      %p239 = scmp.eq.s32.totalorder %s28, 3
      %p240 = por %p238, %p239
      %p241 = scmp.ne.s32.totalorder %s230, %s231
      %p242 = scmp.eq.s32.totalorder %s28, 0
      %p243 = por %p241, %p242
      %p244 = scmp.ne.s32.totalorder %s230, %s231
      %p245 = scmp.eq.s32.totalorder %s29, 3
      %p246 = por %p244, %p245
      %p248 = scmp.ne.s32.totalorder %s231, %s247
      %p249 = scmp.eq.s32.totalorder %s29, 0
      %p250 = por %p248, %p249
      %p251 = scmp.le.s32.totalorder 1, %s23
      %p252 = scmp.lt.s32.totalorder %s23, 5
      %p253 = pnand %p251, %p252
      %p254 = pneg %p253
      // Predicated region
      $region9: #{tpu_custom_call.1} parent=5 // pred_check
        _
      $region10: #{tpu_custom_call.1} parent=5 // pred_check_branch
        %256 = sbr.rel (%p253) target = $region12
      $region11: #{tpu_custom_call.1} parent=5 // pred_region
        %s257 = ssub.s32 %s23, 1
        // Predicated region
        $region13: #{tpu_custom_call.1} parent=11 // pred_check
          %p258 = pneg %p70
        $region14: #{tpu_custom_call.1} parent=11 // pred_check_branch
          %260 = sbr.rel (%p258) target = $region16
        $region15: #{tpu_custom_call.1} parent=11 // pred_region
          %s262 = ssub.s32 2048, 2048
          %263 = vsyncadd [#allocation6], %s262
          %s264 = sshll.u32 [#allocation5], 4
          %s265 = int_to_ptr.vmem [resolvable:$true] %s264
          %270 = dma.hbm_to_vmem [thread:$0]  %s1, 2048, %s265, [#allocation6], 128, 128, 8
        $region16: #{tpu_custom_call.1} parent=11 // pred_fallthru
          _
        // Predicated region
        $region17: #{tpu_custom_call.1} parent=11 // pred_check
          %p271 = pneg %p91
        $region18: #{tpu_custom_call.1} parent=11 // pred_check_branch
          %273 = sbr.rel (%p271) target = $region20
        $region19: #{tpu_custom_call.1} parent=11 // pred_region
          _
        $region20: #{tpu_custom_call.1} parent=11 // pred_fallthru
          _
        // Predicated region
        $region21: #{tpu_custom_call.1} parent=11 // pred_check
          %p274 = pneg %p112
        $region22: #{tpu_custom_call.1} parent=11 // pred_check_branch
          %276 = sbr.rel (%p274) target = $region24
        $region23: #{tpu_custom_call.1} parent=11 // pred_region
          %s278 = ssub.s32 2048, 2048
          %279 = vsyncadd [#allocation6], %s278
          %s280 = sshll.u32 [#allocation7], 4
          %s281 = int_to_ptr.vmem [resolvable:$true] %s280
          %286 = dma.hbm_to_vmem [thread:$0]  %s3, 2048, %s281, [#allocation6], 128, 128, 8
        $region24: #{tpu_custom_call.1} parent=11 // pred_fallthru
          _
        // Predicated region
        $region25: #{tpu_custom_call.1} parent=11 // pred_check
          %p287 = pneg %p133
        $region26: #{tpu_custom_call.1} parent=11 // pred_check_branch
          %289 = sbr.rel (%p287) target = $region28
        $region27: #{tpu_custom_call.1} parent=11 // pred_region
          _
        $region28: #{tpu_custom_call.1} parent=11 // pred_fallthru
          _
        // Predicated region
        $region29: #{tpu_custom_call.1} parent=11 // pred_check
          %p290 = pneg %p154
        $region30: #{tpu_custom_call.1} parent=11 // pred_check_branch
          %292 = sbr.rel (%p290) target = $region32
        $region31: #{tpu_custom_call.1} parent=11 // pred_region
          %s294 = ssub.s32 2048, 2048
          %295 = vsyncadd [#allocation9], %s294
          %s296 = sshll.u32 [#allocation8], 4
          %s297 = int_to_ptr.vmem [resolvable:$true] %s296
          %302 = dma.hbm_to_vmem [thread:$0]  %s5, 2048, %s297, [#allocation9], 128, 128, 8
        $region32: #{tpu_custom_call.1} parent=11 // pred_fallthru
          _
        // Predicated region
        $region33: #{tpu_custom_call.1} parent=11 // pred_check
          %p303 = pneg %p175
        $region34: #{tpu_custom_call.1} parent=11 // pred_check_branch
          %305 = sbr.rel (%p303) target = $region36
        $region35: #{tpu_custom_call.1} parent=11 // pred_region
          _
        $region36: #{tpu_custom_call.1} parent=11 // pred_fallthru
          _
        // Predicated region
        $region37: #{tpu_custom_call.1} parent=11 // pred_check
          %p306 = pneg %p196
        $region38: #{tpu_custom_call.1} parent=11 // pred_check_branch
          %308 = sbr.rel (%p306) target = $region40
        $region39: #{tpu_custom_call.1} parent=11 // pred_region
          %s310 = ssub.s32 2048, 2048
          %311 = vsyncadd [#allocation9], %s310
          %s312 = sshll.u32 [#allocation10], 4
          %s313 = int_to_ptr.vmem [resolvable:$true] %s312
          %318 = dma.hbm_to_vmem [thread:$0]  %s7, 2048, %s313, [#allocation9], 128, 128, 8
        $region40: #{tpu_custom_call.1} parent=11 // pred_fallthru
          _
        // Predicated region
        $region41: #{tpu_custom_call.1} parent=11 // pred_check
          %p319 = pneg %p217
        $region42: #{tpu_custom_call.1} parent=11 // pred_check_branch
          %321 = sbr.rel (%p319) target = $region44
        $region43: #{tpu_custom_call.1} parent=11 // pred_region
          _
        $region44: #{tpu_custom_call.1} parent=11 // pred_fallthru
          _
      $region12: #{tpu_custom_call.1} parent=5 // pred_fallthru
        _
      %p322 = scmp.lt.s32.totalorder %s23, 4
      // Predicated region
      $region45: #{tpu_custom_call.1} parent=5 // pred_check
        %p323 = pneg %p322
      $region46: #{tpu_custom_call.1} parent=5 // pred_check_branch
        %325 = sbr.rel (%p323) target = $region48
      $region47: #{tpu_custom_call.1} parent=5 // pred_region
        // Predicated region
        $region49: #{tpu_custom_call.1} parent=47 // pred_check
          %p326 = pneg %p43
        $region50: #{tpu_custom_call.1} parent=47 // pred_check_branch
          %328 = sbr.rel (%p326) target = $region52
        $region51: #{tpu_custom_call.1} parent=47 // pred_region
          %s329 = sand.u32 %s33, 1
          %s330 = scalar_lea.sflag [#allocation3], %s329
          %s331 = sand.u32 %s33, 1
          %s332 = smul.addr %s331, 256
          %s333 = scalar_lea.vmem [#allocation2], %s332
          %s334 = smul.u32 32, %s23
          %s336 = ssub.s32 4096, 4096
          %337 = vsyncadd %s330, %s336
          %s338 = smul.addr %s334, 128
          %s339 = scalar_lea.hbm %s0, %s338
          %s340 = sshll.u32 %s333, 4
          %s341 = int_to_ptr.vmem [resolvable:$true] %s340
          %346 = dma.hbm_to_vmem [thread:$0]  %s339, 4096, %s341, %s330, 128, 128, 8
        $region52: #{tpu_custom_call.1} parent=47 // pred_fallthru
          _
      $region48: #{tpu_custom_call.1} parent=5 // pred_fallthru
        _
      %p347 = scmp.le.s32.totalorder 1, %s23
      %p348 = scmp.lt.s32.totalorder %s23, 5
      %p349 = pnand %p347, %p348
      %p350 = pneg %p349
      // Predicated region
      $region53: #{tpu_custom_call.1} parent=5 // pred_check
        _
      $region54: #{tpu_custom_call.1} parent=5 // pred_check_branch
        %352 = sbr.rel (%p349) target = $region56
      $region55: #{tpu_custom_call.1} parent=5 // pred_region
        %s353 = ssub.s32 %s23, 1
        %s354 = sand.u32 %s36, 1
        %s355 = scalar_lea.sflag [#allocation3], %s354
        %s356 = sand.u32 %s36, 1
        %s357 = smul.addr %s356, 256
        %s358 = scalar_lea.vmem [#allocation2], %s357
        // Predicated region
        $region57: #{tpu_custom_call.1} parent=55 // pred_check
          %p359 = pneg %p49
        $region58: #{tpu_custom_call.1} parent=55 // pred_check_branch
          %361 = sbr.rel (%p359) target = $region60
        $region59: #{tpu_custom_call.1} parent=55 // pred_region
          %362 = dma.done %s355, 4096
        $region60: #{tpu_custom_call.1} parent=55 // pred_fallthru
          _
        // Predicated region
        $region61: #{tpu_custom_call.1} parent=55 // pred_check
          %p363 = pneg %p70
        $region62: #{tpu_custom_call.1} parent=55 // pred_check_branch
          %365 = sbr.rel (%p363) target = $region64
        $region63: #{tpu_custom_call.1} parent=55 // pred_region
          %366 = dma.done [#allocation6], 2048
        $region64: #{tpu_custom_call.1} parent=55 // pred_fallthru
          _
        // Predicated region
        $region65: #{tpu_custom_call.1} parent=55 // pred_check
          %p367 = pneg %p112
        $region66: #{tpu_custom_call.1} parent=55 // pred_check_branch
          %369 = sbr.rel (%p367) target = $region68
        $region67: #{tpu_custom_call.1} parent=55 // pred_region
          %370 = dma.done [#allocation6], 2048
        $region68: #{tpu_custom_call.1} parent=55 // pred_fallthru
          _
        // Predicated region
        $region69: #{tpu_custom_call.1} parent=55 // pred_check
          %p371 = pneg %p154
        $region70: #{tpu_custom_call.1} parent=55 // pred_check_branch
          %373 = sbr.rel (%p371) target = $region72
        $region71: #{tpu_custom_call.1} parent=55 // pred_region
          %374 = dma.done [#allocation9], 2048
        $region72: #{tpu_custom_call.1} parent=55 // pred_fallthru
          _
        // Predicated region
        $region73: #{tpu_custom_call.1} parent=55 // pred_check
          %p375 = pneg %p196
        $region74: #{tpu_custom_call.1} parent=55 // pred_check_branch
          %377 = sbr.rel (%p375) target = $region76
        $region75: #{tpu_custom_call.1} parent=55 // pred_region
          %378 = dma.done [#allocation9], 2048
        $region76: #{tpu_custom_call.1} parent=55 // pred_fallthru
          _
        %s379 = sand.u32 %s36, 1
        %s380 = scalar_lea.sflag [#allocation3], %s379
        %s381 = sand.u32 %s36, 1
        %s382 = smul.addr %s381, 256
        %s383 = scalar_lea.vmem [#allocation2], %s382
        %p384 = pneg %p49
        %p385 = pneg %p46
        %p386 = pneg %p70
        %p387 = pneg %p67
        %p388 = pneg %p91
        %p389 = pneg %p88
        %p390 = pneg %p112
        %p391 = pneg %p109
        %p392 = pneg %p133
        %p393 = pneg %p130
        %p394 = pneg %p154
        %p395 = pneg %p151
        %p396 = pneg %p175
        %p397 = pneg %p172
        %p398 = pneg %p196
        %p399 = pneg %p193
        %p400 = pneg %p217
        %p401 = pneg %p214
        %p402 = pneg %p243
        %p403 = pneg %p240
        %s404 = sand.u32 %s230, 1
        %s405 = scalar_lea.sflag [#allocation4], %s404
        %s406 = sand.u32 %s230, 1
        %s407 = smul.addr %s406, 256
        %s408 = scalar_lea.vmem [#allocation11], %s407
        %s409 = smul.u32 32, %s28
        %s410 = smul.u32 32, %s28
        %v411 = vld [vmem:[%s358] sm:$0xff]
        %v412 = vld [vmem:[%s358 + $0x8] sm:$0xff]
        %v413 = vld [vmem:[%s358 + $0x10] sm:$0xff]
        %v414 = vld [vmem:[%s358 + $0x18] sm:$0xff]
        %v415 = vld [vmem:[%s358 + $0x20] sm:$0xff]
        %v416 = vld [vmem:[%s358 + $0x28] sm:$0xff]
        %v417 = vld [vmem:[%s358 + $0x30] sm:$0xff]
        %v418 = vld [vmem:[%s358 + $0x38] sm:$0xff]
        %v419 = vld [vmem:[%s358 + $0x40] sm:$0xff]
        %v420 = vld [vmem:[%s358 + $0x48] sm:$0xff]
        %v421 = vld [vmem:[%s358 + $0x50] sm:$0xff]
        %v422 = vld [vmem:[%s358 + $0x58] sm:$0xff]
        %v423 = vld [vmem:[%s358 + $0x60] sm:$0xff]
        %v424 = vld [vmem:[%s358 + $0x68] sm:$0xff]
        %v425 = vld [vmem:[%s358 + $0x70] sm:$0xff]
        %v426 = vld [vmem:[%s358 + $0x78] sm:$0xff]
        %v427 = vld [vmem:[%s358 + $0x80] sm:$0xff]
        %v428 = vld [vmem:[%s358 + $0x88] sm:$0xff]
        %v429 = vld [vmem:[%s358 + $0x90] sm:$0xff]
        %v430 = vld [vmem:[%s358 + $0x98] sm:$0xff]
        %v431 = vld [vmem:[%s358 + $0xa0] sm:$0xff]
        %v432 = vld [vmem:[%s358 + $0xa8] sm:$0xff]
        %v433 = vld [vmem:[%s358 + $0xb0] sm:$0xff]
        %v434 = vld [vmem:[%s358 + $0xb8] sm:$0xff]
        %v435 = vld [vmem:[%s358 + $0xc0] sm:$0xff]
        %v436 = vld [vmem:[%s358 + $0xc8] sm:$0xff]
        %v437 = vld [vmem:[%s358 + $0xd0] sm:$0xff]
        %v438 = vld [vmem:[%s358 + $0xd8] sm:$0xff]
        %v439 = vld [vmem:[%s358 + $0xe0] sm:$0xff]
        %v440 = vld [vmem:[%s358 + $0xe8] sm:$0xff]
        %v441 = vld [vmem:[%s358 + $0xf0] sm:$0xff]
        %v442 = vld [vmem:[%s358 + $0xf8] sm:$0xff]
        %v443 = vld [vmem:[#allocation5] sm:$0xff]
        %v444 = vld [vmem:[#allocation5 + $0x8] sm:$0xff]
        %v445 = vld [vmem:[#allocation5 + $0x10] sm:$0xff]
        %v446 = vld [vmem:[#allocation5 + $0x18] sm:$0xff]
        %v447 = vld [vmem:[#allocation5 + $0x20] sm:$0xff]
        %v448 = vld [vmem:[#allocation5 + $0x28] sm:$0xff]
        %v449 = vld [vmem:[#allocation5 + $0x30] sm:$0xff]
        %v450 = vld [vmem:[#allocation5 + $0x38] sm:$0xff]
        %v451 = vld [vmem:[#allocation5 + $0x40] sm:$0xff]
        %v452 = vld [vmem:[#allocation5 + $0x48] sm:$0xff]
        %v453 = vld [vmem:[#allocation5 + $0x50] sm:$0xff]
        %v454 = vld [vmem:[#allocation5 + $0x58] sm:$0xff]
        %v455 = vld [vmem:[#allocation5 + $0x60] sm:$0xff]
        %v456 = vld [vmem:[#allocation5 + $0x68] sm:$0xff]
        %v457 = vld [vmem:[#allocation5 + $0x70] sm:$0xff]
        %v458 = vld [vmem:[#allocation5 + $0x78] sm:$0xff]
        %v459 = vld [vmem:[%s2] sm:$0x1]
        %v461 = vlaneseq
        %v462 = vshrl.u32 %v461, 7
        %v463 = vsub.s32 0, %v462
        %v464 = vrot.slane %v459, %v463
        %466 = vmatprep.subr.mxu0 0.0
        %467 = vmatpush1.msra.mxu0 %v458
        %468 = vmatprep.subr.mxu0 0.0
        %469 = vmatpush1.msra.mxu0 %v457
        %470 = vmatprep.subr.mxu0 0.0
        %471 = vmatpush1.msra.mxu0 %v456
        %472 = vmatprep.subr.mxu0 0.0
        %473 = vmatpush1.msra.mxu0 %v455
        %474 = vmatprep.subr.mxu0 0.0
        %475 = vmatpush1.msra.mxu0 %v454
        %476 = vmatprep.subr.mxu0 0.0
        %477 = vmatpush1.msra.mxu0 %v453
        %478 = vmatprep.subr.mxu0 0.0
        %479 = vmatpush1.msra.mxu0 %v452
        %480 = vmatprep.subr.mxu0 0.0
        %481 = vmatpush1.msra.mxu0 %v451
        %482 = vmatprep.subr.mxu0 0.0
        %483 = vmatpush1.msra.mxu0 %v450
        %484 = vmatprep.subr.mxu0 0.0
        %485 = vmatpush1.msra.mxu0 %v449
        %486 = vmatprep.subr.mxu0 0.0
        %487 = vmatpush1.msra.mxu0 %v448
        %488 = vmatprep.subr.mxu0 0.0
        %489 = vmatpush1.msra.mxu0 %v447
        %490 = vmatprep.subr.mxu0 0.0
        %491 = vmatpush1.msra.mxu0 %v446
        %492 = vmatprep.subr.mxu0 0.0
        %493 = vmatpush1.msra.mxu0 %v445
        %494 = vmatprep.subr.mxu0 0.0
        %495 = vmatpush1.msra.mxu0 %v444
        %496 = vmatprep.subr.mxu0 0.0
        %497 = vmatpush1.msra.mxu0 %v443
        %498 = vmatprep.subr.mxu0 0.0
        %499 = vmatpush2.msra.mxu0 0.0
        %500 = vmatprep.subr.mxu0 0.0
        %501 = vmatpush2.msra.mxu0 0.0
        %502 = vmatprep.subr.mxu0 0.0
        %503 = vmatpush2.msra.mxu0 0.0
        %504 = vmatprep.subr.mxu0 0.0
        %505 = vmatpush2.msra.mxu0 0.0
        %506 = vmatprep.subr.mxu0 0.0
        %507 = vmatpush2.msra.mxu0 0.0
        %508 = vmatprep.subr.mxu0 0.0
        %509 = vmatpush2.msra.mxu0 0.0
        %510 = vmatprep.subr.mxu0 0.0
        %511 = vmatpush2.msra.mxu0 0.0
        %512 = vmatprep.subr.mxu0 0.0
        %513 = vmatpush2.msra.mxu0 0.0
        %514 = vmatprep.subr.mxu0 0.0
        %515 = vmatpush2.msra.mxu0 0.0
        %516 = vmatprep.subr.mxu0 0.0
        %517 = vmatpush2.msra.mxu0 0.0
        %518 = vmatprep.subr.mxu0 0.0
        %519 = vmatpush2.msra.mxu0 0.0
        %520 = vmatprep.subr.mxu0 0.0
        %521 = vmatpush2.msra.mxu0 0.0
        %522 = vmatprep.subr.mxu0 0.0
        %523 = vmatpush2.msra.mxu0 0.0
        %524 = vmatprep.subr.mxu0 0.0
        %525 = vmatpush2.msra.mxu0 0.0
        %526 = vmatprep.subr.mxu0 0.0
        %527 = vmatpush2.msra.mxu0 0.0
        %528 = vmatprep.subr.mxu0 0.0
        %529 = vmatpush2.msra.mxu0 0.0
        %530 = vmatprep.mubr.f32.mxu0 0.0
        %531 = vmatmul.mubr.f32.gmra.mxu0 %v411
        %v532 = vpop.f32.mrf.mxu0
        %v533 = vadd.f32 %v464, %v532
        %v534 = vpop.f32.mrf.mxu0
        %535 = vmatprep.mubr.f32.mxu0 0.0
        %536 = vmatmul.mubr.f32.gmra.mxu0 %v412
        %v537 = vpop.f32.mrf.mxu0
        %v538 = vadd.f32 %v464, %v537
        %v539 = vpop.f32.mrf.mxu0
        %540 = vmatprep.mubr.f32.mxu0 0.0
        %541 = vmatmul.mubr.f32.gmra.mxu0 %v413
        %v542 = vpop.f32.mrf.mxu0
        %v543 = vadd.f32 %v464, %v542
        %v544 = vpop.f32.mrf.mxu0
        %545 = vmatprep.mubr.f32.mxu0 0.0
        %546 = vmatmul.mubr.f32.gmra.mxu0 %v414
        %v547 = vpop.f32.mrf.mxu0
        %v548 = vadd.f32 %v464, %v547
        %v549 = vpop.f32.mrf.mxu0
        %550 = vmatprep.mubr.f32.mxu0 0.0
        %551 = vmatmul.mubr.f32.gmra.mxu0 %v415
        %v552 = vpop.f32.mrf.mxu0
        %v553 = vadd.f32 %v464, %v552
        %v554 = vpop.f32.mrf.mxu0
        %555 = vmatprep.mubr.f32.mxu0 0.0
        %556 = vmatmul.mubr.f32.gmra.mxu0 %v416
        %v557 = vpop.f32.mrf.mxu0
        %v558 = vadd.f32 %v464, %v557
        %v559 = vpop.f32.mrf.mxu0
        %560 = vmatprep.mubr.f32.mxu0 0.0
        %561 = vmatmul.mubr.f32.gmra.mxu0 %v417
        %v562 = vpop.f32.mrf.mxu0
        %v563 = vadd.f32 %v464, %v562
        %v564 = vpop.f32.mrf.mxu0
        %565 = vmatprep.mubr.f32.mxu0 0.0
        %566 = vmatmul.mubr.f32.gmra.mxu0 %v418
        %v567 = vpop.f32.mrf.mxu0
        %v568 = vadd.f32 %v464, %v567
        %v569 = vpop.f32.mrf.mxu0
        %570 = vmatprep.mubr.f32.mxu0 0.0
        %571 = vmatmul.mubr.f32.gmra.mxu0 %v419
        %v572 = vpop.f32.mrf.mxu0
        %v573 = vadd.f32 %v464, %v572
        %v574 = vpop.f32.mrf.mxu0
        %575 = vmatprep.mubr.f32.mxu0 0.0
        %576 = vmatmul.mubr.f32.gmra.mxu0 %v420
        %v577 = vpop.f32.mrf.mxu0
        %v578 = vadd.f32 %v464, %v577
        %v579 = vpop.f32.mrf.mxu0
        %580 = vmatprep.mubr.f32.mxu0 0.0
        %581 = vmatmul.mubr.f32.gmra.mxu0 %v421
        %v582 = vpop.f32.mrf.mxu0
        %v583 = vadd.f32 %v464, %v582
        %v584 = vpop.f32.mrf.mxu0
        %585 = vmatprep.mubr.f32.mxu0 0.0
        %586 = vmatmul.mubr.f32.gmra.mxu0 %v422
        %v587 = vpop.f32.mrf.mxu0
        %v588 = vadd.f32 %v464, %v587
        %v589 = vpop.f32.mrf.mxu0
        %590 = vmatprep.mubr.f32.mxu0 0.0
        %591 = vmatmul.mubr.f32.gmra.mxu0 %v423
        %v592 = vpop.f32.mrf.mxu0
        %v593 = vadd.f32 %v464, %v592
        %v594 = vpop.f32.mrf.mxu0
        %595 = vmatprep.mubr.f32.mxu0 0.0
        %596 = vmatmul.mubr.f32.gmra.mxu0 %v424
        %v597 = vpop.f32.mrf.mxu0
        %v598 = vadd.f32 %v464, %v597
        %v599 = vpop.f32.mrf.mxu0
        %600 = vmatprep.mubr.f32.mxu0 0.0
        %601 = vmatmul.mubr.f32.gmra.mxu0 %v425
        %v602 = vpop.f32.mrf.mxu0
        %v603 = vadd.f32 %v464, %v602
        %v604 = vpop.f32.mrf.mxu0
        %605 = vmatprep.mubr.f32.mxu0 0.0
        %606 = vmatmul.mubr.f32.gmra.mxu0 %v426
        %v607 = vpop.f32.mrf.mxu0
        %v608 = vadd.f32 %v464, %v607
        %v609 = vpop.f32.mrf.mxu0
        %610 = vmatprep.mubr.f32.mxu0 0.0
        %611 = vmatmul.mubr.f32.gmra.mxu0 %v427
        %v612 = vpop.f32.mrf.mxu0
        %v613 = vadd.f32 %v464, %v612
        %v614 = vpop.f32.mrf.mxu0
        %615 = vmatprep.mubr.f32.mxu0 0.0
        %616 = vmatmul.mubr.f32.gmra.mxu0 %v428
        %v617 = vpop.f32.mrf.mxu0
        %v618 = vadd.f32 %v464, %v617
        %v619 = vpop.f32.mrf.mxu0
        %620 = vmatprep.mubr.f32.mxu0 0.0
        %621 = vmatmul.mubr.f32.gmra.mxu0 %v429
        %v622 = vpop.f32.mrf.mxu0
        %v623 = vadd.f32 %v464, %v622
        %v624 = vpop.f32.mrf.mxu0
        %625 = vmatprep.mubr.f32.mxu0 0.0
        %626 = vmatmul.mubr.f32.gmra.mxu0 %v430
        %v627 = vpop.f32.mrf.mxu0
        %v628 = vadd.f32 %v464, %v627
        %v629 = vpop.f32.mrf.mxu0
        %630 = vmatprep.mubr.f32.mxu0 0.0
        %631 = vmatmul.mubr.f32.gmra.mxu0 %v431
        %v632 = vpop.f32.mrf.mxu0
        %v633 = vadd.f32 %v464, %v632
        %v634 = vpop.f32.mrf.mxu0
        %635 = vmatprep.mubr.f32.mxu0 0.0
        %636 = vmatmul.mubr.f32.gmra.mxu0 %v432
        %v637 = vpop.f32.mrf.mxu0
        %v638 = vadd.f32 %v464, %v637
        %v639 = vpop.f32.mrf.mxu0
        %640 = vmatprep.mubr.f32.mxu0 0.0
        %641 = vmatmul.mubr.f32.gmra.mxu0 %v433
        %v642 = vpop.f32.mrf.mxu0
        %v643 = vadd.f32 %v464, %v642
        %v644 = vpop.f32.mrf.mxu0
        %645 = vmatprep.mubr.f32.mxu0 0.0
        %646 = vmatmul.mubr.f32.gmra.mxu0 %v434
        %v647 = vpop.f32.mrf.mxu0
        %v648 = vadd.f32 %v464, %v647
        %v649 = vpop.f32.mrf.mxu0
        %650 = vmatprep.mubr.f32.mxu0 0.0
        %651 = vmatmul.mubr.f32.gmra.mxu0 %v435
        %v652 = vpop.f32.mrf.mxu0
        %v653 = vadd.f32 %v464, %v652
        %v654 = vpop.f32.mrf.mxu0
        %655 = vmatprep.mubr.f32.mxu0 0.0
        %656 = vmatmul.mubr.f32.gmra.mxu0 %v436
        %v657 = vpop.f32.mrf.mxu0
        %v658 = vadd.f32 %v464, %v657
        %v659 = vpop.f32.mrf.mxu0
        %660 = vmatprep.mubr.f32.mxu0 0.0
        %661 = vmatmul.mubr.f32.gmra.mxu0 %v437
        %v662 = vpop.f32.mrf.mxu0
        %v663 = vadd.f32 %v464, %v662
        %v664 = vpop.f32.mrf.mxu0
        %665 = vmatprep.mubr.f32.mxu0 0.0
        %666 = vmatmul.mubr.f32.gmra.mxu0 %v438
        %v667 = vpop.f32.mrf.mxu0
        %v668 = vadd.f32 %v464, %v667
        %v669 = vpop.f32.mrf.mxu0
        %670 = vmatprep.mubr.f32.mxu0 0.0
        %671 = vmatmul.mubr.f32.gmra.mxu0 %v439
        %v672 = vpop.f32.mrf.mxu0
        %v673 = vadd.f32 %v464, %v672
        %v674 = vpop.f32.mrf.mxu0
        %675 = vmatprep.mubr.f32.mxu0 0.0
        %676 = vmatmul.mubr.f32.gmra.mxu0 %v440
        %v677 = vpop.f32.mrf.mxu0
        %v678 = vadd.f32 %v464, %v677
        %v679 = vpop.f32.mrf.mxu0
        %680 = vmatprep.mubr.f32.mxu0 0.0
        %681 = vmatmul.mubr.f32.gmra.mxu0 %v441
        %v682 = vpop.f32.mrf.mxu0
        %v683 = vadd.f32 %v464, %v682
        %v684 = vpop.f32.mrf.mxu0
        %685 = vmatprep.mubr.f32.mxu0 0.0
        %686 = vmatmul.mubr.f32.gmra.mxu0 %v442
        %v687 = vpop.f32.mrf.mxu0
        %v688 = vadd.f32 %v464, %v687
        %v689 = vpop.f32.mrf.mxu0
        %690 = vdwg.mxu0
        %v691 = vld [vmem:[#allocation7] sm:$0xff]
        %v692 = vld [vmem:[#allocation7 + $0x8] sm:$0xff]
        %v693 = vld [vmem:[#allocation7 + $0x10] sm:$0xff]
        %v694 = vld [vmem:[#allocation7 + $0x18] sm:$0xff]
        %v695 = vld [vmem:[#allocation7 + $0x20] sm:$0xff]
        %v696 = vld [vmem:[#allocation7 + $0x28] sm:$0xff]
        %v697 = vld [vmem:[#allocation7 + $0x30] sm:$0xff]
        %v698 = vld [vmem:[#allocation7 + $0x38] sm:$0xff]
        %v699 = vld [vmem:[#allocation7 + $0x40] sm:$0xff]
        %v700 = vld [vmem:[#allocation7 + $0x48] sm:$0xff]
        %v701 = vld [vmem:[#allocation7 + $0x50] sm:$0xff]
        %v702 = vld [vmem:[#allocation7 + $0x58] sm:$0xff]
        %v703 = vld [vmem:[#allocation7 + $0x60] sm:$0xff]
        %v704 = vld [vmem:[#allocation7 + $0x68] sm:$0xff]
        %v705 = vld [vmem:[#allocation7 + $0x70] sm:$0xff]
        %v706 = vld [vmem:[#allocation7 + $0x78] sm:$0xff]
        %v707 = vld [vmem:[%s4] sm:$0x1]
        %v709 = vlaneseq
        %v710 = vshrl.u32 %v709, 7
        %v711 = vsub.s32 0, %v710
        %v712 = vrot.slane %v707, %v711
        %714 = vmatprep.subr.mxu0 0.0
        %715 = vmatpush1.msra.mxu0 %v706
        %716 = vmatprep.subr.mxu0 0.0
        %717 = vmatpush1.msra.mxu0 %v705
        %718 = vmatprep.subr.mxu0 0.0
        %719 = vmatpush1.msra.mxu0 %v704
        %720 = vmatprep.subr.mxu0 0.0
        %721 = vmatpush1.msra.mxu0 %v703
        %722 = vmatprep.subr.mxu0 0.0
        %723 = vmatpush1.msra.mxu0 %v702
        %724 = vmatprep.subr.mxu0 0.0
        %725 = vmatpush1.msra.mxu0 %v701
        %726 = vmatprep.subr.mxu0 0.0
        %727 = vmatpush1.msra.mxu0 %v700
        %728 = vmatprep.subr.mxu0 0.0
        %729 = vmatpush1.msra.mxu0 %v699
        %730 = vmatprep.subr.mxu0 0.0
        %731 = vmatpush1.msra.mxu0 %v698
        %732 = vmatprep.subr.mxu0 0.0
        %733 = vmatpush1.msra.mxu0 %v697
        %734 = vmatprep.subr.mxu0 0.0
        %735 = vmatpush1.msra.mxu0 %v696
        %736 = vmatprep.subr.mxu0 0.0
        %737 = vmatpush1.msra.mxu0 %v695
        %738 = vmatprep.subr.mxu0 0.0
        %739 = vmatpush1.msra.mxu0 %v694
        %740 = vmatprep.subr.mxu0 0.0
        %741 = vmatpush1.msra.mxu0 %v693
        %742 = vmatprep.subr.mxu0 0.0
        %743 = vmatpush1.msra.mxu0 %v692
        %744 = vmatprep.subr.mxu0 0.0
        %745 = vmatpush1.msra.mxu0 %v691
        %746 = vmatprep.subr.mxu0 0.0
        %747 = vmatpush2.msra.mxu0 0.0
        %748 = vmatprep.subr.mxu0 0.0
        %749 = vmatpush2.msra.mxu0 0.0
        %750 = vmatprep.subr.mxu0 0.0
        %751 = vmatpush2.msra.mxu0 0.0
        %752 = vmatprep.subr.mxu0 0.0
        %753 = vmatpush2.msra.mxu0 0.0
        %754 = vmatprep.subr.mxu0 0.0
        %755 = vmatpush2.msra.mxu0 0.0
        %756 = vmatprep.subr.mxu0 0.0
        %757 = vmatpush2.msra.mxu0 0.0
        %758 = vmatprep.subr.mxu0 0.0
        %759 = vmatpush2.msra.mxu0 0.0
        %760 = vmatprep.subr.mxu0 0.0
        %761 = vmatpush2.msra.mxu0 0.0
        %762 = vmatprep.subr.mxu0 0.0
        %763 = vmatpush2.msra.mxu0 0.0
        %764 = vmatprep.subr.mxu0 0.0
        %765 = vmatpush2.msra.mxu0 0.0
        %766 = vmatprep.subr.mxu0 0.0
        %767 = vmatpush2.msra.mxu0 0.0
        %768 = vmatprep.subr.mxu0 0.0
        %769 = vmatpush2.msra.mxu0 0.0
        %770 = vmatprep.subr.mxu0 0.0
        %771 = vmatpush2.msra.mxu0 0.0
        %772 = vmatprep.subr.mxu0 0.0
        %773 = vmatpush2.msra.mxu0 0.0
        %774 = vmatprep.subr.mxu0 0.0
        %775 = vmatpush2.msra.mxu0 0.0
        %776 = vmatprep.subr.mxu0 0.0
        %777 = vmatpush2.msra.mxu0 0.0
        %778 = vmatprep.mubr.f32.mxu0 0.0
        %779 = vmatmul.mubr.f32.gmra.mxu0 %v533
        %v780 = vpop.f32.mrf.mxu0
        %v781 = vadd.f32 %v712, %v780
        %v782 = vpop.f32.mrf.mxu0
        %783 = vmatprep.mubr.f32.mxu0 0.0
        %784 = vmatmul.mubr.f32.gmra.mxu0 %v538
        %v785 = vpop.f32.mrf.mxu0
        %v786 = vadd.f32 %v712, %v785
        %v787 = vpop.f32.mrf.mxu0
        %788 = vmatprep.mubr.f32.mxu0 0.0
        %789 = vmatmul.mubr.f32.gmra.mxu0 %v543
        %v790 = vpop.f32.mrf.mxu0
        %v791 = vadd.f32 %v712, %v790
        %v792 = vpop.f32.mrf.mxu0
        %793 = vmatprep.mubr.f32.mxu0 0.0
        %794 = vmatmul.mubr.f32.gmra.mxu0 %v548
        %v795 = vpop.f32.mrf.mxu0
        %v796 = vadd.f32 %v712, %v795
        %v797 = vpop.f32.mrf.mxu0
        %798 = vmatprep.mubr.f32.mxu0 0.0
        %799 = vmatmul.mubr.f32.gmra.mxu0 %v553
        %v800 = vpop.f32.mrf.mxu0
        %v801 = vadd.f32 %v712, %v800
        %v802 = vpop.f32.mrf.mxu0
        %803 = vmatprep.mubr.f32.mxu0 0.0
        %804 = vmatmul.mubr.f32.gmra.mxu0 %v558
        %v805 = vpop.f32.mrf.mxu0
        %v806 = vadd.f32 %v712, %v805
        %v807 = vpop.f32.mrf.mxu0
        %808 = vmatprep.mubr.f32.mxu0 0.0
        %809 = vmatmul.mubr.f32.gmra.mxu0 %v563
        %v810 = vpop.f32.mrf.mxu0
        %v811 = vadd.f32 %v712, %v810
        %v812 = vpop.f32.mrf.mxu0
        %813 = vmatprep.mubr.f32.mxu0 0.0
        %814 = vmatmul.mubr.f32.gmra.mxu0 %v568
        %v815 = vpop.f32.mrf.mxu0
        %v816 = vadd.f32 %v712, %v815
        %v817 = vpop.f32.mrf.mxu0
        %818 = vmatprep.mubr.f32.mxu0 0.0
        %819 = vmatmul.mubr.f32.gmra.mxu0 %v573
        %v820 = vpop.f32.mrf.mxu0
        %v821 = vadd.f32 %v712, %v820
        %v822 = vpop.f32.mrf.mxu0
        %823 = vmatprep.mubr.f32.mxu0 0.0
        %824 = vmatmul.mubr.f32.gmra.mxu0 %v578
        %v825 = vpop.f32.mrf.mxu0
        %v826 = vadd.f32 %v712, %v825
        %v827 = vpop.f32.mrf.mxu0
        %828 = vmatprep.mubr.f32.mxu0 0.0
        %829 = vmatmul.mubr.f32.gmra.mxu0 %v583
        %v830 = vpop.f32.mrf.mxu0
        %v831 = vadd.f32 %v712, %v830
        %v832 = vpop.f32.mrf.mxu0
        %833 = vmatprep.mubr.f32.mxu0 0.0
        %834 = vmatmul.mubr.f32.gmra.mxu0 %v588
        %v835 = vpop.f32.mrf.mxu0
        %v836 = vadd.f32 %v712, %v835
        %v837 = vpop.f32.mrf.mxu0
        %838 = vmatprep.mubr.f32.mxu0 0.0
        %839 = vmatmul.mubr.f32.gmra.mxu0 %v593
        %v840 = vpop.f32.mrf.mxu0
        %v841 = vadd.f32 %v712, %v840
        %v842 = vpop.f32.mrf.mxu0
        %843 = vmatprep.mubr.f32.mxu0 0.0
        %844 = vmatmul.mubr.f32.gmra.mxu0 %v598
        %v845 = vpop.f32.mrf.mxu0
        %v846 = vadd.f32 %v712, %v845
        %v847 = vpop.f32.mrf.mxu0
        %848 = vmatprep.mubr.f32.mxu0 0.0
        %849 = vmatmul.mubr.f32.gmra.mxu0 %v603
        %v850 = vpop.f32.mrf.mxu0
        %v851 = vadd.f32 %v712, %v850
        %v852 = vpop.f32.mrf.mxu0
        %853 = vmatprep.mubr.f32.mxu0 0.0
        %854 = vmatmul.mubr.f32.gmra.mxu0 %v608
        %v855 = vpop.f32.mrf.mxu0
        %v856 = vadd.f32 %v712, %v855
        %v857 = vpop.f32.mrf.mxu0
        %858 = vmatprep.mubr.f32.mxu0 0.0
        %859 = vmatmul.mubr.f32.gmra.mxu0 %v613
        %v860 = vpop.f32.mrf.mxu0
        %v861 = vadd.f32 %v712, %v860
        %v862 = vpop.f32.mrf.mxu0
        %863 = vmatprep.mubr.f32.mxu0 0.0
        %864 = vmatmul.mubr.f32.gmra.mxu0 %v618
        %v865 = vpop.f32.mrf.mxu0
        %v866 = vadd.f32 %v712, %v865
        %v867 = vpop.f32.mrf.mxu0
        %868 = vmatprep.mubr.f32.mxu0 0.0
        %869 = vmatmul.mubr.f32.gmra.mxu0 %v623
        %v870 = vpop.f32.mrf.mxu0
        %v871 = vadd.f32 %v712, %v870
        %v872 = vpop.f32.mrf.mxu0
        %873 = vmatprep.mubr.f32.mxu0 0.0
        %874 = vmatmul.mubr.f32.gmra.mxu0 %v628
        %v875 = vpop.f32.mrf.mxu0
        %v876 = vadd.f32 %v712, %v875
        %v877 = vpop.f32.mrf.mxu0
        %878 = vmatprep.mubr.f32.mxu0 0.0
        %879 = vmatmul.mubr.f32.gmra.mxu0 %v633
        %v880 = vpop.f32.mrf.mxu0
        %v881 = vadd.f32 %v712, %v880
        %v882 = vpop.f32.mrf.mxu0
        %883 = vmatprep.mubr.f32.mxu0 0.0
        %884 = vmatmul.mubr.f32.gmra.mxu0 %v638
        %v885 = vpop.f32.mrf.mxu0
        %v886 = vadd.f32 %v712, %v885
        %v887 = vpop.f32.mrf.mxu0
        %888 = vmatprep.mubr.f32.mxu0 0.0
        %889 = vmatmul.mubr.f32.gmra.mxu0 %v643
        %v890 = vpop.f32.mrf.mxu0
        %v891 = vadd.f32 %v712, %v890
        %v892 = vpop.f32.mrf.mxu0
        %893 = vmatprep.mubr.f32.mxu0 0.0
        %894 = vmatmul.mubr.f32.gmra.mxu0 %v648
        %v895 = vpop.f32.mrf.mxu0
        %v896 = vadd.f32 %v712, %v895
        %v897 = vpop.f32.mrf.mxu0
        %898 = vmatprep.mubr.f32.mxu0 0.0
        %899 = vmatmul.mubr.f32.gmra.mxu0 %v653
        %v900 = vpop.f32.mrf.mxu0
        %v901 = vadd.f32 %v712, %v900
        %v902 = vpop.f32.mrf.mxu0
        %903 = vmatprep.mubr.f32.mxu0 0.0
        %904 = vmatmul.mubr.f32.gmra.mxu0 %v658
        %v905 = vpop.f32.mrf.mxu0
        %v906 = vadd.f32 %v712, %v905
        %v907 = vpop.f32.mrf.mxu0
        %908 = vmatprep.mubr.f32.mxu0 0.0
        %909 = vmatmul.mubr.f32.gmra.mxu0 %v663
        %v910 = vpop.f32.mrf.mxu0
        %v911 = vadd.f32 %v712, %v910
        %v912 = vpop.f32.mrf.mxu0
        %913 = vmatprep.mubr.f32.mxu0 0.0
        %914 = vmatmul.mubr.f32.gmra.mxu0 %v668
        %v915 = vpop.f32.mrf.mxu0
        %v916 = vadd.f32 %v712, %v915
        %v917 = vpop.f32.mrf.mxu0
        %918 = vmatprep.mubr.f32.mxu0 0.0
        %919 = vmatmul.mubr.f32.gmra.mxu0 %v673
        %v920 = vpop.f32.mrf.mxu0
        %v921 = vadd.f32 %v712, %v920
        %v922 = vpop.f32.mrf.mxu0
        %923 = vmatprep.mubr.f32.mxu0 0.0
        %924 = vmatmul.mubr.f32.gmra.mxu0 %v678
        %v925 = vpop.f32.mrf.mxu0
        %v926 = vadd.f32 %v712, %v925
        %v927 = vpop.f32.mrf.mxu0
        %928 = vmatprep.mubr.f32.mxu0 0.0
        %929 = vmatmul.mubr.f32.gmra.mxu0 %v683
        %v930 = vpop.f32.mrf.mxu0
        %v931 = vadd.f32 %v712, %v930
        %v932 = vpop.f32.mrf.mxu0
        %933 = vmatprep.mubr.f32.mxu0 0.0
        %934 = vmatmul.mubr.f32.gmra.mxu0 %v688
        %v935 = vpop.f32.mrf.mxu0
        %v936 = vadd.f32 %v712, %v935
        %v937 = vpop.f32.mrf.mxu0
        %938 = vdwg.mxu0
        %v939 = vld [vmem:[#allocation8] sm:$0xff]
        %v940 = vld [vmem:[#allocation8 + $0x8] sm:$0xff]
        %v941 = vld [vmem:[#allocation8 + $0x10] sm:$0xff]
        %v942 = vld [vmem:[#allocation8 + $0x18] sm:$0xff]
        %v943 = vld [vmem:[#allocation8 + $0x20] sm:$0xff]
        %v944 = vld [vmem:[#allocation8 + $0x28] sm:$0xff]
        %v945 = vld [vmem:[#allocation8 + $0x30] sm:$0xff]
        %v946 = vld [vmem:[#allocation8 + $0x38] sm:$0xff]
        %v947 = vld [vmem:[#allocation8 + $0x40] sm:$0xff]
        %v948 = vld [vmem:[#allocation8 + $0x48] sm:$0xff]
        %v949 = vld [vmem:[#allocation8 + $0x50] sm:$0xff]
        %v950 = vld [vmem:[#allocation8 + $0x58] sm:$0xff]
        %v951 = vld [vmem:[#allocation8 + $0x60] sm:$0xff]
        %v952 = vld [vmem:[#allocation8 + $0x68] sm:$0xff]
        %v953 = vld [vmem:[#allocation8 + $0x70] sm:$0xff]
        %v954 = vld [vmem:[#allocation8 + $0x78] sm:$0xff]
        %v955 = vld [vmem:[%s6] sm:$0x1]
        %v957 = vlaneseq
        %v958 = vshrl.u32 %v957, 7
        %v959 = vsub.s32 0, %v958
        %v960 = vrot.slane %v955, %v959
        %962 = vmatprep.subr.mxu0 0.0
        %963 = vmatpush1.msra.mxu0 %v954
        %964 = vmatprep.subr.mxu0 0.0
        %965 = vmatpush1.msra.mxu0 %v953
        %966 = vmatprep.subr.mxu0 0.0
        %967 = vmatpush1.msra.mxu0 %v952
        %968 = vmatprep.subr.mxu0 0.0
        %969 = vmatpush1.msra.mxu0 %v951
        %970 = vmatprep.subr.mxu0 0.0
        %971 = vmatpush1.msra.mxu0 %v950
        %972 = vmatprep.subr.mxu0 0.0
        %973 = vmatpush1.msra.mxu0 %v949
        %974 = vmatprep.subr.mxu0 0.0
        %975 = vmatpush1.msra.mxu0 %v948
        %976 = vmatprep.subr.mxu0 0.0
        %977 = vmatpush1.msra.mxu0 %v947
        %978 = vmatprep.subr.mxu0 0.0
        %979 = vmatpush1.msra.mxu0 %v946
        %980 = vmatprep.subr.mxu0 0.0
        %981 = vmatpush1.msra.mxu0 %v945
        %982 = vmatprep.subr.mxu0 0.0
        %983 = vmatpush1.msra.mxu0 %v944
        %984 = vmatprep.subr.mxu0 0.0
        %985 = vmatpush1.msra.mxu0 %v943
        %986 = vmatprep.subr.mxu0 0.0
        %987 = vmatpush1.msra.mxu0 %v942
        %988 = vmatprep.subr.mxu0 0.0
        %989 = vmatpush1.msra.mxu0 %v941
        %990 = vmatprep.subr.mxu0 0.0
        %991 = vmatpush1.msra.mxu0 %v940
        %992 = vmatprep.subr.mxu0 0.0
        %993 = vmatpush1.msra.mxu0 %v939
        %994 = vmatprep.subr.mxu0 0.0
        %995 = vmatpush2.msra.mxu0 0.0
        %996 = vmatprep.subr.mxu0 0.0
        %997 = vmatpush2.msra.mxu0 0.0
        %998 = vmatprep.subr.mxu0 0.0
        %999 = vmatpush2.msra.mxu0 0.0
        %1000 = vmatprep.subr.mxu0 0.0
        %1001 = vmatpush2.msra.mxu0 0.0
        %1002 = vmatprep.subr.mxu0 0.0
        %1003 = vmatpush2.msra.mxu0 0.0
        %1004 = vmatprep.subr.mxu0 0.0
        %1005 = vmatpush2.msra.mxu0 0.0
        %1006 = vmatprep.subr.mxu0 0.0
        %1007 = vmatpush2.msra.mxu0 0.0
        %1008 = vmatprep.subr.mxu0 0.0
        %1009 = vmatpush2.msra.mxu0 0.0
        %1010 = vmatprep.subr.mxu0 0.0
        %1011 = vmatpush2.msra.mxu0 0.0
        %1012 = vmatprep.subr.mxu0 0.0
        %1013 = vmatpush2.msra.mxu0 0.0
        %1014 = vmatprep.subr.mxu0 0.0
        %1015 = vmatpush2.msra.mxu0 0.0
        %1016 = vmatprep.subr.mxu0 0.0
        %1017 = vmatpush2.msra.mxu0 0.0
        %1018 = vmatprep.subr.mxu0 0.0
        %1019 = vmatpush2.msra.mxu0 0.0
        %1020 = vmatprep.subr.mxu0 0.0
        %1021 = vmatpush2.msra.mxu0 0.0
        %1022 = vmatprep.subr.mxu0 0.0
        %1023 = vmatpush2.msra.mxu0 0.0
        %1024 = vmatprep.subr.mxu0 0.0
        %1025 = vmatpush2.msra.mxu0 0.0
        %1026 = vmatprep.mubr.f32.mxu0 0.0
        %1027 = vmatmul.mubr.f32.gmra.mxu0 %v781
        %v1028 = vpop.f32.mrf.mxu0
        %v1029 = vadd.f32 %v960, %v1028
        %v1030 = vpop.f32.mrf.mxu0
        %1031 = vmatprep.mubr.f32.mxu0 0.0
        %1032 = vmatmul.mubr.f32.gmra.mxu0 %v786
        %v1033 = vpop.f32.mrf.mxu0
        %v1034 = vadd.f32 %v960, %v1033
        %v1035 = vpop.f32.mrf.mxu0
        %1036 = vmatprep.mubr.f32.mxu0 0.0
        %1037 = vmatmul.mubr.f32.gmra.mxu0 %v791
        %v1038 = vpop.f32.mrf.mxu0
        %v1039 = vadd.f32 %v960, %v1038
        %v1040 = vpop.f32.mrf.mxu0
        %1041 = vmatprep.mubr.f32.mxu0 0.0
        %1042 = vmatmul.mubr.f32.gmra.mxu0 %v796
        %v1043 = vpop.f32.mrf.mxu0
        %v1044 = vadd.f32 %v960, %v1043
        %v1045 = vpop.f32.mrf.mxu0
        %1046 = vmatprep.mubr.f32.mxu0 0.0
        %1047 = vmatmul.mubr.f32.gmra.mxu0 %v801
        %v1048 = vpop.f32.mrf.mxu0
        %v1049 = vadd.f32 %v960, %v1048
        %v1050 = vpop.f32.mrf.mxu0
        %1051 = vmatprep.mubr.f32.mxu0 0.0
        %1052 = vmatmul.mubr.f32.gmra.mxu0 %v806
        %v1053 = vpop.f32.mrf.mxu0
        %v1054 = vadd.f32 %v960, %v1053
        %v1055 = vpop.f32.mrf.mxu0
        %1056 = vmatprep.mubr.f32.mxu0 0.0
        %1057 = vmatmul.mubr.f32.gmra.mxu0 %v811
        %v1058 = vpop.f32.mrf.mxu0
        %v1059 = vadd.f32 %v960, %v1058
        %v1060 = vpop.f32.mrf.mxu0
        %1061 = vmatprep.mubr.f32.mxu0 0.0
        %1062 = vmatmul.mubr.f32.gmra.mxu0 %v816
        %v1063 = vpop.f32.mrf.mxu0
        %v1064 = vadd.f32 %v960, %v1063
        %v1065 = vpop.f32.mrf.mxu0
        %1066 = vmatprep.mubr.f32.mxu0 0.0
        %1067 = vmatmul.mubr.f32.gmra.mxu0 %v821
        %v1068 = vpop.f32.mrf.mxu0
        %v1069 = vadd.f32 %v960, %v1068
        %v1070 = vpop.f32.mrf.mxu0
        %1071 = vmatprep.mubr.f32.mxu0 0.0
        %1072 = vmatmul.mubr.f32.gmra.mxu0 %v826
        %v1073 = vpop.f32.mrf.mxu0
        %v1074 = vadd.f32 %v960, %v1073
        %v1075 = vpop.f32.mrf.mxu0
        %1076 = vmatprep.mubr.f32.mxu0 0.0
        %1077 = vmatmul.mubr.f32.gmra.mxu0 %v831
        %v1078 = vpop.f32.mrf.mxu0
        %v1079 = vadd.f32 %v960, %v1078
        %v1080 = vpop.f32.mrf.mxu0
        %1081 = vmatprep.mubr.f32.mxu0 0.0
        %1082 = vmatmul.mubr.f32.gmra.mxu0 %v836
        %v1083 = vpop.f32.mrf.mxu0
        %v1084 = vadd.f32 %v960, %v1083
        %v1085 = vpop.f32.mrf.mxu0
        %1086 = vmatprep.mubr.f32.mxu0 0.0
        %1087 = vmatmul.mubr.f32.gmra.mxu0 %v841
        %v1088 = vpop.f32.mrf.mxu0
        %v1089 = vadd.f32 %v960, %v1088
        %v1090 = vpop.f32.mrf.mxu0
        %1091 = vmatprep.mubr.f32.mxu0 0.0
        %1092 = vmatmul.mubr.f32.gmra.mxu0 %v846
        %v1093 = vpop.f32.mrf.mxu0
        %v1094 = vadd.f32 %v960, %v1093
        %v1095 = vpop.f32.mrf.mxu0
        %1096 = vmatprep.mubr.f32.mxu0 0.0
        %1097 = vmatmul.mubr.f32.gmra.mxu0 %v851
        %v1098 = vpop.f32.mrf.mxu0
        %v1099 = vadd.f32 %v960, %v1098
        %v1100 = vpop.f32.mrf.mxu0
        %1101 = vmatprep.mubr.f32.mxu0 0.0
        %1102 = vmatmul.mubr.f32.gmra.mxu0 %v856
        %v1103 = vpop.f32.mrf.mxu0
        %v1104 = vadd.f32 %v960, %v1103
        %v1105 = vpop.f32.mrf.mxu0
        %1106 = vmatprep.mubr.f32.mxu0 0.0
        %1107 = vmatmul.mubr.f32.gmra.mxu0 %v861
        %v1108 = vpop.f32.mrf.mxu0
        %v1109 = vadd.f32 %v960, %v1108
        %v1110 = vpop.f32.mrf.mxu0
        %1111 = vmatprep.mubr.f32.mxu0 0.0
        %1112 = vmatmul.mubr.f32.gmra.mxu0 %v866
        %v1113 = vpop.f32.mrf.mxu0
        %v1114 = vadd.f32 %v960, %v1113
        %v1115 = vpop.f32.mrf.mxu0
        %1116 = vmatprep.mubr.f32.mxu0 0.0
        %1117 = vmatmul.mubr.f32.gmra.mxu0 %v871
        %v1118 = vpop.f32.mrf.mxu0
        %v1119 = vadd.f32 %v960, %v1118
        %v1120 = vpop.f32.mrf.mxu0
        %1121 = vmatprep.mubr.f32.mxu0 0.0
        %1122 = vmatmul.mubr.f32.gmra.mxu0 %v876
        %v1123 = vpop.f32.mrf.mxu0
        %v1124 = vadd.f32 %v960, %v1123
        %v1125 = vpop.f32.mrf.mxu0
        %1126 = vmatprep.mubr.f32.mxu0 0.0
        %1127 = vmatmul.mubr.f32.gmra.mxu0 %v881
        %v1128 = vpop.f32.mrf.mxu0
        %v1129 = vadd.f32 %v960, %v1128
        %v1130 = vpop.f32.mrf.mxu0
        %1131 = vmatprep.mubr.f32.mxu0 0.0
        %1132 = vmatmul.mubr.f32.gmra.mxu0 %v886
        %v1133 = vpop.f32.mrf.mxu0
        %v1134 = vadd.f32 %v960, %v1133
        %v1135 = vpop.f32.mrf.mxu0
        %1136 = vmatprep.mubr.f32.mxu0 0.0
        %1137 = vmatmul.mubr.f32.gmra.mxu0 %v891
        %v1138 = vpop.f32.mrf.mxu0
        %v1139 = vadd.f32 %v960, %v1138
        %v1140 = vpop.f32.mrf.mxu0
        %1141 = vmatprep.mubr.f32.mxu0 0.0
        %1142 = vmatmul.mubr.f32.gmra.mxu0 %v896
        %v1143 = vpop.f32.mrf.mxu0
        %v1144 = vadd.f32 %v960, %v1143
        %v1145 = vpop.f32.mrf.mxu0
        %1146 = vmatprep.mubr.f32.mxu0 0.0
        %1147 = vmatmul.mubr.f32.gmra.mxu0 %v901
        %v1148 = vpop.f32.mrf.mxu0
        %v1149 = vadd.f32 %v960, %v1148
        %v1150 = vpop.f32.mrf.mxu0
        %1151 = vmatprep.mubr.f32.mxu0 0.0
        %1152 = vmatmul.mubr.f32.gmra.mxu0 %v906
        %v1153 = vpop.f32.mrf.mxu0
        %v1154 = vadd.f32 %v960, %v1153
        %v1155 = vpop.f32.mrf.mxu0
        %1156 = vmatprep.mubr.f32.mxu0 0.0
        %1157 = vmatmul.mubr.f32.gmra.mxu0 %v911
        %v1158 = vpop.f32.mrf.mxu0
        %v1159 = vadd.f32 %v960, %v1158
        %v1160 = vpop.f32.mrf.mxu0
        %1161 = vmatprep.mubr.f32.mxu0 0.0
        %1162 = vmatmul.mubr.f32.gmra.mxu0 %v916
        %v1163 = vpop.f32.mrf.mxu0
        %v1164 = vadd.f32 %v960, %v1163
        %v1165 = vpop.f32.mrf.mxu0
        %1166 = vmatprep.mubr.f32.mxu0 0.0
        %1167 = vmatmul.mubr.f32.gmra.mxu0 %v921
        %v1168 = vpop.f32.mrf.mxu0
        %v1169 = vadd.f32 %v960, %v1168
        %v1170 = vpop.f32.mrf.mxu0
        %1171 = vmatprep.mubr.f32.mxu0 0.0
        %1172 = vmatmul.mubr.f32.gmra.mxu0 %v926
        %v1173 = vpop.f32.mrf.mxu0
        %v1174 = vadd.f32 %v960, %v1173
        %v1175 = vpop.f32.mrf.mxu0
        %1176 = vmatprep.mubr.f32.mxu0 0.0
        %1177 = vmatmul.mubr.f32.gmra.mxu0 %v931
        %v1178 = vpop.f32.mrf.mxu0
        %v1179 = vadd.f32 %v960, %v1178
        %v1180 = vpop.f32.mrf.mxu0
        %1181 = vmatprep.mubr.f32.mxu0 0.0
        %1182 = vmatmul.mubr.f32.gmra.mxu0 %v936
        %v1183 = vpop.f32.mrf.mxu0
        %v1184 = vadd.f32 %v960, %v1183
        %v1185 = vpop.f32.mrf.mxu0
        %1186 = vdwg.mxu0
        %v1187 = vld [vmem:[#allocation10] sm:$0xff]
        %v1188 = vld [vmem:[#allocation10 + $0x8] sm:$0xff]
        %v1189 = vld [vmem:[#allocation10 + $0x10] sm:$0xff]
        %v1190 = vld [vmem:[#allocation10 + $0x18] sm:$0xff]
        %v1191 = vld [vmem:[#allocation10 + $0x20] sm:$0xff]
        %v1192 = vld [vmem:[#allocation10 + $0x28] sm:$0xff]
        %v1193 = vld [vmem:[#allocation10 + $0x30] sm:$0xff]
        %v1194 = vld [vmem:[#allocation10 + $0x38] sm:$0xff]
        %v1195 = vld [vmem:[#allocation10 + $0x40] sm:$0xff]
        %v1196 = vld [vmem:[#allocation10 + $0x48] sm:$0xff]
        %v1197 = vld [vmem:[#allocation10 + $0x50] sm:$0xff]
        %v1198 = vld [vmem:[#allocation10 + $0x58] sm:$0xff]
        %v1199 = vld [vmem:[#allocation10 + $0x60] sm:$0xff]
        %v1200 = vld [vmem:[#allocation10 + $0x68] sm:$0xff]
        %v1201 = vld [vmem:[#allocation10 + $0x70] sm:$0xff]
        %v1202 = vld [vmem:[#allocation10 + $0x78] sm:$0xff]
        %v1203 = vld [vmem:[%s8] sm:$0x1]
        %v1205 = vlaneseq
        %v1206 = vshrl.u32 %v1205, 7
        %v1207 = vsub.s32 0, %v1206
        %v1208 = vrot.slane %v1203, %v1207
        %1210 = vmatprep.subr.mxu0 0.0
        %1211 = vmatpush1.msra.mxu0 %v1202
        %1212 = vmatprep.subr.mxu0 0.0
        %1213 = vmatpush1.msra.mxu0 %v1201
        %1214 = vmatprep.subr.mxu0 0.0
        %1215 = vmatpush1.msra.mxu0 %v1200
        %1216 = vmatprep.subr.mxu0 0.0
        %1217 = vmatpush1.msra.mxu0 %v1199
        %1218 = vmatprep.subr.mxu0 0.0
        %1219 = vmatpush1.msra.mxu0 %v1198
        %1220 = vmatprep.subr.mxu0 0.0
        %1221 = vmatpush1.msra.mxu0 %v1197
        %1222 = vmatprep.subr.mxu0 0.0
        %1223 = vmatpush1.msra.mxu0 %v1196
        %1224 = vmatprep.subr.mxu0 0.0
        %1225 = vmatpush1.msra.mxu0 %v1195
        %1226 = vmatprep.subr.mxu0 0.0
        %1227 = vmatpush1.msra.mxu0 %v1194
        %1228 = vmatprep.subr.mxu0 0.0
        %1229 = vmatpush1.msra.mxu0 %v1193
        %1230 = vmatprep.subr.mxu0 0.0
        %1231 = vmatpush1.msra.mxu0 %v1192
        %1232 = vmatprep.subr.mxu0 0.0
        %1233 = vmatpush1.msra.mxu0 %v1191
        %1234 = vmatprep.subr.mxu0 0.0
        %1235 = vmatpush1.msra.mxu0 %v1190
        %1236 = vmatprep.subr.mxu0 0.0
        %1237 = vmatpush1.msra.mxu0 %v1189
        %1238 = vmatprep.subr.mxu0 0.0
        %1239 = vmatpush1.msra.mxu0 %v1188
        %1240 = vmatprep.subr.mxu0 0.0
        %1241 = vmatpush1.msra.mxu0 %v1187
        %1242 = vmatprep.subr.mxu0 0.0
        %1243 = vmatpush2.msra.mxu0 0.0
        %1244 = vmatprep.subr.mxu0 0.0
        %1245 = vmatpush2.msra.mxu0 0.0
        %1246 = vmatprep.subr.mxu0 0.0
        %1247 = vmatpush2.msra.mxu0 0.0
        %1248 = vmatprep.subr.mxu0 0.0
        %1249 = vmatpush2.msra.mxu0 0.0
        %1250 = vmatprep.subr.mxu0 0.0
        %1251 = vmatpush2.msra.mxu0 0.0
        %1252 = vmatprep.subr.mxu0 0.0
        %1253 = vmatpush2.msra.mxu0 0.0
        %1254 = vmatprep.subr.mxu0 0.0
        %1255 = vmatpush2.msra.mxu0 0.0
        %1256 = vmatprep.subr.mxu0 0.0
        %1257 = vmatpush2.msra.mxu0 0.0
        %1258 = vmatprep.subr.mxu0 0.0
        %1259 = vmatpush2.msra.mxu0 0.0
        %1260 = vmatprep.subr.mxu0 0.0
        %1261 = vmatpush2.msra.mxu0 0.0
        %1262 = vmatprep.subr.mxu0 0.0
        %1263 = vmatpush2.msra.mxu0 0.0
        %1264 = vmatprep.subr.mxu0 0.0
        %1265 = vmatpush2.msra.mxu0 0.0
        %1266 = vmatprep.subr.mxu0 0.0
        %1267 = vmatpush2.msra.mxu0 0.0
        %1268 = vmatprep.subr.mxu0 0.0
        %1269 = vmatpush2.msra.mxu0 0.0
        %1270 = vmatprep.subr.mxu0 0.0
        %1271 = vmatpush2.msra.mxu0 0.0
        %1272 = vmatprep.subr.mxu0 0.0
        %1273 = vmatpush2.msra.mxu0 0.0
        %1274 = vmatprep.mubr.f32.mxu0 0.0
        %1275 = vmatmul.mubr.f32.gmra.mxu0 %v1029
        %v1276 = vpop.f32.mrf.mxu0
        %v1277 = vadd.f32 %v1208, %v1276
        %v1278 = vpop.f32.mrf.mxu0
        %1279 = vmatprep.mubr.f32.mxu0 0.0
        %1280 = vmatmul.mubr.f32.gmra.mxu0 %v1034
        %v1281 = vpop.f32.mrf.mxu0
        %v1282 = vadd.f32 %v1208, %v1281
        %v1283 = vpop.f32.mrf.mxu0
        %1284 = vmatprep.mubr.f32.mxu0 0.0
        %1285 = vmatmul.mubr.f32.gmra.mxu0 %v1039
        %v1286 = vpop.f32.mrf.mxu0
        %v1287 = vadd.f32 %v1208, %v1286
        %v1288 = vpop.f32.mrf.mxu0
        %1289 = vmatprep.mubr.f32.mxu0 0.0
        %1290 = vmatmul.mubr.f32.gmra.mxu0 %v1044
        %v1291 = vpop.f32.mrf.mxu0
        %v1292 = vadd.f32 %v1208, %v1291
        %v1293 = vpop.f32.mrf.mxu0
        %1294 = vmatprep.mubr.f32.mxu0 0.0
        %1295 = vmatmul.mubr.f32.gmra.mxu0 %v1049
        %v1296 = vpop.f32.mrf.mxu0
        %v1297 = vadd.f32 %v1208, %v1296
        %v1298 = vpop.f32.mrf.mxu0
        %1299 = vmatprep.mubr.f32.mxu0 0.0
        %1300 = vmatmul.mubr.f32.gmra.mxu0 %v1054
        %v1301 = vpop.f32.mrf.mxu0
        %v1302 = vadd.f32 %v1208, %v1301
        %v1303 = vpop.f32.mrf.mxu0
        %1304 = vmatprep.mubr.f32.mxu0 0.0
        %1305 = vmatmul.mubr.f32.gmra.mxu0 %v1059
        %v1306 = vpop.f32.mrf.mxu0
        %v1307 = vadd.f32 %v1208, %v1306
        %v1308 = vpop.f32.mrf.mxu0
        %1309 = vmatprep.mubr.f32.mxu0 0.0
        %1310 = vmatmul.mubr.f32.gmra.mxu0 %v1064
        %v1311 = vpop.f32.mrf.mxu0
        %v1312 = vadd.f32 %v1208, %v1311
        %v1313 = vpop.f32.mrf.mxu0
        %1314 = vmatprep.mubr.f32.mxu0 0.0
        %1315 = vmatmul.mubr.f32.gmra.mxu0 %v1069
        %v1316 = vpop.f32.mrf.mxu0
        %v1317 = vadd.f32 %v1208, %v1316
        %v1318 = vpop.f32.mrf.mxu0
        %1319 = vmatprep.mubr.f32.mxu0 0.0
        %1320 = vmatmul.mubr.f32.gmra.mxu0 %v1074
        %v1321 = vpop.f32.mrf.mxu0
        %v1322 = vadd.f32 %v1208, %v1321
        %v1323 = vpop.f32.mrf.mxu0
        %1324 = vmatprep.mubr.f32.mxu0 0.0
        %1325 = vmatmul.mubr.f32.gmra.mxu0 %v1079
        %v1326 = vpop.f32.mrf.mxu0
        %v1327 = vadd.f32 %v1208, %v1326
        %v1328 = vpop.f32.mrf.mxu0
        %1329 = vmatprep.mubr.f32.mxu0 0.0
        %1330 = vmatmul.mubr.f32.gmra.mxu0 %v1084
        %v1331 = vpop.f32.mrf.mxu0
        %v1332 = vadd.f32 %v1208, %v1331
        %v1333 = vpop.f32.mrf.mxu0
        %1334 = vmatprep.mubr.f32.mxu0 0.0
        %1335 = vmatmul.mubr.f32.gmra.mxu0 %v1089
        %v1336 = vpop.f32.mrf.mxu0
        %v1337 = vadd.f32 %v1208, %v1336
        %v1338 = vpop.f32.mrf.mxu0
        %1339 = vmatprep.mubr.f32.mxu0 0.0
        %1340 = vmatmul.mubr.f32.gmra.mxu0 %v1094
        %v1341 = vpop.f32.mrf.mxu0
        %v1342 = vadd.f32 %v1208, %v1341
        %v1343 = vpop.f32.mrf.mxu0
        %1344 = vmatprep.mubr.f32.mxu0 0.0
        %1345 = vmatmul.mubr.f32.gmra.mxu0 %v1099
        %v1346 = vpop.f32.mrf.mxu0
        %v1347 = vadd.f32 %v1208, %v1346
        %v1348 = vpop.f32.mrf.mxu0
        %1349 = vmatprep.mubr.f32.mxu0 0.0
        %1350 = vmatmul.mubr.f32.gmra.mxu0 %v1104
        %v1351 = vpop.f32.mrf.mxu0
        %v1352 = vadd.f32 %v1208, %v1351
        %v1353 = vpop.f32.mrf.mxu0
        %1354 = vmatprep.mubr.f32.mxu0 0.0
        %1355 = vmatmul.mubr.f32.gmra.mxu0 %v1109
        %v1356 = vpop.f32.mrf.mxu0
        %v1357 = vadd.f32 %v1208, %v1356
        %v1358 = vpop.f32.mrf.mxu0
        %1359 = vmatprep.mubr.f32.mxu0 0.0
        %1360 = vmatmul.mubr.f32.gmra.mxu0 %v1114
        %v1361 = vpop.f32.mrf.mxu0
        %v1362 = vadd.f32 %v1208, %v1361
        %v1363 = vpop.f32.mrf.mxu0
        %1364 = vmatprep.mubr.f32.mxu0 0.0
        %1365 = vmatmul.mubr.f32.gmra.mxu0 %v1119
        %v1366 = vpop.f32.mrf.mxu0
        %v1367 = vadd.f32 %v1208, %v1366
        %v1368 = vpop.f32.mrf.mxu0
        %1369 = vmatprep.mubr.f32.mxu0 0.0
        %1370 = vmatmul.mubr.f32.gmra.mxu0 %v1124
        %v1371 = vpop.f32.mrf.mxu0
        %v1372 = vadd.f32 %v1208, %v1371
        %v1373 = vpop.f32.mrf.mxu0
        %1374 = vmatprep.mubr.f32.mxu0 0.0
        %1375 = vmatmul.mubr.f32.gmra.mxu0 %v1129
        %v1376 = vpop.f32.mrf.mxu0
        %v1377 = vadd.f32 %v1208, %v1376
        %v1378 = vpop.f32.mrf.mxu0
        %1379 = vmatprep.mubr.f32.mxu0 0.0
        %1380 = vmatmul.mubr.f32.gmra.mxu0 %v1134
        %v1381 = vpop.f32.mrf.mxu0
        %v1382 = vadd.f32 %v1208, %v1381
        %v1383 = vpop.f32.mrf.mxu0
        %1384 = vmatprep.mubr.f32.mxu0 0.0
        %1385 = vmatmul.mubr.f32.gmra.mxu0 %v1139
        %v1386 = vpop.f32.mrf.mxu0
        %v1387 = vadd.f32 %v1208, %v1386
        %v1388 = vpop.f32.mrf.mxu0
        %1389 = vmatprep.mubr.f32.mxu0 0.0
        %1390 = vmatmul.mubr.f32.gmra.mxu0 %v1144
        %v1391 = vpop.f32.mrf.mxu0
        %v1392 = vadd.f32 %v1208, %v1391
        %v1393 = vpop.f32.mrf.mxu0
        %1394 = vmatprep.mubr.f32.mxu0 0.0
        %1395 = vmatmul.mubr.f32.gmra.mxu0 %v1149
        %v1396 = vpop.f32.mrf.mxu0
        %v1397 = vadd.f32 %v1208, %v1396
        %v1398 = vpop.f32.mrf.mxu0
        %1399 = vmatprep.mubr.f32.mxu0 0.0
        %1400 = vmatmul.mubr.f32.gmra.mxu0 %v1154
        %v1401 = vpop.f32.mrf.mxu0
        %v1402 = vadd.f32 %v1208, %v1401
        %v1403 = vpop.f32.mrf.mxu0
        %1404 = vmatprep.mubr.f32.mxu0 0.0
        %1405 = vmatmul.mubr.f32.gmra.mxu0 %v1159
        %v1406 = vpop.f32.mrf.mxu0
        %v1407 = vadd.f32 %v1208, %v1406
        %v1408 = vpop.f32.mrf.mxu0
        %1409 = vmatprep.mubr.f32.mxu0 0.0
        %1410 = vmatmul.mubr.f32.gmra.mxu0 %v1164
        %v1411 = vpop.f32.mrf.mxu0
        %v1412 = vadd.f32 %v1208, %v1411
        %v1413 = vpop.f32.mrf.mxu0
        %1414 = vmatprep.mubr.f32.mxu0 0.0
        %1415 = vmatmul.mubr.f32.gmra.mxu0 %v1169
        %v1416 = vpop.f32.mrf.mxu0
        %v1417 = vadd.f32 %v1208, %v1416
        %v1418 = vpop.f32.mrf.mxu0
        %1419 = vmatprep.mubr.f32.mxu0 0.0
        %1420 = vmatmul.mubr.f32.gmra.mxu0 %v1174
        %v1421 = vpop.f32.mrf.mxu0
        %v1422 = vadd.f32 %v1208, %v1421
        %v1423 = vpop.f32.mrf.mxu0
        %1424 = vmatprep.mubr.f32.mxu0 0.0
        %1425 = vmatmul.mubr.f32.gmra.mxu0 %v1179
        %v1426 = vpop.f32.mrf.mxu0
        %v1427 = vadd.f32 %v1208, %v1426
        %v1428 = vpop.f32.mrf.mxu0
        %1429 = vmatprep.mubr.f32.mxu0 0.0
        %1430 = vmatmul.mubr.f32.gmra.mxu0 %v1184
        %v1431 = vpop.f32.mrf.mxu0
        %v1432 = vadd.f32 %v1208, %v1431
        %v1433 = vpop.f32.mrf.mxu0
        %1434 = vdwg.mxu0
        %1435 = vst [vmem:[%s408] sm:$0xff] %v1277
        %1436 = vst [vmem:[%s408 + $0x8] sm:$0xff] %v1282
        %1437 = vst [vmem:[%s408 + $0x10] sm:$0xff] %v1287
        %1438 = vst [vmem:[%s408 + $0x18] sm:$0xff] %v1292
        %1439 = vst [vmem:[%s408 + $0x20] sm:$0xff] %v1297
        %1440 = vst [vmem:[%s408 + $0x28] sm:$0xff] %v1302
        %1441 = vst [vmem:[%s408 + $0x30] sm:$0xff] %v1307
        %1442 = vst [vmem:[%s408 + $0x38] sm:$0xff] %v1312
        %1443 = vst [vmem:[%s408 + $0x40] sm:$0xff] %v1317
        %1444 = vst [vmem:[%s408 + $0x48] sm:$0xff] %v1322
        %1445 = vst [vmem:[%s408 + $0x50] sm:$0xff] %v1327
        %1446 = vst [vmem:[%s408 + $0x58] sm:$0xff] %v1332
        %1447 = vst [vmem:[%s408 + $0x60] sm:$0xff] %v1337
        %1448 = vst [vmem:[%s408 + $0x68] sm:$0xff] %v1342
        %1449 = vst [vmem:[%s408 + $0x70] sm:$0xff] %v1347
        %1450 = vst [vmem:[%s408 + $0x78] sm:$0xff] %v1352
        %1451 = vst [vmem:[%s408 + $0x80] sm:$0xff] %v1357
        %1452 = vst [vmem:[%s408 + $0x88] sm:$0xff] %v1362
        %1453 = vst [vmem:[%s408 + $0x90] sm:$0xff] %v1367
        %1454 = vst [vmem:[%s408 + $0x98] sm:$0xff] %v1372
        %1455 = vst [vmem:[%s408 + $0xa0] sm:$0xff] %v1377
        %1456 = vst [vmem:[%s408 + $0xa8] sm:$0xff] %v1382
        %1457 = vst [vmem:[%s408 + $0xb0] sm:$0xff] %v1387
        %1458 = vst [vmem:[%s408 + $0xb8] sm:$0xff] %v1392
        %1459 = vst [vmem:[%s408 + $0xc0] sm:$0xff] %v1397
        %1460 = vst [vmem:[%s408 + $0xc8] sm:$0xff] %v1402
        %1461 = vst [vmem:[%s408 + $0xd0] sm:$0xff] %v1407
        %1462 = vst [vmem:[%s408 + $0xd8] sm:$0xff] %v1412
        %1463 = vst [vmem:[%s408 + $0xe0] sm:$0xff] %v1417
        %1464 = vst [vmem:[%s408 + $0xe8] sm:$0xff] %v1422
        %1465 = vst [vmem:[%s408 + $0xf0] sm:$0xff] %v1427
        %1466 = vst [vmem:[%s408 + $0xf8] sm:$0xff] %v1432
        %s1467 = sand.u32 %s230, 1
        %s1468 = scalar_lea.sflag [#allocation4], %s1467
        %s1469 = sand.u32 %s230, 1
        %s1470 = smul.addr %s1469, 256
        %s1471 = scalar_lea.vmem [#allocation11], %s1470
        // Predicated region
        $region77: #{tpu_custom_call.1} parent=55 // pred_check
          %p1472 = pneg %p240
        $region78: #{tpu_custom_call.1} parent=55 // pred_check_branch
          %1474 = sbr.rel (%p1472) target = $region80
        $region79: #{tpu_custom_call.1} parent=55 // pred_region
          %s1475 = smul.u32 32, %s28
          %s1477 = ssub.s32 4096, 4096
          %1478 = vsyncadd %s1468, %s1477
          %s1479 = smul.addr %s1475, 128
          %s1480 = scalar_lea.hbm %s9, %s1479
          %s1481 = sshll.u32 %s1471, 4
          %s1482 = int_to_ptr.vmem [resolvable:$true] %s1481
          %1487 = dma.vmem_to_hbm [thread:$0]  %s1482, 4096, %s1480, %s1468, 128, 128, 8
        $region80: #{tpu_custom_call.1} parent=55 // pred_fallthru
          _
      $region56: #{tpu_custom_call.1} parent=5 // pred_fallthru
        _
      %p1488 = scmp.le.s32.totalorder 2, %s23
      // Predicated region
      $region81: #{tpu_custom_call.1} parent=5 // pred_check
        %p1489 = pneg %p1488
      $region82: #{tpu_custom_call.1} parent=5 // pred_check_branch
        %1491 = sbr.rel (%p1489) target = $region84
      $region83: #{tpu_custom_call.1} parent=5 // pred_region
        %s1492 = ssub.s32 %s23, 2
        // Predicated region
        $region85: #{tpu_custom_call.1} parent=83 // pred_check
          %p1493 = pneg %p246
        $region86: #{tpu_custom_call.1} parent=83 // pred_check_branch
          %1495 = sbr.rel (%p1493) target = $region88
        $region87: #{tpu_custom_call.1} parent=83 // pred_region
          %s1496 = sand.u32 %s231, 1
          %s1497 = scalar_lea.sflag [#allocation4], %s1496
          %s1498 = sand.u32 %s231, 1
          %s1499 = smul.addr %s1498, 256
          %s1500 = scalar_lea.vmem [#allocation11], %s1499
          %1501 = dma.done %s1497, 4096
        $region88: #{tpu_custom_call.1} parent=83 // pred_fallthru
          _
      $region84: #{tpu_custom_call.1} parent=5 // pred_fallthru
        _
    $region6: #{tpu_custom_call.1} parent=1 // loop_footer
      %s27 = sadd.s32 1, %s23
    $region7: #{tpu_custom_call.1} parent=1 // loop_footer_branch
      %22 = sbr.rel target = $region3
    $region8: #{tpu_custom_call.1} parent=1 // loop_exit
      _
    %1502 = vsyncpa [#allocation3], 1
    %s1503 = scalar_lea.sflag [#allocation3], 1
    %1504 = vsyncpa %s1503, 1
    %1505 = vsyncpa [#allocation6], 1
    %1506 = vsyncpa [#allocation9], 1
    %1507 = vsyncpa [#allocation4], 1
    %s1508 = scalar_lea.sflag [#allocation4], 1
    %1509 = vsyncpa %s1508, 1

</llo_original>
